<compile_context>
chip_gen: v6e
topology: v6e:2x2x1
jax: 0.10.0
libtpu: 0.0.40
codegen_flags: <defaults>
</compile_context>

<pallas_src>
import functools
import math

import jax
import jax.numpy as jnp
import numpy as np
from jax.experimental import pallas as pl
from jax.experimental.pallas import tpu as pltpu


def _round_up(x, m):
    return ((x + m - 1) // m) * m


# --------------------------------------------------------------------------
# One-time weight packing (hoisted out of the per-call path).
# --------------------------------------------------------------------------
def pack_gmixer_params(params, *, n_agents, rnn_hidden_dim,
                       mxu_dtype=jnp.bfloat16):
    (wq1, bq1, wq2, bq2, wk1, bk1, wk2, bk2,
     hw1a, hb1a, hw1b, hb1b, hb1w, hb1bb,
     hwfa, hbfa, hwfb, hbfb, vw1, vb1, vw2, vb2) = [
        jnp.asarray(p, jnp.float32) for p in params]

    n = n_agents
    H = rnn_hidden_dim
    S = hw1a.shape[0]
    hyper_att = wq1.shape[1]      # attention MLP hidden width
    hyper = hw1a.shape[1]         # hypernet hidden width
    A = wq2.shape[1]              # attention dim
    E = hb1w.shape[1]             # mixing embed dim
    nq = n * hyper_att

    # ---- z1 (first fused dot) column layout --------------------------------
    # [ q1:nq | k1:nq | h1:hyper | hf:hyper | b1:E | vh:E | aq_rep:n*n ]
    c_q1, c_k1 = 0, nq
    c_h1 = 2 * nq
    c_hf = c_h1 + hyper
    c_b1 = c_hf + hyper           # pre-ReLU read; 128-aligned for the default cfg
    c_vh = c_b1 + E
    c_aqr = c_vh + E
    C1 = c_aqr + n * n

    # ---- z2 (second fused dot) column layout --------------------------------
    # [ Q:n*A | K:n*A | w1:n*E | wf:E | v:1 ]
    d_q, d_k = 0, n * A
    d_w1 = 2 * n * A
    d_wf = d_w1 + n * E
    d_v = d_wf + E
    C2 = d_v + 1

    # input row layout: [ agent_qs:n | states:S | hidden_output:n*H ]
    Din = n + S + n * H
    r_aq, r_st, r_hid = 0, n, n + S

    eye_n = jnp.eye(n, dtype=jnp.float32)

    W1 = jnp.zeros((Din, C1), jnp.float32)
    W1 = W1.at[r_hid:, c_q1:c_q1 + nq].set(jnp.kron(eye_n, wq1))
    W1 = W1.at[r_hid:, c_k1:c_k1 + nq].set(jnp.kron(eye_n, wk1))
    W1 = W1.at[r_st:r_hid, c_h1:c_h1 + hyper].set(hw1a)
    W1 = W1.at[r_st:r_hid, c_hf:c_hf + hyper].set(hwfa)
    W1 = W1.at[r_st:r_hid, c_b1:c_b1 + E].set(hb1w)
    W1 = W1.at[r_st:r_hid, c_vh:c_vh + E].set(vw1)
    # agent_qs replication: column p = j*n + i picks aq_i
    raq = jnp.asarray(np.tile(np.eye(n, dtype=np.float32), (1, n)))
    W1 = W1.at[r_aq:r_st, c_aqr:].set(raq)

    B1 = jnp.concatenate([jnp.tile(bq1, (1, n)), jnp.tile(bk1, (1, n)),
                          hb1a, hbfa, hb1bb, vb1,
                          jnp.zeros((1, n * n), jnp.float32)], axis=1)

    W2 = jnp.zeros((C1, C2), jnp.float32)
    W2 = W2.at[c_q1:c_q1 + nq, d_q:d_q + n * A].set(jnp.kron(eye_n, wq2))
    W2 = W2.at[c_k1:c_k1 + nq, d_k:d_k + n * A].set(jnp.kron(eye_n, wk2))
    W2 = W2.at[c_h1:c_h1 + hyper, d_w1:d_w1 + n * E].set(hw1b)
    W2 = W2.at[c_hf:c_hf + hyper, d_wf:d_wf + E].set(hwfb)
    W2 = W2.at[c_vh:c_vh + E, d_v:].set(vw2)

    B2 = jnp.concatenate([jnp.tile(bq2, (1, n)), jnp.tile(bk2, (1, n)),
                          hb1b, hbfb, vb2], axis=1)

    # static 0/1 rearrangement matrices (exact in bf16)
    G = np.kron(np.eye(n * n, dtype=np.float32), np.ones((A, 1), np.float32))
    MR = np.kron(np.eye(n, dtype=np.float32), np.ones((n, E), np.float32))
    IST = np.tile(np.eye(E, dtype=np.float32), (n, 1))

    return (W1.astype(mxu_dtype), B1, W2.astype(mxu_dtype), B2,
            jnp.asarray(G, mxu_dtype), jnp.asarray(MR, mxu_dtype),
            jnp.asarray(IST, mxu_dtype))


# --------------------------------------------------------------------------
# Pallas kernel: whole mixer forward for one batch tile of tb rows.
# --------------------------------------------------------------------------
def _make_kernel(n, A, E, c_b1, c_aqr, mxu_dtype):
    inv_sqrt_a = 1.0 / math.sqrt(A)
    nA = n * A
    nE = n * E

    def kernel(x_ref, w1_ref, b1_ref, w2_ref, b2_ref,
               g_ref, mr_ref, ist_ref, out_ref):
        f32 = jnp.float32
        x = x_ref[...]                                        # (tb, Din) mxu dtype

        # ---- fused first layer (both attention MLPs, all hypernets, aq rep)
        z1 = jnp.dot(x, w1_ref[...], preferred_element_type=f32) + b1_ref[...]
        b1 = z1[:, c_b1:c_b1 + E]                             # (tb, E), pre-ReLU
        aq_pair = z1[:, c_aqr:c_aqr + n * n]                  # (tb, n*n): aq_i at p=j*n+i
        act = jnp.maximum(z1, 0.0).astype(mxu_dtype)

        # ---- fused second layer
        z2 = jnp.dot(act, w2_ref[...], preferred_element_type=f32) + b2_ref[...]
        qmat = z2[:, :nA]                                     # (tb, n*A)
        kmat = z2[:, nA:2 * nA]                               # (tb, n*A)
        w1abs = jnp.abs(z2[:, 2 * nA:2 * nA + nE])            # (tb, n*E)
        wfabs = jnp.abs(z2[:, 2 * nA + nE:2 * nA + nE + E])   # (tb, E)
        v = z2[:, 2 * nA + nE + E:2 * nA + nE + E + 1]        # (tb, 1)

        # ---- sigmoid attention, lane-dense: pair p = j*n + i holds Q_i . K_j
        q_rep = jnp.concatenate([qmat] * n, axis=-1)          # (tb, n*n*A)
        k_rep = jnp.concatenate(
            [jnp.concatenate([kmat[:, j * A:(j + 1) * A]] * n, axis=-1)
             for j in range(n)], axis=-1)                     # (tb, n*n*A)
        prod = q_rep * k_rep
        scores = jnp.dot(prod.astype(mxu_dtype), g_ref[...],
                         preferred_element_type=f32)          # (tb, n*n)
        atten = jax.nn.sigmoid(scores * inv_sqrt_a)
        l1_col = jnp.sum(atten, axis=-1, keepdims=True)       # (tb, 1)

        # ---- new_Q_j = sum_i aq_i * atten_ij, broadcast across E lanes
        weighted = atten * aq_pair                            # (tb, n*n)
        nq_rep = jnp.dot(weighted.astype(mxu_dtype), mr_ref[...],
                         preferred_element_type=f32)          # (tb, n*E)
        mix = nq_rep * w1abs
        hidden = jnp.dot(mix.astype(mxu_dtype), ist_ref[...],
                         preferred_element_type=f32) + b1     # (tb, E)
        # ELU(alpha=1)
        hidden = jnp.where(hidden > 0, hidden,
                           jnp.exp(jnp.minimum(hidden, 0.0)) - 1.0)

        q_col = jnp.sum(hidden * wfabs, axis=-1, keepdims=True) + v   # (tb, 1)

        # ---- single lane-dense output block: row 0 = q_tot, row 1 = l1 sums
        out_ref[0:1, :] = q_col.T
        out_ref[1:2, :] = l1_col.T

    return kernel


# --------------------------------------------------------------------------
# Wrapper: input concat/pad, tiling, BlockSpecs, pallas_call.
# --------------------------------------------------------------------------
@functools.partial(jax.jit, static_argnames=("n_agents", "rnn_hidden_dim", "tb"))
def gmixer_forward(agent_qs, hidden_output, states, packed, *, n_agents,
                   rnn_hidden_dim, tb=512):
    W1, B1, W2, B2, G, MR, IST = packed
    n = n_agents
    H = rnn_hidden_dim
    in_dtype = W1.dtype
    A = G.shape[0] // (n * n)
    E = IST.shape[1]
    C1 = W1.shape[1]
    c_b1 = C1 - n * n - 2 * E
    c_aqr = C1 - n * n

    bs = agent_qs.shape[0]
    aq = agent_qs.reshape(-1, n).astype(jnp.float32)
    B = aq.shape[0]
    st = states.reshape(B, -1).astype(jnp.float32)
    hid = hidden_output.reshape(B, n * H).astype(jnp.float32)   # free reshape
    Din = n + st.shape[1] + n * H
    assert W1.shape[0] == Din, "packed params do not match input shapes"

    # one fused input array -> one DMA per tile (and bf16 halves its bytes)
    x = jnp.concatenate([aq, st, hid], axis=1).astype(in_dtype)

    # 128-aligned batch tiles; prefer >= 2 grid steps (v7x megacore) when
    # the batch allows it
    B128 = _round_up(B, 128)
    tb_eff = min(max(128, _round_up(tb, 128)), B128)
    if B128 >= 256 and B128 <= tb_eff:
        tb_eff = _round_up(B128 // 2, 128)
    B_pad = _round_up(B, tb_eff)
    if B_pad != B:
        x = jnp.pad(x, ((0, B_pad - B), (0, 0)))
    grid = (B_pad // tb_eff,)

    kernel = _make_kernel(n, A, E, c_b1, c_aqr, in_dtype)
    weight_specs = [pl.BlockSpec(p.shape, lambda i: (0, 0))
                    for p in (W1, B1, W2, B2, G, MR, IST)]

    out = pl.pallas_call(
        kernel,
        out_shape=jax.ShapeDtypeStruct((2, B_pad), jnp.float32),
        grid_spec=pltpu.PrefetchScalarGridSpec(
            num_scalar_prefetch=0,
            grid=grid,
            in_specs=[pl.BlockSpec((tb_eff, Din), lambda i: (i, 0))]
                     + weight_specs,
            out_specs=pl.BlockSpec((2, tb_eff), lambda i: (0, i)),
        ),
        compiler_params=pltpu.CompilerParams(
            dimension_semantics=("parallel",),
            vmem_limit_bytes=(64 * 1024 * 1024 if tb_eff > 512 else None)),
    )(x, W1, B1, W2, B2, G, MR, IST)

    q_tot = out[0, :B].reshape(bs, -1, 1)
    l1_loss = jnp.sum(out[1, :B]) / (B * n * n)     # mean over all atten entries
    return q_tot, l1_loss


# --------------------------------------------------------------------------
# Deterministic parameter init (PyTorch nn.Linear default U(-1/sqrt(fan_in),.))
# --------------------------------------------------------------------------
def init_params(key, *, state_dim, n_agents, rnn_hidden_dim, embed_dim,
                hypernet_embed, atten_dim):
    keys = jax.random.split(key, 11)

    def lin(k, fan_in, fan_out):
        kw, kb = jax.random.split(k)
        bound = 1.0 / math.sqrt(fan_in)
        w = jax.random.uniform(kw, (fan_in, fan_out), jnp.float32, -bound, bound)
        b = jax.random.uniform(kb, (1, fan_out), jnp.float32, -bound, bound)
        return [w, b]

    p = []
    p += lin(keys[0], rnn_hidden_dim, hypernet_embed)        # attention query MLP l1
    p += lin(keys[1], hypernet_embed, atten_dim)             # attention query MLP l2
    p += lin(keys[2], rnn_hidden_dim, hypernet_embed)        # attention key MLP l1
    p += lin(keys[3], hypernet_embed, atten_dim)             # attention key MLP l2
    p += lin(keys[4], state_dim, hypernet_embed)             # hyper_w_1 l1
    p += lin(keys[5], hypernet_embed, embed_dim * n_agents)  # hyper_w_1 l2
    p += lin(keys[6], state_dim, embed_dim)                  # hyper_b_1
    p += lin(keys[7], state_dim, hypernet_embed)             # hyper_w_final l1
    p += lin(keys[8], hypernet_embed, embed_dim)             # hyper_w_final l2
    p += lin(keys[9], state_dim, embed_dim)                  # V l1
    p += lin(keys[10], embed_dim, 1)                         # V l2
    return tuple(p)


# --------------------------------------------------------------------------
# Pure-JAX reference (same math, batched einsums) for correctness checks.
# --------------------------------------------------------------------------
def gmixer_reference(agent_qs, hidden_output, states, params, *, n_agents,
                     rnn_hidden_dim):
    (wq1, bq1, wq2, bq2, wk1, bk1, wk2, bk2,
     hw1a, hb1a, hw1b, hb1b, hb1w, hb1bb,
     hwfa, hbfa, hwfb, hbfb, vw1, vb1, vw2, vb2) = params
    bs = agent_qs.shape[0]
    aq = agent_qs.reshape(-1, 1, n_agents).astype(jnp.float32)
    hid = hidden_output.reshape(-1, n_agents, rnn_hidden_dim).astype(jnp.float32)
    st = states.reshape(aq.shape[0], -1).astype(jnp.float32)

    q = jnp.maximum(hid @ wq1 + bq1, 0.0) @ wq2 + bq2
    k = jnp.maximum(hid @ wk1 + bk1, 0.0) @ wk2 + bk2
    atten = jax.nn.sigmoid(jnp.einsum("bia,bja->bij", q, k) / math.sqrt(q.shape[-1]))
    new_q = jnp.einsum("bqi,bij->bqj", aq, atten)
    l1_loss = jnp.mean(atten)

    E = hb1w.shape[1]
    w1 = jnp.abs(jnp.maximum(st @ hw1a + hb1a, 0.0) @ hw1b + hb1b).reshape(-1, n_agents, E)
    b1 = (st @ hb1w + hb1bb).reshape(-1, 1, E)
    hidden = jax.nn.elu(jnp.einsum("bqn,bne->bqe", new_q, w1) + b1)
    wf = jnp.abs(jnp.maximum(st @ hwfa + hbfa, 0.0) @ hwfb + hbfb).reshape(-1, E, 1)
    v = (jnp.maximum(st @ vw1 + vb1, 0.0) @ vw2 + vb2).reshape(-1, 1, 1)
    y = jnp.einsum("bqe,bel->bql", hidden, wf) + v
    return y.reshape(bs, -1, 1), l1_loss


if __name__ == "__main__":
    # small config: n_agents=4, rnn_hidden_dim=32, state_shape=(24,),
    # mixing_embed_dim=32, hypernet_embed=64, attention dim=32
    bs, T = 2, 8
    n_agents = 4
    rnn_hidden_dim = 32
    state_dim = 24
    embed_dim = 32
    hypernet_embed = 64
    atten_dim = 32

    key = jax.random.PRNGKey(0)
    kq, kh, ks, kp = jax.random.split(key, 4)
    agent_qs = jax.random.normal(kq, (bs, T, n_agents), jnp.float32)
    hidden_output = jax.random.normal(kh, (bs, T, n_agents, rnn_hidden_dim), jnp.float32)
    states = jax.random.normal(ks, (bs, T, state_dim), jnp.float32)
    params = init_params(
        kp, state_dim=state_dim, n_agents=n_agents, rnn_hidden_dim=rnn_hidden_dim,
        embed_dim=embed_dim, hypernet_embed=hypernet_embed, atten_dim=atten_dim)

    q_ref, l1_ref = gmixer_reference(
        agent_qs, hidden_output, states, params,
        n_agents=n_agents, rnn_hidden_dim=rnn_hidden_dim)

    # 1) strict correctness: f32 MXU path against the pure-JAX reference
    packed_f32 = pack_gmixer_params(params, n_agents=n_agents,
                                    rnn_hidden_dim=rnn_hidden_dim,
                                    mxu_dtype=jnp.float32)
    q32, l32 = gmixer_forward(agent_qs, hidden_output, states, packed_f32,
                              n_agents=n_agents, rnn_hidden_dim=rnn_hidden_dim,
                              tb=512)
    (q32, l32) = jax.block_until_ready((q32, l32))
    assert q32.shape == (bs, T, 1)
    np.testing.assert_allclose(np.asarray(q32), np.asarray(q_ref), rtol=2e-4, atol=2e-4)
    np.testing.assert_allclose(np.asarray(l32), np.asarray(l1_ref), rtol=2e-4, atol=2e-4)

    # 2) fast path: bf16 MXU inputs, f32 accumulation (deliberately loose tol)
    packed_bf16 = pack_gmixer_params(params, n_agents=n_agents,
                                     rnn_hidden_dim=rnn_hidden_dim,
                                     mxu_dtype=jnp.bfloat16)
    qbf, lbf = gmixer_forward(agent_qs, hidden_output, states, packed_bf16,
                              n_agents=n_agents, rnn_hidden_dim=rnn_hidden_dim,
                              tb=512)
    (qbf, lbf) = jax.block_until_ready((qbf, lbf))
    np.testing.assert_allclose(np.asarray(qbf), np.asarray(q_ref), rtol=1e-1, atol=1e-1)
    np.testing.assert_allclose(np.asarray(lbf), np.asarray(l1_ref), rtol=5e-2, atol=5e-2)

    print("KERNEL_OK")
</pallas_src>

<mosaic_0001>
module attributes {stable_mosaic.version = 11 : i64} {
  func.func @kernel(%arg0: i32, %arg1: memref<128x156xf32, #tpu.memory_space<vmem>>, %arg2: memref<156x720xf32, #tpu.memory_space<vmem>>, %arg3: memref<1x720xf32, #tpu.memory_space<vmem>>, %arg4: memref<720x417xf32, #tpu.memory_space<vmem>>, %arg5: memref<1x417xf32, #tpu.memory_space<vmem>>, %arg6: memref<512x16xf32, #tpu.memory_space<vmem>>, %arg7: memref<16x128xf32, #tpu.memory_space<vmem>>, %arg8: memref<128x32xf32, #tpu.memory_space<vmem>>, %arg9: memref<2x128xf32, #tpu.memory_space<vmem>>) attributes {dimension_semantics = [#tpu.dimension_semantics<parallel>], iteration_bounds = array<i64: 1>, scalar_prefetch = 0 : i64, scratch_operands = 0 : i64, tpu.core_type = #tpu.core_type<tc>, window_params = [{transform_indices = @transform_0, window_bounds = array<i64: 128, 156>}, {pipeline_mode = #tpu.pipeline_mode<synchronous>, transform_indices = @transform_1, window_bounds = array<i64: 156, 720>}, {pipeline_mode = #tpu.pipeline_mode<synchronous>, transform_indices = @transform_2, window_bounds = array<i64: 1, 720>}, {pipeline_mode = #tpu.pipeline_mode<synchronous>, transform_indices = @transform_3, window_bounds = array<i64: 720, 417>}, {pipeline_mode = #tpu.pipeline_mode<synchronous>, transform_indices = @transform_4, window_bounds = array<i64: 1, 417>}, {pipeline_mode = #tpu.pipeline_mode<synchronous>, transform_indices = @transform_5, window_bounds = array<i64: 512, 16>}, {pipeline_mode = #tpu.pipeline_mode<synchronous>, transform_indices = @transform_6, window_bounds = array<i64: 16, 128>}, {pipeline_mode = #tpu.pipeline_mode<synchronous>, transform_indices = @transform_7, window_bounds = array<i64: 128, 32>}, {transform_indices = @transform_8, window_bounds = array<i64: 2, 128>}]} {
    %c0 = arith.constant 0 : index
    %c0_0 = arith.constant 0 : index
    %0 = vector.load %arg1[%c0, %c0_0] : memref<128x156xf32, #tpu.memory_space<vmem>>, vector<128x156xf32>
    %c0_1 = arith.constant 0 : index
    %c0_2 = arith.constant 0 : index
    %1 = vector.load %arg2[%c0_1, %c0_2] : memref<156x720xf32, #tpu.memory_space<vmem>>, vector<156x720xf32>
    %cst = arith.constant dense<0.000000e+00> : vector<128x720xf32>
    %2 = tpu.matmul %0, %1, %cst {dimension_numbers = #tpu.dot_dimension_numbers<[1], [0], [0], [1], [0, 0, 1, 1], [], []>} : vector<128x156xf32>, vector<156x720xf32>, vector<128x720xf32> -> vector<128x720xf32>
    %c0_3 = arith.constant 0 : index
    %c0_4 = arith.constant 0 : index
    %3 = vector.load %arg3[%c0_3, %c0_4] : memref<1x720xf32, #tpu.memory_space<vmem>>, vector<1x720xf32>
    %4 = vector.broadcast %3 : vector<1x720xf32> to vector<128x720xf32>
    %5 = arith.addf %2, %4 : vector<128x720xf32>
    %6 = vector.extract_strided_slice %5 {offsets = [0, 640], sizes = [128, 32], strides = [1, 1]} : vector<128x720xf32> to vector<128x32xf32>
    %7 = vector.extract_strided_slice %5 {offsets = [0, 704], sizes = [128, 16], strides = [1, 1]} : vector<128x720xf32> to vector<128x16xf32>
    %cst_5 = arith.constant 0.000000e+00 : f32
    %8 = vector.broadcast %cst_5 : f32 to vector<128x720xf32>
    %9 = arith.maximumf %5, %8 : vector<128x720xf32>
    %c0_6 = arith.constant 0 : index
    %c0_7 = arith.constant 0 : index
    %10 = vector.load %arg4[%c0_6, %c0_7] : memref<720x417xf32, #tpu.memory_space<vmem>>, vector<720x417xf32>
    %cst_8 = arith.constant dense<0.000000e+00> : vector<128x417xf32>
    %11 = tpu.matmul %9, %10, %cst_8 {dimension_numbers = #tpu.dot_dimension_numbers<[1], [0], [0], [1], [0, 0, 1, 1], [], []>} : vector<128x720xf32>, vector<720x417xf32>, vector<128x417xf32> -> vector<128x417xf32>
    %c0_9 = arith.constant 0 : index
    %c0_10 = arith.constant 0 : index
    %12 = vector.load %arg5[%c0_9, %c0_10] : memref<1x417xf32, #tpu.memory_space<vmem>>, vector<1x417xf32>
    %13 = vector.broadcast %12 : vector<1x417xf32> to vector<128x417xf32>
    %14 = arith.addf %11, %13 : vector<128x417xf32>
    %15 = vector.extract_strided_slice %14 {offsets = [0, 0], sizes = [128, 128], strides = [1, 1]} : vector<128x417xf32> to vector<128x128xf32>
    %16 = vector.extract_strided_slice %14 {offsets = [0, 128], sizes = [128, 128], strides = [1, 1]} : vector<128x417xf32> to vector<128x128xf32>
    %17 = vector.extract_strided_slice %14 {offsets = [0, 256], sizes = [128, 128], strides = [1, 1]} : vector<128x417xf32> to vector<128x128xf32>
    %18 = math.absf %17 : vector<128x128xf32>
    %19 = vector.extract_strided_slice %14 {offsets = [0, 384], sizes = [128, 32], strides = [1, 1]} : vector<128x417xf32> to vector<128x32xf32>
    %20 = math.absf %19 : vector<128x32xf32>
    %21 = vector.extract_strided_slice %14 {offsets = [0, 416], sizes = [128, 1], strides = [1, 1]} : vector<128x417xf32> to vector<128x1xf32>
    %22 = tpu.concatenate %15, %15, %15, %15 in 1 : vector<128x128xf32>, vector<128x128xf32>, vector<128x128xf32>, vector<128x128xf32> -> vector<128x512xf32>
    %23 = vector.extract_strided_slice %16 {offsets = [0, 0], sizes = [128, 32], strides = [1, 1]} : vector<128x128xf32> to vector<128x32xf32>
    %24 = tpu.concatenate %23, %23, %23, %23 in 1 : vector<128x32xf32>, vector<128x32xf32>, vector<128x32xf32>, vector<128x32xf32> -> vector<128x128xf32>
    %25 = vector.extract_strided_slice %16 {offsets = [0, 32], sizes = [128, 32], strides = [1, 1]} : vector<128x128xf32> to vector<128x32xf32>
    %26 = tpu.concatenate %25, %25, %25, %25 in 1 : vector<128x32xf32>, vector<128x32xf32>, vector<128x32xf32>, vector<128x32xf32> -> vector<128x128xf32>
    %27 = vector.extract_strided_slice %16 {offsets = [0, 64], sizes = [128, 32], strides = [1, 1]} : vector<128x128xf32> to vector<128x32xf32>
    %28 = tpu.concatenate %27, %27, %27, %27 in 1 : vector<128x32xf32>, vector<128x32xf32>, vector<128x32xf32>, vector<128x32xf32> -> vector<128x128xf32>
    %29 = vector.extract_strided_slice %16 {offsets = [0, 96], sizes = [128, 32], strides = [1, 1]} : vector<128x128xf32> to vector<128x32xf32>
    %30 = tpu.concatenate %29, %29, %29, %29 in 1 : vector<128x32xf32>, vector<128x32xf32>, vector<128x32xf32>, vector<128x32xf32> -> vector<128x128xf32>
    %31 = tpu.concatenate %24, %26, %28, %30 in 1 : vector<128x128xf32>, vector<128x128xf32>, vector<128x128xf32>, vector<128x128xf32> -> vector<128x512xf32>
    %32 = arith.mulf %22, %31 : vector<128x512xf32>
    %c0_11 = arith.constant 0 : index
    %c0_12 = arith.constant 0 : index
    %33 = vector.load %arg6[%c0_11, %c0_12] : memref<512x16xf32, #tpu.memory_space<vmem>>, vector<512x16xf32>
    %cst_13 = arith.constant dense<0.000000e+00> : vector<128x16xf32>
    %34 = tpu.matmul %32, %33, %cst_13 {dimension_numbers = #tpu.dot_dimension_numbers<[1], [0], [0], [1], [0, 0, 1, 1], [], []>} : vector<128x512xf32>, vector<512x16xf32>, vector<128x16xf32> -> vector<128x16xf32>
    %cst_14 = arith.constant 0.176776692 : f32
    %35 = vector.broadcast %cst_14 : f32 to vector<128x16xf32>
    %36 = arith.mulf %34, %35 : vector<128x16xf32>
    %37 = arith.negf %36 : vector<128x16xf32>
    %38 = math.exp %37 : vector<128x16xf32>
    %cst_15 = arith.constant 1.000000e+00 : f32
    %39 = vector.broadcast %cst_15 : f32 to vector<128x16xf32>
    %40 = arith.addf %39, %38 : vector<128x16xf32>
    %41 = arith.divf %39, %40 : vector<128x16xf32>
    %cst_16 = arith.constant dense<0.000000e+00> : vector<128xf32>
    %42 = vector.multi_reduction <add>, %41, %cst_16 [1] : vector<128x16xf32> to vector<128xf32>
    %43 = vector.shape_cast %42 : vector<128xf32> to vector<128x1xf32>
    %44 = arith.mulf %41, %7 : vector<128x16xf32>
    %c0_17 = arith.constant 0 : index
    %c0_18 = arith.constant 0 : index
    %45 = vector.load %arg7[%c0_17, %c0_18] : memref<16x128xf32, #tpu.memory_space<vmem>>, vector<16x128xf32>
    %cst_19 = arith.constant dense<0.000000e+00> : vector<128x128xf32>
    %46 = tpu.matmul %44, %45, %cst_19 {dimension_numbers = #tpu.dot_dimension_numbers<[1], [0], [0], [1], [0, 0, 1, 1], [], []>} : vector<128x16xf32>, vector<16x128xf32>, vector<128x128xf32> -> vector<128x128xf32>
    %47 = arith.mulf %46, %18 : vector<128x128xf32>
    %c0_20 = arith.constant 0 : index
    %c0_21 = arith.constant 0 : index
    %48 = vector.load %arg8[%c0_20, %c0_21] : memref<128x32xf32, #tpu.memory_space<vmem>>, vector<128x32xf32>
    %cst_22 = arith.constant dense<0.000000e+00> : vector<128x32xf32>
    %49 = tpu.matmul %47, %48, %cst_22 {dimension_numbers = #tpu.dot_dimension_numbers<[1], [0], [0], [1], [0, 0, 1, 1], [], []>} : vector<128x128xf32>, vector<128x32xf32>, vector<128x32xf32> -> vector<128x32xf32>
    %50 = arith.addf %49, %6 : vector<128x32xf32>
    %cst_23 = arith.constant 0.000000e+00 : f32
    %51 = vector.broadcast %cst_23 : f32 to vector<128x32xf32>
    %52 = arith.cmpf ogt, %50, %51 : vector<128x32xf32>
    %cst_24 = arith.constant 0.000000e+00 : f32
    %53 = vector.broadcast %cst_24 : f32 to vector<128x32xf32>
    %54 = arith.minimumf %50, %53 : vector<128x32xf32>
    %55 = math.exp %54 : vector<128x32xf32>
    %cst_25 = arith.constant 1.000000e+00 : f32
    %56 = vector.broadcast %cst_25 : f32 to vector<128x32xf32>
    %57 = arith.subf %55, %56 : vector<128x32xf32>
    %58 = arith.select %52, %50, %57 : vector<128x32xi1>, vector<128x32xf32>
    %59 = arith.mulf %58, %20 : vector<128x32xf32>
    %cst_26 = arith.constant dense<0.000000e+00> : vector<128xf32>
    %60 = vector.multi_reduction <add>, %59, %cst_26 [1] : vector<128x32xf32> to vector<128xf32>
    %61 = vector.shape_cast %60 : vector<128xf32> to vector<128x1xf32>
    %62 = arith.addf %61, %21 : vector<128x1xf32>
    %63 = tpu.transpose %62, [1, 0] : vector<128x1xf32> -> vector<1x128xf32>
    %c0_27 = arith.constant 0 : index
    %c0_28 = arith.constant 0 : index
    %64 = vector.load %arg9[%c0_27, %c0_28] : memref<2x128xf32, #tpu.memory_space<vmem>>, vector<1x128xf32>
    tpu.vector_store %arg9[%c0_27, %c0_28], %63 {strides = array<i32>} : memref<2x128xf32, #tpu.memory_space<vmem>>, vector<1x128xf32>,
    %65 = tpu.transpose %43, [1, 0] : vector<128x1xf32> -> vector<1x128xf32>
    %c1 = arith.constant 1 : index
    %c0_29 = arith.constant 0 : index
    %66 = vector.load %arg9[%c1, %c0_29] : memref<2x128xf32, #tpu.memory_space<vmem>>, vector<1x128xf32>
    tpu.vector_store %arg9[%c1, %c0_29], %65 {strides = array<i32>} : memref<2x128xf32, #tpu.memory_space<vmem>>, vector<1x128xf32>,
    return
  }
  func.func @transform_0(%arg0: i32) -> (i32, i32) {
    %c0_i32 = arith.constant 0 : i32
    %c0_i32_0 = arith.constant 0 : i32
    return %arg0, %c0_i32 : i32, i32
  }
  func.func @transform_1(%arg0: i32) -> (i32, i32) {
    %c0_i32 = arith.constant 0 : i32
    %c0_i32_0 = arith.constant 0 : i32
    %c0_i32_1 = arith.constant 0 : i32
    return %c0_i32, %c0_i32_0 : i32, i32
  }
  func.func @transform_2(%arg0: i32) -> (i32, i32) {
    %c0_i32 = arith.constant 0 : i32
    %c0_i32_0 = arith.constant 0 : i32
    %c0_i32_1 = arith.constant 0 : i32
    return %c0_i32, %c0_i32_0 : i32, i32
  }
  func.func @transform_3(%arg0: i32) -> (i32, i32) {
    %c0_i32 = arith.constant 0 : i32
    %c0_i32_0 = arith.constant 0 : i32
    %c0_i32_1 = arith.constant 0 : i32
    return %c0_i32, %c0_i32_0 : i32, i32
  }
  func.func @transform_4(%arg0: i32) -> (i32, i32) {
    %c0_i32 = arith.constant 0 : i32
    %c0_i32_0 = arith.constant 0 : i32
    %c0_i32_1 = arith.constant 0 : i32
    return %c0_i32, %c0_i32_0 : i32, i32
  }
  func.func @transform_5(%arg0: i32) -> (i32, i32) {
    %c0_i32 = arith.constant 0 : i32
    %c0_i32_0 = arith.constant 0 : i32
    %c0_i32_1 = arith.constant 0 : i32
    return %c0_i32, %c0_i32_0 : i32, i32
  }
  func.func @transform_6(%arg0: i32) -> (i32, i32) {
    %c0_i32 = arith.constant 0 : i32
    %c0_i32_0 = arith.constant 0 : i32
    %c0_i32_1 = arith.constant 0 : i32
    return %c0_i32, %c0_i32_0 : i32, i32
  }
  func.func @transform_7(%arg0: i32) -> (i32, i32) {
    %c0_i32 = arith.constant 0 : i32
    %c0_i32_0 = arith.constant 0 : i32
    %c0_i32_1 = arith.constant 0 : i32
    return %c0_i32, %c0_i32_0 : i32, i32
  }
  func.func @transform_8(%arg0: i32) -> (i32, i32) {
    %c0_i32 = arith.constant 0 : i32
    %c0_i32_0 = arith.constant 0 : i32
    return %c0_i32, %arg0 : i32, i32
  }
}

</mosaic_0001>

<llo_original>
// kernel: squeeze.2
$region0: #{squeeze.2}
  %s0 = inlined_call_operand.vmem [shape: f32[16], index: 0, kind: input, shape index: {}]
  %s1 = inlined_call_operand.hbm [shape: f32[2,8,1], index: 1, kind: output, shape index: {}]
  $region1: #{squeeze.2} parent=0
    #allocation0 [shape = 'u8[1024]{0}', space=vmem, size = 0x400, scoped, tag = 'operand span for operand 1']
    #allocation1 [shape = 's32[1]{0}', space=sflag, size = 0x4, scoped, tag = 'scoped memory for squeeze.2']
    #allocation2 [shape = 'u8[4096]{0}', space=vmem, size = 0x1000, scoped, tag = 'scoped mem for output reshape']
    #allocation3 [shape = 'u8[4096]{0}', space=vmem, size = 0x1000, scoped, tag = 'scoped mem for input reshape']
    %2 = vsyncpa [#allocation1], 0
    %s4 = sshll.u32 1, 1
    %s5 = ssub.s32 %s4, 1
    %v6 = vld [vmem:[%s0] sm:%s5]
    %7 = vst [vmem:[#allocation3] sm:%s5] %v6
    %v8 = vld [vmem:[#allocation3] sm:$0x1]
    %vm9 = vcmask 64512
    %10 = vst.msk [vmem:[#allocation2] sm:$0x1] %vm9, %v8
    %v11 = vld [vmem:[#allocation3] sm:$0x1]
    %12 = vrot.lane.b32.xlu0 %v11, 120
    %v13 = vpop.permute.xlu0 %12
    %vm14 = vcmask 64512
    %s15 = scalar_lea.vmem [#allocation2], 1
    %16 = vst.msk [vmem:[%s15] sm:$0x1] %vm14, %v13
    %s18 = sshll.u32 1, 2
    %s19 = ssub.s32 %s18, 1
    %v21 = vld [vmem:[#allocation2] sm:%s19]
    %s22 = sshll.u32 1, 2
    %s23 = ssub.s32 %s22, 1
    %24 = vst [vmem:[#allocation0] sm:%s23] %v21
    %s26 = ssub.s32 32, 32
    %27 = vsyncadd [#allocation1], %s26
    %s29 = sshll.u32 [#allocation0], 4
    %s30 = int_to_ptr.vmem [resolvable:$true] %s29
    %32 = dma.vmem_to_hbm [thread:$0]  %s30, 32, %s1, [#allocation1]
    %33 = dma.done [#allocation1], 32
    %34 = vsyncpa [#allocation1], 1

// kernel: gmixer_forward.1
$region0: #{gmixer_forward.1}
  #allocation0 [shape = 'u32[]', space=smem, size = 0x4, offset = 0x4, fixed_abs, tag = 'smem constant byte address 0x4 - core index']
  #allocation1 [shape = 'u32[144,128]{1,0:T(1,128)}', space=vmem, size = 0x12000, scoped, tag = 'internal scratch']
  %s0 = inlined_call_operand.vmem [shape: f32[128,156], index: 0, kind: input, shape index: {}]
  %s1 = inlined_call_operand.vmem [shape: f32[156,720], index: 1, kind: input, shape index: {}]
  %s2 = inlined_call_operand.vmem [shape: f32[1,720], index: 2, kind: input, shape index: {}]
  %s3 = inlined_call_operand.vmem [shape: f32[720,417], index: 3, kind: input, shape index: {}]
  %s4 = inlined_call_operand.vmem [shape: f32[1,417], index: 4, kind: input, shape index: {}]
  %s5 = inlined_call_operand.vmem [shape: f32[512,16], index: 5, kind: input, shape index: {}]
  %s6 = inlined_call_operand.vmem [shape: f32[16,128], index: 6, kind: input, shape index: {}]
  %s7 = inlined_call_operand.vmem [shape: f32[128,32], index: 7, kind: input, shape index: {}]
  %s8 = inlined_call_operand.vmem [shape: f32[2,128], index: 8, kind: output, shape index: {}]
  %s9 = sld [smem:[#allocation0]]
  $region42: #{gmixer_forward.1} parent=0
    _
  %s11 = ssub.s32 1, %s9
  %s12 = scalar_select 0, %s11, %s9
  // Predicated region
  $region2: #{gmixer_forward.1} parent=0 // pred_check
    _
  $region3: #{gmixer_forward.1} parent=0 // pred_check_branch
    %14 = sbr.rel (0) target = $region5
  $region4: #{gmixer_forward.1} parent=0 // pred_region
    _
  $region5: #{gmixer_forward.1} parent=0 // pred_fallthru
    _
  // Predicated region
  $region6: #{gmixer_forward.1} parent=0 // pred_check
    _
  $region7: #{gmixer_forward.1} parent=0 // pred_check_branch
    %16 = sbr.rel (0) target = $region9
  $region8: #{gmixer_forward.1} parent=0 // pred_region
    _
  $region9: #{gmixer_forward.1} parent=0 // pred_fallthru
    _
  // Predicated region
  $region10: #{gmixer_forward.1} parent=0 // pred_check
    _
  $region11: #{gmixer_forward.1} parent=0 // pred_check_branch
    %18 = sbr.rel (0) target = $region13
  $region12: #{gmixer_forward.1} parent=0 // pred_region
    _
  $region13: #{gmixer_forward.1} parent=0 // pred_fallthru
    _
  // Predicated region
  $region14: #{gmixer_forward.1} parent=0 // pred_check
    _
  $region15: #{gmixer_forward.1} parent=0 // pred_check_branch
    %20 = sbr.rel (0) target = $region17
  $region16: #{gmixer_forward.1} parent=0 // pred_region
    _
  $region17: #{gmixer_forward.1} parent=0 // pred_fallthru
    _
  // Predicated region
  $region18: #{gmixer_forward.1} parent=0 // pred_check
    _
  $region19: #{gmixer_forward.1} parent=0 // pred_check_branch
    %22 = sbr.rel (0) target = $region21
  $region20: #{gmixer_forward.1} parent=0 // pred_region
    _
  $region21: #{gmixer_forward.1} parent=0 // pred_fallthru
    _
  // Predicated region
  $region22: #{gmixer_forward.1} parent=0 // pred_check
    _
  $region23: #{gmixer_forward.1} parent=0 // pred_check_branch
    %24 = sbr.rel (0) target = $region25
  $region24: #{gmixer_forward.1} parent=0 // pred_region
    _
  $region25: #{gmixer_forward.1} parent=0 // pred_fallthru
    _
  // Predicated region
  $region26: #{gmixer_forward.1} parent=0 // pred_check
    _
  $region27: #{gmixer_forward.1} parent=0 // pred_check_branch
    %26 = sbr.rel (0) target = $region29
  $region28: #{gmixer_forward.1} parent=0 // pred_region
    _
  $region29: #{gmixer_forward.1} parent=0 // pred_fallthru
    _
  // Predicated region
  $region30: #{gmixer_forward.1} parent=0 // pred_check
    _
  $region31: #{gmixer_forward.1} parent=0 // pred_check_branch
    %28 = sbr.rel (0) target = $region33
  $region32: #{gmixer_forward.1} parent=0 // pred_region
    _
  $region33: #{gmixer_forward.1} parent=0 // pred_fallthru
    _
  %v29 = vld [vmem:[%s0] sm:$0xff]
  %v30 = vld [vmem:[%s0 + $0x8] sm:$0xff]
  %v31 = vld [vmem:[%s0 + $0x10] sm:$0xff]
  %v32 = vld [vmem:[%s0 + $0x18] sm:$0xff]
  %v33 = vld [vmem:[%s0 + $0x20] sm:$0xff]
  %v34 = vld [vmem:[%s0 + $0x28] sm:$0xff]
  %v35 = vld [vmem:[%s0 + $0x30] sm:$0xff]
  %v36 = vld [vmem:[%s0 + $0x38] sm:$0xff]
  %v37 = vld [vmem:[%s0 + $0x40] sm:$0xff]
  %v38 = vld [vmem:[%s0 + $0x48] sm:$0xff]
  %v39 = vld [vmem:[%s0 + $0x50] sm:$0xff]
  %v40 = vld [vmem:[%s0 + $0x58] sm:$0xff]
  %v41 = vld [vmem:[%s0 + $0x60] sm:$0xff]
  %v42 = vld [vmem:[%s0 + $0x68] sm:$0xff]
  %v43 = vld [vmem:[%s0 + $0x70] sm:$0xff]
  %v44 = vld [vmem:[%s0 + $0x78] sm:$0xff]
  %v45 = vld [vmem:[%s0 + $0x80] sm:$0xff]
  %v46 = vld [vmem:[%s0 + $0x88] sm:$0xff]
  %v47 = vld [vmem:[%s0 + $0x90] sm:$0xff]
  %v48 = vld [vmem:[%s0 + $0x98] sm:$0xff]
  %v49 = vld [vmem:[%s0 + $0xa0] sm:$0xff]
  %v50 = vld [vmem:[%s0 + $0xa8] sm:$0xff]
  %v51 = vld [vmem:[%s0 + $0xb0] sm:$0xff]
  %v52 = vld [vmem:[%s0 + $0xb8] sm:$0xff]
  %v53 = vld [vmem:[%s0 + $0xc0] sm:$0xff]
  %v54 = vld [vmem:[%s0 + $0xc8] sm:$0xff]
  %v55 = vld [vmem:[%s0 + $0xd0] sm:$0xff]
  %v56 = vld [vmem:[%s0 + $0xd8] sm:$0xff]
  %v57 = vld [vmem:[%s0 + $0xe0] sm:$0xff]
  %v58 = vld [vmem:[%s0 + $0xe8] sm:$0xff]
  %v59 = vld [vmem:[%s0 + $0xf0] sm:$0xff]
  %v60 = vld [vmem:[%s0 + $0xf8] sm:$0xff]
  %v61 = vld [vmem:[%s1] sm:$0xff]
  %v62 = vld [vmem:[%s1 + $0x8] sm:$0xff]
  %v63 = vld [vmem:[%s1 + $0x10] sm:$0xff]
  %v64 = vld [vmem:[%s1 + $0x18] sm:$0xff]
  %v65 = vld [vmem:[%s1 + $0x20] sm:$0xff]
  %v66 = vld [vmem:[%s1 + $0x28] sm:$0xff]
  %v67 = vld [vmem:[%s1 + $0x30] sm:$0xff]
  %v68 = vld [vmem:[%s1 + $0x38] sm:$0xff]
  %v69 = vld [vmem:[%s1 + $0x40] sm:$0xff]
  %v70 = vld [vmem:[%s1 + $0x48] sm:$0xff]
  %v71 = vld [vmem:[%s1 + $0x50] sm:$0xff]
  %v72 = vld [vmem:[%s1 + $0x58] sm:$0xff]
  %v73 = vld [vmem:[%s1 + $0x60] sm:$0xff]
  %v74 = vld [vmem:[%s1 + $0x68] sm:$0xff]
  %v75 = vld [vmem:[%s1 + $0x70] sm:$0xff]
  %v76 = vld [vmem:[%s1 + $0x78] sm:$0xff]
  %v77 = vld [vmem:[%s1 + $0x80] sm:$0xff]
  %v78 = vld [vmem:[%s1 + $0x88] sm:$0xff]
  %v79 = vld [vmem:[%s1 + $0x90] sm:$0xff]
  %v80 = vld [vmem:[%s1 + $0x98] sm:$0xff]
  %v81 = vld [vmem:[%s1 + $0xa0] sm:$0xff]
  %v82 = vld [vmem:[%s1 + $0xa8] sm:$0xff]
  %v83 = vld [vmem:[%s1 + $0xb0] sm:$0xff]
  %v84 = vld [vmem:[%s1 + $0xb8] sm:$0xff]
  %v85 = vld [vmem:[%s1 + $0xc0] sm:$0xff]
  %v86 = vld [vmem:[%s1 + $0xc8] sm:$0xff]
  %v87 = vld [vmem:[%s1 + $0xd0] sm:$0xff]
  %v88 = vld [vmem:[%s1 + $0xd8] sm:$0xff]
  %v89 = vld [vmem:[%s1 + $0xe0] sm:$0xff]
  %v90 = vld [vmem:[%s1 + $0xe8] sm:$0xff]
  %v91 = vld [vmem:[%s1 + $0xf0] sm:$0xff]
  %v92 = vld [vmem:[%s1 + $0xf8] sm:$0xff]
  %v93 = vld [vmem:[%s1 + $0x100] sm:$0xff]
  %v94 = vld [vmem:[%s1 + $0x108] sm:$0xff]
  %v95 = vld [vmem:[%s1 + $0x110] sm:$0xff]
  %v96 = vld [vmem:[%s1 + $0x118] sm:$0xff]
  %v97 = vld [vmem:[%s1 + $0x120] sm:$0xff]
  %v98 = vld [vmem:[%s1 + $0x128] sm:$0xff]
  %v99 = vld [vmem:[%s1 + $0x130] sm:$0xff]
  %v100 = vld [vmem:[%s1 + $0x138] sm:$0xff]
  %v101 = vld [vmem:[%s1 + $0x140] sm:$0xff]
  %v102 = vld [vmem:[%s1 + $0x148] sm:$0xff]
  %v103 = vld [vmem:[%s1 + $0x150] sm:$0xff]
  %v104 = vld [vmem:[%s1 + $0x158] sm:$0xff]
  %v105 = vld [vmem:[%s1 + $0x160] sm:$0xff]
  %v106 = vld [vmem:[%s1 + $0x168] sm:$0xff]
  %v107 = vld [vmem:[%s1 + $0x170] sm:$0xff]
  %v108 = vld [vmem:[%s1 + $0x178] sm:$0xff]
  %v109 = vld [vmem:[%s1 + $0x180] sm:$0xff]
  %v110 = vld [vmem:[%s1 + $0x188] sm:$0xff]
  %v111 = vld [vmem:[%s1 + $0x190] sm:$0xff]
  %v112 = vld [vmem:[%s1 + $0x198] sm:$0xff]
  %v113 = vld [vmem:[%s1 + $0x1a0] sm:$0xff]
  %v114 = vld [vmem:[%s1 + $0x1a8] sm:$0xff]
  %v115 = vld [vmem:[%s1 + $0x1b0] sm:$0xff]
  %v116 = vld [vmem:[%s1 + $0x1b8] sm:$0xff]
  %v117 = vld [vmem:[%s1 + $0x1c0] sm:$0xff]
  %v118 = vld [vmem:[%s1 + $0x1c8] sm:$0xff]
  %v119 = vld [vmem:[%s1 + $0x1d0] sm:$0xff]
  %v120 = vld [vmem:[%s1 + $0x1d8] sm:$0xff]
  %v121 = vld [vmem:[%s1 + $0x1e0] sm:$0xff]
  %v122 = vld [vmem:[%s1 + $0x1e8] sm:$0xff]
  %v123 = vld [vmem:[%s1 + $0x1f0] sm:$0xff]
  %v124 = vld [vmem:[%s1 + $0x1f8] sm:$0xff]
  %v125 = vld [vmem:[%s1 + $0x200] sm:$0xff]
  %v126 = vld [vmem:[%s1 + $0x208] sm:$0xff]
  %v127 = vld [vmem:[%s1 + $0x210] sm:$0xff]
  %v128 = vld [vmem:[%s1 + $0x218] sm:$0xff]
  %v129 = vld [vmem:[%s1 + $0x220] sm:$0xff]
  %v130 = vld [vmem:[%s1 + $0x228] sm:$0xff]
  %v131 = vld [vmem:[%s1 + $0x230] sm:$0xff]
  %v132 = vld [vmem:[%s1 + $0x238] sm:$0xff]
  %v133 = vld [vmem:[%s1 + $0x240] sm:$0xff]
  %v134 = vld [vmem:[%s1 + $0x248] sm:$0xff]
  %v135 = vld [vmem:[%s1 + $0x250] sm:$0xff]
  %v136 = vld [vmem:[%s1 + $0x258] sm:$0xff]
  %v137 = vld [vmem:[%s1 + $0x260] sm:$0xff]
  %v138 = vld [vmem:[%s1 + $0x268] sm:$0xff]
  %v139 = vld [vmem:[%s1 + $0x270] sm:$0xff]
  %v140 = vld [vmem:[%s1 + $0x278] sm:$0xff]
  %v141 = vld [vmem:[%s1 + $0x280] sm:$0xff]
  %v142 = vld [vmem:[%s1 + $0x288] sm:$0xff]
  %v143 = vld [vmem:[%s1 + $0x290] sm:$0xff]
  %v144 = vld [vmem:[%s1 + $0x298] sm:$0xff]
  %v145 = vld [vmem:[%s1 + $0x2a0] sm:$0xff]
  %v146 = vld [vmem:[%s1 + $0x2a8] sm:$0xff]
  %v147 = vld [vmem:[%s1 + $0x2b0] sm:$0xff]
  %v148 = vld [vmem:[%s1 + $0x2b8] sm:$0xff]
  %v149 = vld [vmem:[%s1 + $0x2c0] sm:$0xff]
  %v150 = vld [vmem:[%s1 + $0x2c8] sm:$0xff]
  %v151 = vld [vmem:[%s1 + $0x2d0] sm:$0xff]
  %v152 = vld [vmem:[%s1 + $0x2d8] sm:$0xff]
  %v153 = vld [vmem:[%s1 + $0x2e0] sm:$0xff]
  %v154 = vld [vmem:[%s1 + $0x2e8] sm:$0xff]
  %v155 = vld [vmem:[%s1 + $0x2f0] sm:$0xff]
  %v156 = vld [vmem:[%s1 + $0x2f8] sm:$0xff]
  %v157 = vld [vmem:[%s1 + $0x300] sm:$0xff]
  %v158 = vld [vmem:[%s1 + $0x308] sm:$0xff]
  %v159 = vld [vmem:[%s1 + $0x310] sm:$0xff]
  %v160 = vld [vmem:[%s1 + $0x318] sm:$0xff]
  %v161 = vld [vmem:[%s1 + $0x320] sm:$0xff]
  %v162 = vld [vmem:[%s1 + $0x328] sm:$0xff]
  %v163 = vld [vmem:[%s1 + $0x330] sm:$0xff]
  %v164 = vld [vmem:[%s1 + $0x338] sm:$0xff]
  %v165 = vld [vmem:[%s1 + $0x340] sm:$0xff]
  %v166 = vld [vmem:[%s1 + $0x348] sm:$0xff]
  %v167 = vld [vmem:[%s1 + $0x350] sm:$0xff]
  %v168 = vld [vmem:[%s1 + $0x358] sm:$0xff]
  %v169 = vld [vmem:[%s1 + $0x360] sm:$0xff]
  %v170 = vld [vmem:[%s1 + $0x368] sm:$0xff]
  %v171 = vld [vmem:[%s1 + $0x370] sm:$0xff]
  %v172 = vld [vmem:[%s1 + $0x378] sm:$0xff]
  %v173 = vld [vmem:[%s1 + $0x380] sm:$0xff]
  %v174 = vld [vmem:[%s1 + $0x388] sm:$0xff]
  %v175 = vld [vmem:[%s1 + $0x390] sm:$0xf]
  %v176 = vld [vmem:[%s1 + $0x398] sm:$0xf]
  %v177 = vld [vmem:[%s1 + $0x3a0] sm:$0xf]
  %v178 = vld [vmem:[%s1 + $0x3a8] sm:$0xf]
  %v179 = vld [vmem:[%s1 + $0x3b0] sm:$0xf]
  %v180 = vld [vmem:[%s1 + $0x3b8] sm:$0xf]
  %v181 = vld [vmem:[%s2] sm:$0x3f]
  %v183 = vlaneseq
  %v184 = vshrl.u32 %v183, 7
  %v185 = vsub.s32 0, %v184
  %v186 = vrot.slane %v181, %v185
  %v187 = vlaneseq
  %v188 = vshrl.u32 %v187, 7
  %v189 = vsub.s32 1, %v188
  %v190 = vrot.slane %v181, %v189
  %v191 = vlaneseq
  %v192 = vshrl.u32 %v191, 7
  %v193 = vsub.s32 2, %v192
  %v194 = vrot.slane %v181, %v193
  %v195 = vlaneseq
  %v196 = vshrl.u32 %v195, 7
  %v197 = vsub.s32 3, %v196
  %v198 = vrot.slane %v181, %v197
  %v199 = vlaneseq
  %v200 = vshrl.u32 %v199, 7
  %v201 = vsub.s32 4, %v200
  %v202 = vrot.slane %v181, %v201
  %v203 = vlaneseq
  %v204 = vshrl.u32 %v203, 7
  %v205 = vsub.s32 5, %v204
  %v206 = vrot.slane %v181, %v205
  %vm213 = vcmask 228352
  %v215 = vsel %vm213, %v30, 0
  %v218 = vsel %vm213, %v32, 0
  %v221 = vsel %vm213, %v34, 0
  %v224 = vsel %vm213, %v36, 0
  %v227 = vsel %vm213, %v38, 0
  %v230 = vsel %vm213, %v40, 0
  %v233 = vsel %vm213, %v42, 0
  %v236 = vsel %vm213, %v44, 0
  %v239 = vsel %vm213, %v46, 0
  %v242 = vsel %vm213, %v48, 0
  %v245 = vsel %vm213, %v50, 0
  %v248 = vsel %vm213, %v52, 0
  %v251 = vsel %vm213, %v54, 0
  %v254 = vsel %vm213, %v56, 0
  %v257 = vsel %vm213, %v58, 0
  %v260 = vsel %vm213, %v60, 0
  %vm262 = vcmask 1043456
  %v264 = vsel %vm262, %v175, 0
  %v267 = vsel %vm262, %v176, 0
  %v270 = vsel %vm262, %v177, 0
  %v273 = vsel %vm262, %v178, 0
  %v276 = vsel %vm262, %v179, 0
  %v279 = vsel %vm262, %v180, 0
  %281 = vmatprep.subr.mxu0 %v152
  %282 = vmatpush1.msra.mxu0 %v151
  %283 = vmatprep.subr.mxu0 %v146
  %284 = vmatpush1.msra.mxu0 %v145
  %285 = vmatprep.subr.mxu0 %v140
  %286 = vmatpush1.msra.mxu0 %v139
  %287 = vmatprep.subr.mxu0 %v134
  %288 = vmatpush1.msra.mxu0 %v133
  %289 = vmatprep.subr.mxu0 %v128
  %290 = vmatpush1.msra.mxu0 %v127
  %291 = vmatprep.subr.mxu0 %v122
  %292 = vmatpush1.msra.mxu0 %v121
  %293 = vmatprep.subr.mxu0 %v116
  %294 = vmatpush1.msra.mxu0 %v115
  %295 = vmatprep.subr.mxu0 %v110
  %296 = vmatpush1.msra.mxu0 %v109
  %297 = vmatprep.subr.mxu0 %v104
  %298 = vmatpush1.msra.mxu0 %v103
  %299 = vmatprep.subr.mxu0 %v98
  %300 = vmatpush1.msra.mxu0 %v97
  %301 = vmatprep.subr.mxu0 %v92
  %302 = vmatpush1.msra.mxu0 %v91
  %303 = vmatprep.subr.mxu0 %v86
  %304 = vmatpush1.msra.mxu0 %v85
  %305 = vmatprep.subr.mxu0 %v80
  %306 = vmatpush1.msra.mxu0 %v79
  %307 = vmatprep.subr.mxu0 %v74
  %308 = vmatpush1.msra.mxu0 %v73
  %309 = vmatprep.subr.mxu0 %v68
  %310 = vmatpush1.msra.mxu0 %v67
  %311 = vmatprep.subr.mxu0 %v62
  %312 = vmatpush1.msra.mxu0 %v61
  %313 = vmatprep.subr.mxu0 0.0
  %314 = vmatpush2.msra.mxu0 0.0
  %315 = vmatprep.subr.mxu0 0.0
  %316 = vmatpush2.msra.mxu0 0.0
  %317 = vmatprep.subr.mxu0 0.0
  %318 = vmatpush2.msra.mxu0 0.0
  %319 = vmatprep.subr.mxu0 0.0
  %320 = vmatpush2.msra.mxu0 0.0
  %321 = vmatprep.subr.mxu0 0.0
  %322 = vmatpush2.msra.mxu0 0.0
  %323 = vmatprep.subr.mxu0 0.0
  %324 = vmatpush2.msra.mxu0 0.0
  %325 = vmatprep.subr.mxu0 0.0
  %326 = vmatpush2.msra.mxu0 0.0
  %327 = vmatprep.subr.mxu0 0.0
  %328 = vmatpush2.msra.mxu0 0.0
  %329 = vmatprep.subr.mxu0 0.0
  %330 = vmatpush2.msra.mxu0 0.0
  %331 = vmatprep.subr.mxu0 0.0
  %332 = vmatpush2.msra.mxu0 0.0
  %333 = vmatprep.subr.mxu0 0.0
  %334 = vmatpush2.msra.mxu0 0.0
  %335 = vmatprep.subr.mxu0 0.0
  %336 = vmatpush2.msra.mxu0 0.0
  %337 = vmatprep.subr.mxu0 %v267
  %338 = vmatpush2.msra.mxu0 %v264
  %339 = vmatprep.subr.mxu0 %v170
  %340 = vmatpush2.msra.mxu0 %v169
  %341 = vmatprep.subr.mxu0 %v164
  %342 = vmatpush2.msra.mxu0 %v163
  %343 = vmatprep.subr.mxu0 %v158
  %344 = vmatpush2.msra.mxu0 %v157
  %345 = vmatprep.mubr.f32.mxu0 %v215
  %346 = vmatmul.mubr.f32.gmra.mxu0 %v29
  %v347 = vpop.f32.mrf.mxu0
  %v348 = vadd.f32 %v186, %v347
  %v349 = vpop.f32.mrf.mxu0
  %v350 = vadd.f32 %v190, %v349
  %351 = vmatprep.mubr.f32.mxu0 %v218
  %352 = vmatmul.mubr.f32.gmra.mxu0 %v31
  %v353 = vpop.f32.mrf.mxu0
  %v354 = vadd.f32 %v186, %v353
  %v355 = vpop.f32.mrf.mxu0
  %v356 = vadd.f32 %v190, %v355
  %357 = vmatprep.mubr.f32.mxu0 %v221
  %358 = vmatmul.mubr.f32.gmra.mxu0 %v33
  %v359 = vpop.f32.mrf.mxu0
  %v360 = vadd.f32 %v186, %v359
  %v361 = vpop.f32.mrf.mxu0
  %v362 = vadd.f32 %v190, %v361
  %363 = vmatprep.mubr.f32.mxu0 %v224
  %364 = vmatmul.mubr.f32.gmra.mxu0 %v35
  %v365 = vpop.f32.mrf.mxu0
  %v366 = vadd.f32 %v186, %v365
  %v367 = vpop.f32.mrf.mxu0
  %v368 = vadd.f32 %v190, %v367
  %369 = vmatprep.mubr.f32.mxu0 %v227
  %370 = vmatmul.mubr.f32.gmra.mxu0 %v37
  %v371 = vpop.f32.mrf.mxu0
  %v372 = vadd.f32 %v186, %v371
  %v373 = vpop.f32.mrf.mxu0
  %v374 = vadd.f32 %v190, %v373
  %375 = vmatprep.mubr.f32.mxu0 %v230
  %376 = vmatmul.mubr.f32.gmra.mxu0 %v39
  %v377 = vpop.f32.mrf.mxu0
  %v378 = vadd.f32 %v186, %v377
  %v379 = vpop.f32.mrf.mxu0
  %v380 = vadd.f32 %v190, %v379
  %381 = vmatprep.mubr.f32.mxu0 %v233
  %382 = vmatmul.mubr.f32.gmra.mxu0 %v41
  %v383 = vpop.f32.mrf.mxu0
  %v384 = vadd.f32 %v186, %v383
  %v385 = vpop.f32.mrf.mxu0
  %v386 = vadd.f32 %v190, %v385
  %387 = vmatprep.mubr.f32.mxu0 %v236
  %388 = vmatmul.mubr.f32.gmra.mxu0 %v43
  %v389 = vpop.f32.mrf.mxu0
  %v390 = vadd.f32 %v186, %v389
  %v391 = vpop.f32.mrf.mxu0
  %v392 = vadd.f32 %v190, %v391
  %393 = vmatprep.mubr.f32.mxu0 %v239
  %394 = vmatmul.mubr.f32.gmra.mxu0 %v45
  %v395 = vpop.f32.mrf.mxu0
  %v396 = vadd.f32 %v186, %v395
  %v397 = vpop.f32.mrf.mxu0
  %v398 = vadd.f32 %v190, %v397
  %399 = vmatprep.mubr.f32.mxu0 %v242
  %400 = vmatmul.mubr.f32.gmra.mxu0 %v47
  %v401 = vpop.f32.mrf.mxu0
  %v402 = vadd.f32 %v186, %v401
  %v403 = vpop.f32.mrf.mxu0
  %v404 = vadd.f32 %v190, %v403
  %405 = vmatprep.mubr.f32.mxu0 %v245
  %406 = vmatmul.mubr.f32.gmra.mxu0 %v49
  %v407 = vpop.f32.mrf.mxu0
  %v408 = vadd.f32 %v186, %v407
  %v409 = vpop.f32.mrf.mxu0
  %v410 = vadd.f32 %v190, %v409
  %411 = vmatprep.mubr.f32.mxu0 %v248
  %412 = vmatmul.mubr.f32.gmra.mxu0 %v51
  %v413 = vpop.f32.mrf.mxu0
  %v414 = vadd.f32 %v186, %v413
  %v415 = vpop.f32.mrf.mxu0
  %v416 = vadd.f32 %v190, %v415
  %417 = vmatprep.mubr.f32.mxu0 %v251
  %418 = vmatmul.mubr.f32.gmra.mxu0 %v53
  %v419 = vpop.f32.mrf.mxu0
  %v420 = vadd.f32 %v186, %v419
  %v421 = vpop.f32.mrf.mxu0
  %v422 = vadd.f32 %v190, %v421
  %423 = vmatprep.mubr.f32.mxu0 %v254
  %424 = vmatmul.mubr.f32.gmra.mxu0 %v55
  %v425 = vpop.f32.mrf.mxu0
  %v426 = vadd.f32 %v186, %v425
  %v427 = vpop.f32.mrf.mxu0
  %v428 = vadd.f32 %v190, %v427
  %429 = vmatprep.mubr.f32.mxu0 %v257
  %430 = vmatmul.mubr.f32.gmra.mxu0 %v57
  %v431 = vpop.f32.mrf.mxu0
  %v432 = vadd.f32 %v186, %v431
  %v433 = vpop.f32.mrf.mxu0
  %v434 = vadd.f32 %v190, %v433
  %435 = vmatprep.mubr.f32.mxu0 %v260
  %436 = vmatmul.mubr.f32.gmra.mxu0 %v59
  %v437 = vpop.f32.mrf.mxu0
  %v438 = vadd.f32 %v186, %v437
  %v439 = vpop.f32.mrf.mxu0
  %v440 = vadd.f32 %v190, %v439
  %441 = vdwg.mxu0
  %442 = vmatprep.subr.mxu0 %v154
  %443 = vmatpush1.msra.mxu0 %v153
  %444 = vmatprep.subr.mxu0 %v148
  %445 = vmatpush1.msra.mxu0 %v147
  %446 = vmatprep.subr.mxu0 %v142
  %447 = vmatpush1.msra.mxu0 %v141
  %448 = vmatprep.subr.mxu0 %v136
  %449 = vmatpush1.msra.mxu0 %v135
  %450 = vmatprep.subr.mxu0 %v130
  %451 = vmatpush1.msra.mxu0 %v129
  %452 = vmatprep.subr.mxu0 %v124
  %453 = vmatpush1.msra.mxu0 %v123
  %454 = vmatprep.subr.mxu0 %v118
  %455 = vmatpush1.msra.mxu0 %v117
  %456 = vmatprep.subr.mxu0 %v112
  %457 = vmatpush1.msra.mxu0 %v111
  %458 = vmatprep.subr.mxu0 %v106
  %459 = vmatpush1.msra.mxu0 %v105
  %460 = vmatprep.subr.mxu0 %v100
  %461 = vmatpush1.msra.mxu0 %v99
  %462 = vmatprep.subr.mxu0 %v94
  %463 = vmatpush1.msra.mxu0 %v93
  %464 = vmatprep.subr.mxu0 %v88
  %465 = vmatpush1.msra.mxu0 %v87
  %466 = vmatprep.subr.mxu0 %v82
  %467 = vmatpush1.msra.mxu0 %v81
  %468 = vmatprep.subr.mxu0 %v76
  %469 = vmatpush1.msra.mxu0 %v75
  %470 = vmatprep.subr.mxu0 %v70
  %471 = vmatpush1.msra.mxu0 %v69
  %472 = vmatprep.subr.mxu0 %v64
  %473 = vmatpush1.msra.mxu0 %v63
  %474 = vmatprep.subr.mxu0 0.0
  %475 = vmatpush2.msra.mxu0 0.0
  %476 = vmatprep.subr.mxu0 0.0
  %477 = vmatpush2.msra.mxu0 0.0
  %478 = vmatprep.subr.mxu0 0.0
  %479 = vmatpush2.msra.mxu0 0.0
  %480 = vmatprep.subr.mxu0 0.0
  %481 = vmatpush2.msra.mxu0 0.0
  %482 = vmatprep.subr.mxu0 0.0
  %483 = vmatpush2.msra.mxu0 0.0
  %484 = vmatprep.subr.mxu0 0.0
  %485 = vmatpush2.msra.mxu0 0.0
  %486 = vmatprep.subr.mxu0 0.0
  %487 = vmatpush2.msra.mxu0 0.0
  %488 = vmatprep.subr.mxu0 0.0
  %489 = vmatpush2.msra.mxu0 0.0
  %490 = vmatprep.subr.mxu0 0.0
  %491 = vmatpush2.msra.mxu0 0.0
  %492 = vmatprep.subr.mxu0 0.0
  %493 = vmatpush2.msra.mxu0 0.0
  %494 = vmatprep.subr.mxu0 0.0
  %495 = vmatpush2.msra.mxu0 0.0
  %496 = vmatprep.subr.mxu0 0.0
  %497 = vmatpush2.msra.mxu0 0.0
  %498 = vmatprep.subr.mxu0 %v273
  %499 = vmatpush2.msra.mxu0 %v270
  %500 = vmatprep.subr.mxu0 %v172
  %501 = vmatpush2.msra.mxu0 %v171
  %502 = vmatprep.subr.mxu0 %v166
  %503 = vmatpush2.msra.mxu0 %v165
  %504 = vmatprep.subr.mxu0 %v160
  %505 = vmatpush2.msra.mxu0 %v159
  %506 = vmatprep.mubr.f32.mxu0 %v215
  %507 = vmatmul.mubr.f32.gmra.mxu0 %v29
  %v508 = vpop.f32.mrf.mxu0
  %v509 = vadd.f32 %v194, %v508
  %v510 = vpop.f32.mrf.mxu0
  %v511 = vadd.f32 %v198, %v510
  %512 = vmatprep.mubr.f32.mxu0 %v218
  %513 = vmatmul.mubr.f32.gmra.mxu0 %v31
  %v514 = vpop.f32.mrf.mxu0
  %v515 = vadd.f32 %v194, %v514
  %v516 = vpop.f32.mrf.mxu0
  %v517 = vadd.f32 %v198, %v516
  %518 = vmatprep.mubr.f32.mxu0 %v221
  %519 = vmatmul.mubr.f32.gmra.mxu0 %v33
  %v520 = vpop.f32.mrf.mxu0
  %v521 = vadd.f32 %v194, %v520
  %v522 = vpop.f32.mrf.mxu0
  %v523 = vadd.f32 %v198, %v522
  %524 = vmatprep.mubr.f32.mxu0 %v224
  %525 = vmatmul.mubr.f32.gmra.mxu0 %v35
  %v526 = vpop.f32.mrf.mxu0
  %v527 = vadd.f32 %v194, %v526
  %v528 = vpop.f32.mrf.mxu0
  %v529 = vadd.f32 %v198, %v528
  %530 = vmatprep.mubr.f32.mxu0 %v227
  %531 = vmatmul.mubr.f32.gmra.mxu0 %v37
  %v532 = vpop.f32.mrf.mxu0
  %v533 = vadd.f32 %v194, %v532
  %v534 = vpop.f32.mrf.mxu0
  %v535 = vadd.f32 %v198, %v534
  %536 = vmatprep.mubr.f32.mxu0 %v230
  %537 = vmatmul.mubr.f32.gmra.mxu0 %v39
  %v538 = vpop.f32.mrf.mxu0
  %v539 = vadd.f32 %v194, %v538
  %v540 = vpop.f32.mrf.mxu0
  %v541 = vadd.f32 %v198, %v540
  %542 = vmatprep.mubr.f32.mxu0 %v233
  %543 = vmatmul.mubr.f32.gmra.mxu0 %v41
  %v544 = vpop.f32.mrf.mxu0
  %v545 = vadd.f32 %v194, %v544
  %v546 = vpop.f32.mrf.mxu0
  %v547 = vadd.f32 %v198, %v546
  %548 = vmatprep.mubr.f32.mxu0 %v236
  %549 = vmatmul.mubr.f32.gmra.mxu0 %v43
  %v550 = vpop.f32.mrf.mxu0
  %v551 = vadd.f32 %v194, %v550
  %v552 = vpop.f32.mrf.mxu0
  %v553 = vadd.f32 %v198, %v552
  %554 = vmatprep.mubr.f32.mxu0 %v239
  %555 = vmatmul.mubr.f32.gmra.mxu0 %v45
  %v556 = vpop.f32.mrf.mxu0
  %v557 = vadd.f32 %v194, %v556
  %v558 = vpop.f32.mrf.mxu0
  %v559 = vadd.f32 %v198, %v558
  %560 = vmatprep.mubr.f32.mxu0 %v242
  %561 = vmatmul.mubr.f32.gmra.mxu0 %v47
  %v562 = vpop.f32.mrf.mxu0
  %v563 = vadd.f32 %v194, %v562
  %v564 = vpop.f32.mrf.mxu0
  %v565 = vadd.f32 %v198, %v564
  %566 = vmatprep.mubr.f32.mxu0 %v245
  %567 = vmatmul.mubr.f32.gmra.mxu0 %v49
  %v568 = vpop.f32.mrf.mxu0
  %v569 = vadd.f32 %v194, %v568
  %v570 = vpop.f32.mrf.mxu0
  %v571 = vadd.f32 %v198, %v570
  %572 = vmatprep.mubr.f32.mxu0 %v248
  %573 = vmatmul.mubr.f32.gmra.mxu0 %v51
  %v574 = vpop.f32.mrf.mxu0
  %v575 = vadd.f32 %v194, %v574
  %v576 = vpop.f32.mrf.mxu0
  %v577 = vadd.f32 %v198, %v576
  %578 = vmatprep.mubr.f32.mxu0 %v251
  %579 = vmatmul.mubr.f32.gmra.mxu0 %v53
  %v580 = vpop.f32.mrf.mxu0
  %v581 = vadd.f32 %v194, %v580
  %v582 = vpop.f32.mrf.mxu0
  %v583 = vadd.f32 %v198, %v582
  %584 = vmatprep.mubr.f32.mxu0 %v254
  %585 = vmatmul.mubr.f32.gmra.mxu0 %v55
  %v586 = vpop.f32.mrf.mxu0
  %v587 = vadd.f32 %v194, %v586
  %v588 = vpop.f32.mrf.mxu0
  %v589 = vadd.f32 %v198, %v588
  %590 = vmatprep.mubr.f32.mxu0 %v257
  %591 = vmatmul.mubr.f32.gmra.mxu0 %v57
  %v592 = vpop.f32.mrf.mxu0
  %v593 = vadd.f32 %v194, %v592
  %v594 = vpop.f32.mrf.mxu0
  %v595 = vadd.f32 %v198, %v594
  %596 = vmatprep.mubr.f32.mxu0 %v260
  %597 = vmatmul.mubr.f32.gmra.mxu0 %v59
  %v598 = vpop.f32.mrf.mxu0
  %v599 = vadd.f32 %v194, %v598
  %v600 = vpop.f32.mrf.mxu0
  %v601 = vadd.f32 %v198, %v600
  %602 = vdwg.mxu0
  %603 = vmatprep.subr.mxu0 %v156
  %604 = vmatpush1.msra.mxu0 %v155
  %605 = vmatprep.subr.mxu0 %v150
  %606 = vmatpush1.msra.mxu0 %v149
  %607 = vmatprep.subr.mxu0 %v144
  %608 = vmatpush1.msra.mxu0 %v143
  %609 = vmatprep.subr.mxu0 %v138
  %610 = vmatpush1.msra.mxu0 %v137
  %611 = vmatprep.subr.mxu0 %v132
  %612 = vmatpush1.msra.mxu0 %v131
  %613 = vmatprep.subr.mxu0 %v126
  %614 = vmatpush1.msra.mxu0 %v125
  %615 = vmatprep.subr.mxu0 %v120
  %616 = vmatpush1.msra.mxu0 %v119
  %617 = vmatprep.subr.mxu0 %v114
  %618 = vmatpush1.msra.mxu0 %v113
  %619 = vmatprep.subr.mxu0 %v108
  %620 = vmatpush1.msra.mxu0 %v107
  %621 = vmatprep.subr.mxu0 %v102
  %622 = vmatpush1.msra.mxu0 %v101
  %623 = vmatprep.subr.mxu0 %v96
  %624 = vmatpush1.msra.mxu0 %v95
  %625 = vmatprep.subr.mxu0 %v90
  %626 = vmatpush1.msra.mxu0 %v89
  %627 = vmatprep.subr.mxu0 %v84
  %628 = vmatpush1.msra.mxu0 %v83
  %629 = vmatprep.subr.mxu0 %v78
  %630 = vmatpush1.msra.mxu0 %v77
  %631 = vmatprep.subr.mxu0 %v72
  %632 = vmatpush1.msra.mxu0 %v71
  %633 = vmatprep.subr.mxu0 %v66
  %634 = vmatpush1.msra.mxu0 %v65
  %635 = vmatprep.subr.mxu0 0.0
  %636 = vmatpush2.msra.mxu0 0.0
  %637 = vmatprep.subr.mxu0 0.0
  %638 = vmatpush2.msra.mxu0 0.0
  %639 = vmatprep.subr.mxu0 0.0
  %640 = vmatpush2.msra.mxu0 0.0
  %641 = vmatprep.subr.mxu0 0.0
  %642 = vmatpush2.msra.mxu0 0.0
  %643 = vmatprep.subr.mxu0 0.0
  %644 = vmatpush2.msra.mxu0 0.0
  %645 = vmatprep.subr.mxu0 0.0
  %646 = vmatpush2.msra.mxu0 0.0
  %647 = vmatprep.subr.mxu0 0.0
  %648 = vmatpush2.msra.mxu0 0.0
  %649 = vmatprep.subr.mxu0 0.0
  %650 = vmatpush2.msra.mxu0 0.0
  %651 = vmatprep.subr.mxu0 0.0
  %652 = vmatpush2.msra.mxu0 0.0
  %653 = vmatprep.subr.mxu0 0.0
  %654 = vmatpush2.msra.mxu0 0.0
  %655 = vmatprep.subr.mxu0 0.0
  %656 = vmatpush2.msra.mxu0 0.0
  %657 = vmatprep.subr.mxu0 0.0
  %658 = vmatpush2.msra.mxu0 0.0
  %659 = vmatprep.subr.mxu0 %v279
  %660 = vmatpush2.msra.mxu0 %v276
  %661 = vmatprep.subr.mxu0 %v174
  %662 = vmatpush2.msra.mxu0 %v173
  %663 = vmatprep.subr.mxu0 %v168
  %664 = vmatpush2.msra.mxu0 %v167
  %665 = vmatprep.subr.mxu0 %v162
  %666 = vmatpush2.msra.mxu0 %v161
  %667 = vmatprep.mubr.f32.mxu0 %v215
  %668 = vmatmul.mubr.f32.gmra.mxu0 %v29
  %v669 = vpop.f32.mrf.mxu0
  %v670 = vadd.f32 %v202, %v669
  %v671 = vpop.f32.mrf.mxu0
  %v672 = vadd.f32 %v206, %v671
  %673 = vmatprep.mubr.f32.mxu0 %v218
  %674 = vmatmul.mubr.f32.gmra.mxu0 %v31
  %v675 = vpop.f32.mrf.mxu0
  %v676 = vadd.f32 %v202, %v675
  %v677 = vpop.f32.mrf.mxu0
  %v678 = vadd.f32 %v206, %v677
  %679 = vmatprep.mubr.f32.mxu0 %v221
  %680 = vmatmul.mubr.f32.gmra.mxu0 %v33
  %v681 = vpop.f32.mrf.mxu0
  %v682 = vadd.f32 %v202, %v681
  %v683 = vpop.f32.mrf.mxu0
  %v684 = vadd.f32 %v206, %v683
  %685 = vmatprep.mubr.f32.mxu0 %v224
  %686 = vmatmul.mubr.f32.gmra.mxu0 %v35
  %v687 = vpop.f32.mrf.mxu0
  %v688 = vadd.f32 %v202, %v687
  %v689 = vpop.f32.mrf.mxu0
  %v690 = vadd.f32 %v206, %v689
  %691 = vmatprep.mubr.f32.mxu0 %v227
  %692 = vmatmul.mubr.f32.gmra.mxu0 %v37
  %v693 = vpop.f32.mrf.mxu0
  %v694 = vadd.f32 %v202, %v693
  %v695 = vpop.f32.mrf.mxu0
  %v696 = vadd.f32 %v206, %v695
  %697 = vmatprep.mubr.f32.mxu0 %v230
  %698 = vmatmul.mubr.f32.gmra.mxu0 %v39
  %v699 = vpop.f32.mrf.mxu0
  %v700 = vadd.f32 %v202, %v699
  %v701 = vpop.f32.mrf.mxu0
  %v702 = vadd.f32 %v206, %v701
  %703 = vmatprep.mubr.f32.mxu0 %v233
  %704 = vmatmul.mubr.f32.gmra.mxu0 %v41
  %v705 = vpop.f32.mrf.mxu0
  %v706 = vadd.f32 %v202, %v705
  %v707 = vpop.f32.mrf.mxu0
  %v708 = vadd.f32 %v206, %v707
  %709 = vmatprep.mubr.f32.mxu0 %v236
  %710 = vmatmul.mubr.f32.gmra.mxu0 %v43
  %v711 = vpop.f32.mrf.mxu0
  %v712 = vadd.f32 %v202, %v711
  %v713 = vpop.f32.mrf.mxu0
  %v714 = vadd.f32 %v206, %v713
  %715 = vmatprep.mubr.f32.mxu0 %v239
  %716 = vmatmul.mubr.f32.gmra.mxu0 %v45
  %v717 = vpop.f32.mrf.mxu0
  %v718 = vadd.f32 %v202, %v717
  %v719 = vpop.f32.mrf.mxu0
  %v720 = vadd.f32 %v206, %v719
  %721 = vmatprep.mubr.f32.mxu0 %v242
  %722 = vmatmul.mubr.f32.gmra.mxu0 %v47
  %v723 = vpop.f32.mrf.mxu0
  %v724 = vadd.f32 %v202, %v723
  %v725 = vpop.f32.mrf.mxu0
  %v726 = vadd.f32 %v206, %v725
  %727 = vmatprep.mubr.f32.mxu0 %v245
  %728 = vmatmul.mubr.f32.gmra.mxu0 %v49
  %v729 = vpop.f32.mrf.mxu0
  %v730 = vadd.f32 %v202, %v729
  %v731 = vpop.f32.mrf.mxu0
  %v732 = vadd.f32 %v206, %v731
  %733 = vmatprep.mubr.f32.mxu0 %v248
  %734 = vmatmul.mubr.f32.gmra.mxu0 %v51
  %v735 = vpop.f32.mrf.mxu0
  %v736 = vadd.f32 %v202, %v735
  %v737 = vpop.f32.mrf.mxu0
  %v738 = vadd.f32 %v206, %v737
  %739 = vmatprep.mubr.f32.mxu0 %v251
  %740 = vmatmul.mubr.f32.gmra.mxu0 %v53
  %v741 = vpop.f32.mrf.mxu0
  %v742 = vadd.f32 %v202, %v741
  %v743 = vpop.f32.mrf.mxu0
  %v744 = vadd.f32 %v206, %v743
  %745 = vmatprep.mubr.f32.mxu0 %v254
  %746 = vmatmul.mubr.f32.gmra.mxu0 %v55
  %v747 = vpop.f32.mrf.mxu0
  %v748 = vadd.f32 %v202, %v747
  %v749 = vpop.f32.mrf.mxu0
  %v750 = vadd.f32 %v206, %v749
  %751 = vmatprep.mubr.f32.mxu0 %v257
  %752 = vmatmul.mubr.f32.gmra.mxu0 %v57
  %v753 = vpop.f32.mrf.mxu0
  %v754 = vadd.f32 %v202, %v753
  %v755 = vpop.f32.mrf.mxu0
  %v756 = vadd.f32 %v206, %v755
  %757 = vmatprep.mubr.f32.mxu0 %v260
  %758 = vmatmul.mubr.f32.gmra.mxu0 %v59
  %v759 = vpop.f32.mrf.mxu0
  %v760 = vadd.f32 %v202, %v759
  %v761 = vpop.f32.mrf.mxu0
  %v762 = vadd.f32 %v206, %v761
  %763 = vdwg.mxu0
  %v764 = vmax.f32 %v348, 0.0
  %v765 = vmax.f32 %v350, 0.0
  %v766 = vmax.f32 %v509, 0.0
  %v767 = vmax.f32 %v511, 0.0
  %v768 = vmax.f32 %v670, 0.0
  %v769 = vmax.f32 %v672, 0.0
  %v770 = vmax.f32 %v354, 0.0
  %v771 = vmax.f32 %v356, 0.0
  %v772 = vmax.f32 %v515, 0.0
  %v773 = vmax.f32 %v517, 0.0
  %v774 = vmax.f32 %v676, 0.0
  %v775 = vmax.f32 %v678, 0.0
  %v776 = vmax.f32 %v360, 0.0
  %v777 = vmax.f32 %v362, 0.0
  %v778 = vmax.f32 %v521, 0.0
  %v779 = vmax.f32 %v523, 0.0
  %v780 = vmax.f32 %v682, 0.0
  %v781 = vmax.f32 %v684, 0.0
  %v782 = vmax.f32 %v366, 0.0
  %v783 = vmax.f32 %v368, 0.0
  %v784 = vmax.f32 %v527, 0.0
  %v785 = vmax.f32 %v529, 0.0
  %v786 = vmax.f32 %v688, 0.0
  %v787 = vmax.f32 %v690, 0.0
  %v788 = vmax.f32 %v372, 0.0
  %v789 = vmax.f32 %v374, 0.0
  %v790 = vmax.f32 %v533, 0.0
  %v791 = vmax.f32 %v535, 0.0
  %v792 = vmax.f32 %v694, 0.0
  %v793 = vmax.f32 %v696, 0.0
  %v794 = vmax.f32 %v378, 0.0
  %v795 = vmax.f32 %v380, 0.0
  %v796 = vmax.f32 %v539, 0.0
  %v797 = vmax.f32 %v541, 0.0
  %v798 = vmax.f32 %v700, 0.0
  %v799 = vmax.f32 %v702, 0.0
  %v800 = vmax.f32 %v384, 0.0
  %v801 = vmax.f32 %v386, 0.0
  %v802 = vmax.f32 %v545, 0.0
  %v803 = vmax.f32 %v547, 0.0
  %v804 = vmax.f32 %v706, 0.0
  %v805 = vmax.f32 %v708, 0.0
  %v806 = vmax.f32 %v390, 0.0
  %v807 = vmax.f32 %v392, 0.0
  %v808 = vmax.f32 %v551, 0.0
  %v809 = vmax.f32 %v553, 0.0
  %v810 = vmax.f32 %v712, 0.0
  %v811 = vmax.f32 %v714, 0.0
  %v812 = vmax.f32 %v396, 0.0
  %v813 = vmax.f32 %v398, 0.0
  %v814 = vmax.f32 %v557, 0.0
  %v815 = vmax.f32 %v559, 0.0
  %v816 = vmax.f32 %v718, 0.0
  %v817 = vmax.f32 %v720, 0.0
  %v818 = vmax.f32 %v402, 0.0
  %v819 = vmax.f32 %v404, 0.0
  %v820 = vmax.f32 %v563, 0.0
  %v821 = vmax.f32 %v565, 0.0
  %v822 = vmax.f32 %v724, 0.0
  %v823 = vmax.f32 %v726, 0.0
  %v824 = vmax.f32 %v408, 0.0
  %v825 = vmax.f32 %v410, 0.0
  %v826 = vmax.f32 %v569, 0.0
  %v827 = vmax.f32 %v571, 0.0
  %v828 = vmax.f32 %v730, 0.0
  %v829 = vmax.f32 %v732, 0.0
  %v830 = vmax.f32 %v414, 0.0
  %v831 = vmax.f32 %v416, 0.0
  %v832 = vmax.f32 %v575, 0.0
  %v833 = vmax.f32 %v577, 0.0
  %v834 = vmax.f32 %v736, 0.0
  %v835 = vmax.f32 %v738, 0.0
  %v836 = vmax.f32 %v420, 0.0
  %v837 = vmax.f32 %v422, 0.0
  %v838 = vmax.f32 %v581, 0.0
  %v839 = vmax.f32 %v583, 0.0
  %v840 = vmax.f32 %v742, 0.0
  %v841 = vmax.f32 %v744, 0.0
  %v842 = vmax.f32 %v426, 0.0
  %v843 = vmax.f32 %v428, 0.0
  %v844 = vmax.f32 %v587, 0.0
  %v845 = vmax.f32 %v589, 0.0
  %v846 = vmax.f32 %v748, 0.0
  %v847 = vmax.f32 %v750, 0.0
  %v848 = vmax.f32 %v432, 0.0
  %v849 = vmax.f32 %v434, 0.0
  %v850 = vmax.f32 %v593, 0.0
  %v851 = vmax.f32 %v595, 0.0
  %v852 = vmax.f32 %v754, 0.0
  %v853 = vmax.f32 %v756, 0.0
  %v854 = vmax.f32 %v438, 0.0
  %v855 = vmax.f32 %v440, 0.0
  %v856 = vmax.f32 %v599, 0.0
  %v857 = vmax.f32 %v601, 0.0
  %v858 = vmax.f32 %v760, 0.0
  %v859 = vmax.f32 %v762, 0.0
  %v860 = vld [vmem:[%s3] sm:$0xff]
  %v861 = vld [vmem:[%s3 + $0x8] sm:$0xff]
  %v862 = vld [vmem:[%s3 + $0x10] sm:$0xff]
  %v863 = vld [vmem:[%s3 + $0x18] sm:$0xff]
  %v864 = vld [vmem:[%s3 + $0x20] sm:$0xff]
  %v865 = vld [vmem:[%s3 + $0x28] sm:$0xff]
  %v866 = vld [vmem:[%s3 + $0x30] sm:$0xff]
  %v867 = vld [vmem:[%s3 + $0x38] sm:$0xff]
  %v868 = vld [vmem:[%s3 + $0x40] sm:$0xff]
  %v869 = vld [vmem:[%s3 + $0x48] sm:$0xff]
  %v870 = vld [vmem:[%s3 + $0x50] sm:$0xff]
  %v871 = vld [vmem:[%s3 + $0x58] sm:$0xff]
  %v872 = vld [vmem:[%s3 + $0x60] sm:$0xff]
  %v873 = vld [vmem:[%s3 + $0x68] sm:$0xff]
  %v874 = vld [vmem:[%s3 + $0x70] sm:$0xff]
  %v875 = vld [vmem:[%s3 + $0x78] sm:$0xff]
  %v876 = vld [vmem:[%s3 + $0x80] sm:$0xff]
  %v877 = vld [vmem:[%s3 + $0x88] sm:$0xff]
  %v878 = vld [vmem:[%s3 + $0x90] sm:$0xff]
  %v879 = vld [vmem:[%s3 + $0x98] sm:$0xff]
  %v880 = vld [vmem:[%s3 + $0xa0] sm:$0xff]
  %v881 = vld [vmem:[%s3 + $0xa8] sm:$0xff]
  %v882 = vld [vmem:[%s3 + $0xb0] sm:$0xff]
  %v883 = vld [vmem:[%s3 + $0xb8] sm:$0xff]
  %v884 = vld [vmem:[%s3 + $0xc0] sm:$0xff]
  %v885 = vld [vmem:[%s3 + $0xc8] sm:$0xff]
  %v886 = vld [vmem:[%s3 + $0xd0] sm:$0xff]
  %v887 = vld [vmem:[%s3 + $0xd8] sm:$0xff]
  %v888 = vld [vmem:[%s3 + $0xe0] sm:$0xff]
  %v889 = vld [vmem:[%s3 + $0xe8] sm:$0xff]
  %v890 = vld [vmem:[%s3 + $0xf0] sm:$0xff]
  %v891 = vld [vmem:[%s3 + $0xf8] sm:$0xff]
  %v892 = vld [vmem:[%s3 + $0x100] sm:$0xff]
  %v893 = vld [vmem:[%s3 + $0x108] sm:$0xff]
  %v894 = vld [vmem:[%s3 + $0x110] sm:$0xff]
  %v895 = vld [vmem:[%s3 + $0x118] sm:$0xff]
  %v896 = vld [vmem:[%s3 + $0x120] sm:$0xff]
  %v897 = vld [vmem:[%s3 + $0x128] sm:$0xff]
  %v898 = vld [vmem:[%s3 + $0x130] sm:$0xff]
  %v899 = vld [vmem:[%s3 + $0x138] sm:$0xff]
  %v900 = vld [vmem:[%s3 + $0x140] sm:$0xff]
  %v901 = vld [vmem:[%s3 + $0x148] sm:$0xff]
  %v902 = vld [vmem:[%s3 + $0x150] sm:$0xff]
  %v903 = vld [vmem:[%s3 + $0x158] sm:$0xff]
  %v904 = vld [vmem:[%s3 + $0x160] sm:$0xff]
  %v905 = vld [vmem:[%s3 + $0x168] sm:$0xff]
  %v906 = vld [vmem:[%s3 + $0x170] sm:$0xff]
  %v907 = vld [vmem:[%s3 + $0x178] sm:$0xff]
  %v908 = vld [vmem:[%s3 + $0x180] sm:$0xff]
  %v909 = vld [vmem:[%s3 + $0x188] sm:$0xff]
  %v910 = vld [vmem:[%s3 + $0x190] sm:$0xff]
  %v911 = vld [vmem:[%s3 + $0x198] sm:$0xff]
  %v912 = vld [vmem:[%s3 + $0x1a0] sm:$0xff]
  %v913 = vld [vmem:[%s3 + $0x1a8] sm:$0xff]
  %v914 = vld [vmem:[%s3 + $0x1b0] sm:$0xff]
  %v915 = vld [vmem:[%s3 + $0x1b8] sm:$0xff]
  %v916 = vld [vmem:[%s3 + $0x1c0] sm:$0xff]
  %v917 = vld [vmem:[%s3 + $0x1c8] sm:$0xff]
  %v918 = vld [vmem:[%s3 + $0x1d0] sm:$0xff]
  %v919 = vld [vmem:[%s3 + $0x1d8] sm:$0xff]
  %v920 = vld [vmem:[%s3 + $0x1e0] sm:$0xff]
  %v921 = vld [vmem:[%s3 + $0x1e8] sm:$0xff]
  %v922 = vld [vmem:[%s3 + $0x1f0] sm:$0xff]
  %v923 = vld [vmem:[%s3 + $0x1f8] sm:$0xff]
  %v924 = vld [vmem:[%s3 + $0x200] sm:$0xff]
  %v925 = vld [vmem:[%s3 + $0x208] sm:$0xff]
  %v926 = vld [vmem:[%s3 + $0x210] sm:$0xff]
  %v927 = vld [vmem:[%s3 + $0x218] sm:$0xff]
  %v928 = vld [vmem:[%s3 + $0x220] sm:$0xff]
  %v929 = vld [vmem:[%s3 + $0x228] sm:$0xff]
  %v930 = vld [vmem:[%s3 + $0x230] sm:$0xff]
  %v931 = vld [vmem:[%s3 + $0x238] sm:$0xff]
  %v932 = vld [vmem:[%s3 + $0x240] sm:$0xff]
  %v933 = vld [vmem:[%s3 + $0x248] sm:$0xff]
  %v934 = vld [vmem:[%s3 + $0x250] sm:$0xff]
  %v935 = vld [vmem:[%s3 + $0x258] sm:$0xff]
  %v936 = vld [vmem:[%s3 + $0x260] sm:$0xff]
  %v937 = vld [vmem:[%s3 + $0x268] sm:$0xff]
  %v938 = vld [vmem:[%s3 + $0x270] sm:$0xff]
  %v939 = vld [vmem:[%s3 + $0x278] sm:$0xff]
  %v940 = vld [vmem:[%s3 + $0x280] sm:$0xff]
  %v941 = vld [vmem:[%s3 + $0x288] sm:$0xff]
  %v942 = vld [vmem:[%s3 + $0x290] sm:$0xff]
  %v943 = vld [vmem:[%s3 + $0x298] sm:$0xff]
  %v944 = vld [vmem:[%s3 + $0x2a0] sm:$0xff]
  %v945 = vld [vmem:[%s3 + $0x2a8] sm:$0xff]
  %v946 = vld [vmem:[%s3 + $0x2b0] sm:$0xff]
  %v947 = vld [vmem:[%s3 + $0x2b8] sm:$0xff]
  %v948 = vld [vmem:[%s3 + $0x2c0] sm:$0xff]
  %v949 = vld [vmem:[%s3 + $0x2c8] sm:$0xff]
  %v950 = vld [vmem:[%s3 + $0x2d0] sm:$0xff]
  %v951 = vld [vmem:[%s3 + $0x2d8] sm:$0xff]
  %v952 = vld [vmem:[%s3 + $0x2e0] sm:$0xff]
  %v953 = vld [vmem:[%s3 + $0x2e8] sm:$0xff]
  %v954 = vld [vmem:[%s3 + $0x2f0] sm:$0xff]
  %v955 = vld [vmem:[%s3 + $0x2f8] sm:$0xff]
  %v956 = vld [vmem:[%s3 + $0x300] sm:$0xff]
  %v957 = vld [vmem:[%s3 + $0x308] sm:$0xff]
  %v958 = vld [vmem:[%s3 + $0x310] sm:$0xff]
  %v959 = vld [vmem:[%s3 + $0x318] sm:$0xff]
  %v960 = vld [vmem:[%s3 + $0x320] sm:$0xff]
  %v961 = vld [vmem:[%s3 + $0x328] sm:$0xff]
  %v962 = vld [vmem:[%s3 + $0x330] sm:$0xff]
  %v963 = vld [vmem:[%s3 + $0x338] sm:$0xff]
  %v964 = vld [vmem:[%s3 + $0x340] sm:$0xff]
  %v965 = vld [vmem:[%s3 + $0x348] sm:$0xff]
  %v966 = vld [vmem:[%s3 + $0x350] sm:$0xff]
  %v967 = vld [vmem:[%s3 + $0x358] sm:$0xff]
  %v968 = vld [vmem:[%s3 + $0x360] sm:$0xff]
  %v969 = vld [vmem:[%s3 + $0x368] sm:$0xff]
  %v970 = vld [vmem:[%s3 + $0x370] sm:$0xff]
  %v971 = vld [vmem:[%s3 + $0x378] sm:$0xff]
  %v972 = vld [vmem:[%s3 + $0x380] sm:$0xff]
  %v973 = vld [vmem:[%s3 + $0x388] sm:$0xff]
  %v974 = vld [vmem:[%s3 + $0x390] sm:$0xff]
  %v975 = vld [vmem:[%s3 + $0x398] sm:$0xff]
  %v976 = vld [vmem:[%s3 + $0x3a0] sm:$0xff]
  %v977 = vld [vmem:[%s3 + $0x3a8] sm:$0xff]
  %v978 = vld [vmem:[%s3 + $0x3b0] sm:$0xff]
  %v979 = vld [vmem:[%s3 + $0x3b8] sm:$0xff]
  %v980 = vld [vmem:[%s3 + $0x3c0] sm:$0xff]
  %v981 = vld [vmem:[%s3 + $0x3c8] sm:$0xff]
  %v982 = vld [vmem:[%s3 + $0x3d0] sm:$0xff]
  %v983 = vld [vmem:[%s3 + $0x3d8] sm:$0xff]
  %v984 = vld [vmem:[%s3 + $0x3e0] sm:$0xff]
  %v985 = vld [vmem:[%s3 + $0x3e8] sm:$0xff]
  %v986 = vld [vmem:[%s3 + $0x3f0] sm:$0xff]
  %v987 = vld [vmem:[%s3 + $0x3f8] sm:$0xff]
  %v988 = vld [vmem:[%s3 + $0x400] sm:$0xff]
  %v989 = vld [vmem:[%s3 + $0x408] sm:$0xff]
  %v990 = vld [vmem:[%s3 + $0x410] sm:$0xff]
  %v991 = vld [vmem:[%s3 + $0x418] sm:$0xff]
  %v992 = vld [vmem:[%s3 + $0x420] sm:$0xff]
  %v993 = vld [vmem:[%s3 + $0x428] sm:$0xff]
  %v994 = vld [vmem:[%s3 + $0x430] sm:$0xff]
  %v995 = vld [vmem:[%s3 + $0x438] sm:$0xff]
  %v996 = vld [vmem:[%s3 + $0x440] sm:$0xff]
  %v997 = vld [vmem:[%s3 + $0x448] sm:$0xff]
  %v998 = vld [vmem:[%s3 + $0x450] sm:$0xff]
  %v999 = vld [vmem:[%s3 + $0x458] sm:$0xff]
  %v1000 = vld [vmem:[%s3 + $0x460] sm:$0xff]
  %v1001 = vld [vmem:[%s3 + $0x468] sm:$0xff]
  %v1002 = vld [vmem:[%s3 + $0x470] sm:$0xff]
  %v1003 = vld [vmem:[%s3 + $0x478] sm:$0xff]
  %v1004 = vld [vmem:[%s3 + $0x480] sm:$0xff]
  %v1005 = vld [vmem:[%s3 + $0x488] sm:$0xff]
  %v1006 = vld [vmem:[%s3 + $0x490] sm:$0xff]
  %v1007 = vld [vmem:[%s3 + $0x498] sm:$0xff]
  %v1008 = vld [vmem:[%s3 + $0x4a0] sm:$0xff]
  %v1009 = vld [vmem:[%s3 + $0x4a8] sm:$0xff]
  %v1010 = vld [vmem:[%s3 + $0x4b0] sm:$0xff]
  %v1011 = vld [vmem:[%s3 + $0x4b8] sm:$0xff]
  %v1012 = vld [vmem:[%s3 + $0x4c0] sm:$0xff]
  %v1013 = vld [vmem:[%s3 + $0x4c8] sm:$0xff]
  %v1014 = vld [vmem:[%s3 + $0x4d0] sm:$0xff]
  %v1015 = vld [vmem:[%s3 + $0x4d8] sm:$0xff]
  %v1016 = vld [vmem:[%s3 + $0x4e0] sm:$0xff]
  %v1017 = vld [vmem:[%s3 + $0x4e8] sm:$0xff]
  %v1018 = vld [vmem:[%s3 + $0x4f0] sm:$0xff]
  %v1019 = vld [vmem:[%s3 + $0x4f8] sm:$0xff]
  %v1020 = vld [vmem:[%s3 + $0x500] sm:$0xff]
  %v1021 = vld [vmem:[%s3 + $0x508] sm:$0xff]
  %v1022 = vld [vmem:[%s3 + $0x510] sm:$0xff]
  %v1023 = vld [vmem:[%s3 + $0x518] sm:$0xff]
  %v1024 = vld [vmem:[%s3 + $0x520] sm:$0xff]
  %v1025 = vld [vmem:[%s3 + $0x528] sm:$0xff]
  %v1026 = vld [vmem:[%s3 + $0x530] sm:$0xff]
  %v1027 = vld [vmem:[%s3 + $0x538] sm:$0xff]
  %v1028 = vld [vmem:[%s3 + $0x540] sm:$0xff]
  %v1029 = vld [vmem:[%s3 + $0x548] sm:$0xff]
  %v1030 = vld [vmem:[%s3 + $0x550] sm:$0xff]
  %v1031 = vld [vmem:[%s3 + $0x558] sm:$0xff]
  %v1032 = vld [vmem:[%s3 + $0x560] sm:$0xff]
  %v1033 = vld [vmem:[%s3 + $0x568] sm:$0xff]
  %v1034 = vld [vmem:[%s3 + $0x570] sm:$0xff]
  %v1035 = vld [vmem:[%s3 + $0x578] sm:$0xff]
  %v1036 = vld [vmem:[%s3 + $0x580] sm:$0xff]
  %v1037 = vld [vmem:[%s3 + $0x588] sm:$0xff]
  %v1038 = vld [vmem:[%s3 + $0x590] sm:$0xff]
  %v1039 = vld [vmem:[%s3 + $0x598] sm:$0xff]
  %v1040 = vld [vmem:[%s3 + $0x5a0] sm:$0xff]
  %v1041 = vld [vmem:[%s3 + $0x5a8] sm:$0xff]
  %v1042 = vld [vmem:[%s3 + $0x5b0] sm:$0xff]
  %v1043 = vld [vmem:[%s3 + $0x5b8] sm:$0xff]
  %v1044 = vld [vmem:[%s3 + $0x5c0] sm:$0xff]
  %v1045 = vld [vmem:[%s3 + $0x5c8] sm:$0xff]
  %v1046 = vld [vmem:[%s3 + $0x5d0] sm:$0xff]
  %v1047 = vld [vmem:[%s3 + $0x5d8] sm:$0xff]
  %v1048 = vld [vmem:[%s3 + $0x5e0] sm:$0xff]
  %v1049 = vld [vmem:[%s3 + $0x5e8] sm:$0xff]
  %v1050 = vld [vmem:[%s3 + $0x5f0] sm:$0xff]
  %v1051 = vld [vmem:[%s3 + $0x5f8] sm:$0xff]
  %v1052 = vld [vmem:[%s3 + $0x600] sm:$0xff]
  %v1053 = vld [vmem:[%s3 + $0x608] sm:$0xff]
  %v1054 = vld [vmem:[%s3 + $0x610] sm:$0xff]
  %v1055 = vld [vmem:[%s3 + $0x618] sm:$0xff]
  %v1056 = vld [vmem:[%s3 + $0x620] sm:$0xff]
  %v1057 = vld [vmem:[%s3 + $0x628] sm:$0xff]
  %v1058 = vld [vmem:[%s3 + $0x630] sm:$0xff]
  %v1059 = vld [vmem:[%s3 + $0x638] sm:$0xff]
  %v1060 = vld [vmem:[%s3 + $0x640] sm:$0xff]
  %v1061 = vld [vmem:[%s3 + $0x648] sm:$0xff]
  %v1062 = vld [vmem:[%s3 + $0x650] sm:$0xff]
  %v1063 = vld [vmem:[%s3 + $0x658] sm:$0xff]
  %v1064 = vld [vmem:[%s3 + $0x660] sm:$0xff]
  %v1065 = vld [vmem:[%s3 + $0x668] sm:$0xff]
  %v1066 = vld [vmem:[%s3 + $0x670] sm:$0xff]
  %v1067 = vld [vmem:[%s3 + $0x678] sm:$0xff]
  %v1068 = vld [vmem:[%s3 + $0x680] sm:$0xff]
  %v1069 = vld [vmem:[%s3 + $0x688] sm:$0xff]
  %v1070 = vld [vmem:[%s3 + $0x690] sm:$0xff]
  %v1071 = vld [vmem:[%s3 + $0x698] sm:$0xff]
  %v1072 = vld [vmem:[%s3 + $0x6a0] sm:$0xff]
  %v1073 = vld [vmem:[%s3 + $0x6a8] sm:$0xff]
  %v1074 = vld [vmem:[%s3 + $0x6b0] sm:$0xff]
  %v1075 = vld [vmem:[%s3 + $0x6b8] sm:$0xff]
  %v1076 = vld [vmem:[%s3 + $0x6c0] sm:$0xff]
  %v1077 = vld [vmem:[%s3 + $0x6c8] sm:$0xff]
  %v1078 = vld [vmem:[%s3 + $0x6d0] sm:$0xff]
  %v1079 = vld [vmem:[%s3 + $0x6d8] sm:$0xff]
  %v1080 = vld [vmem:[%s3 + $0x6e0] sm:$0xff]
  %v1081 = vld [vmem:[%s3 + $0x6e8] sm:$0xff]
  %v1082 = vld [vmem:[%s3 + $0x6f0] sm:$0xff]
  %v1083 = vld [vmem:[%s3 + $0x6f8] sm:$0xff]
  %v1084 = vld [vmem:[%s3 + $0x700] sm:$0xff]
  %v1085 = vld [vmem:[%s3 + $0x708] sm:$0xff]
  %v1086 = vld [vmem:[%s3 + $0x710] sm:$0xff]
  %v1087 = vld [vmem:[%s3 + $0x718] sm:$0xff]
  %v1088 = vld [vmem:[%s3 + $0x720] sm:$0xff]
  %v1089 = vld [vmem:[%s3 + $0x728] sm:$0xff]
  %v1090 = vld [vmem:[%s3 + $0x730] sm:$0xff]
  %v1091 = vld [vmem:[%s3 + $0x738] sm:$0xff]
  %v1092 = vld [vmem:[%s3 + $0x740] sm:$0xff]
  %v1093 = vld [vmem:[%s3 + $0x748] sm:$0xff]
  %v1094 = vld [vmem:[%s3 + $0x750] sm:$0xff]
  %v1095 = vld [vmem:[%s3 + $0x758] sm:$0xff]
  %v1096 = vld [vmem:[%s3 + $0x760] sm:$0xff]
  %v1097 = vld [vmem:[%s3 + $0x768] sm:$0xff]
  %v1098 = vld [vmem:[%s3 + $0x770] sm:$0xff]
  %v1099 = vld [vmem:[%s3 + $0x778] sm:$0xff]
  %v1100 = vld [vmem:[%s3 + $0x780] sm:$0xff]
  %v1101 = vld [vmem:[%s3 + $0x788] sm:$0xff]
  %v1102 = vld [vmem:[%s3 + $0x790] sm:$0xff]
  %v1103 = vld [vmem:[%s3 + $0x798] sm:$0xff]
  %v1104 = vld [vmem:[%s3 + $0x7a0] sm:$0xff]
  %v1105 = vld [vmem:[%s3 + $0x7a8] sm:$0xff]
  %v1106 = vld [vmem:[%s3 + $0x7b0] sm:$0xff]
  %v1107 = vld [vmem:[%s3 + $0x7b8] sm:$0xff]
  %v1108 = vld [vmem:[%s3 + $0x7c0] sm:$0xff]
  %v1109 = vld [vmem:[%s3 + $0x7c8] sm:$0xff]
  %v1110 = vld [vmem:[%s3 + $0x7d0] sm:$0xff]
  %v1111 = vld [vmem:[%s3 + $0x7d8] sm:$0xff]
  %v1112 = vld [vmem:[%s3 + $0x7e0] sm:$0xff]
  %v1113 = vld [vmem:[%s3 + $0x7e8] sm:$0xff]
  %v1114 = vld [vmem:[%s3 + $0x7f0] sm:$0xff]
  %v1115 = vld [vmem:[%s3 + $0x7f8] sm:$0xff]
  %v1116 = vld [vmem:[%s3 + $0x800] sm:$0xff]
  %v1117 = vld [vmem:[%s3 + $0x808] sm:$0xff]
  %v1118 = vld [vmem:[%s3 + $0x810] sm:$0xff]
  %v1119 = vld [vmem:[%s3 + $0x818] sm:$0xff]
  %v1120 = vld [vmem:[%s3 + $0x820] sm:$0xff]
  %v1121 = vld [vmem:[%s3 + $0x828] sm:$0xff]
  %v1122 = vld [vmem:[%s3 + $0x830] sm:$0xff]
  %v1123 = vld [vmem:[%s3 + $0x838] sm:$0xff]
  %v1124 = vld [vmem:[%s3 + $0x840] sm:$0xff]
  %v1125 = vld [vmem:[%s3 + $0x848] sm:$0xff]
  %v1126 = vld [vmem:[%s3 + $0x850] sm:$0xff]
  %v1127 = vld [vmem:[%s3 + $0x858] sm:$0xff]
  %v1128 = vld [vmem:[%s3 + $0x860] sm:$0xff]
  %v1129 = vld [vmem:[%s3 + $0x868] sm:$0xff]
  %v1130 = vld [vmem:[%s3 + $0x870] sm:$0xff]
  %v1131 = vld [vmem:[%s3 + $0x878] sm:$0xff]
  %v1132 = vld [vmem:[%s3 + $0x880] sm:$0xff]
  %v1133 = vld [vmem:[%s3 + $0x888] sm:$0xff]
  %v1134 = vld [vmem:[%s3 + $0x890] sm:$0xff]
  %v1135 = vld [vmem:[%s3 + $0x898] sm:$0xff]
  %v1136 = vld [vmem:[%s3 + $0x8a0] sm:$0xff]
  %v1137 = vld [vmem:[%s3 + $0x8a8] sm:$0xff]
  %v1138 = vld [vmem:[%s3 + $0x8b0] sm:$0xff]
  %v1139 = vld [vmem:[%s3 + $0x8b8] sm:$0xff]
  %v1140 = vld [vmem:[%s3 + $0x8c0] sm:$0xff]
  %v1141 = vld [vmem:[%s3 + $0x8c8] sm:$0xff]
  %v1142 = vld [vmem:[%s3 + $0x8d0] sm:$0xff]
  %v1143 = vld [vmem:[%s3 + $0x8d8] sm:$0xff]
  %v1144 = vld [vmem:[%s3 + $0x8e0] sm:$0xff]
  %v1145 = vld [vmem:[%s3 + $0x8e8] sm:$0xff]
  %v1146 = vld [vmem:[%s3 + $0x8f0] sm:$0xff]
  %v1147 = vld [vmem:[%s3 + $0x8f8] sm:$0xff]
  %v1148 = vld [vmem:[%s3 + $0x900] sm:$0xff]
  %v1149 = vld [vmem:[%s3 + $0x908] sm:$0xff]
  %v1150 = vld [vmem:[%s3 + $0x910] sm:$0xff]
  %v1151 = vld [vmem:[%s3 + $0x918] sm:$0xff]
  %v1152 = vld [vmem:[%s3 + $0x920] sm:$0xff]
  %v1153 = vld [vmem:[%s3 + $0x928] sm:$0xff]
  %v1154 = vld [vmem:[%s3 + $0x930] sm:$0xff]
  %v1155 = vld [vmem:[%s3 + $0x938] sm:$0xff]
  %v1156 = vld [vmem:[%s3 + $0x940] sm:$0xff]
  %v1157 = vld [vmem:[%s3 + $0x948] sm:$0xff]
  %v1158 = vld [vmem:[%s3 + $0x950] sm:$0xff]
  %v1159 = vld [vmem:[%s3 + $0x958] sm:$0xff]
  %v1160 = vld [vmem:[%s3 + $0x960] sm:$0xff]
  %v1161 = vld [vmem:[%s3 + $0x968] sm:$0xff]
  %v1162 = vld [vmem:[%s3 + $0x970] sm:$0xff]
  %v1163 = vld [vmem:[%s3 + $0x978] sm:$0xff]
  %v1164 = vld [vmem:[%s3 + $0x980] sm:$0xff]
  %v1165 = vld [vmem:[%s3 + $0x988] sm:$0xff]
  %v1166 = vld [vmem:[%s3 + $0x990] sm:$0xff]
  %v1167 = vld [vmem:[%s3 + $0x998] sm:$0xff]
  %v1168 = vld [vmem:[%s3 + $0x9a0] sm:$0xff]
  %v1169 = vld [vmem:[%s3 + $0x9a8] sm:$0xff]
  %v1170 = vld [vmem:[%s3 + $0x9b0] sm:$0xff]
  %v1171 = vld [vmem:[%s3 + $0x9b8] sm:$0xff]
  %v1172 = vld [vmem:[%s3 + $0x9c0] sm:$0xff]
  %v1173 = vld [vmem:[%s3 + $0x9c8] sm:$0xff]
  %v1174 = vld [vmem:[%s3 + $0x9d0] sm:$0xff]
  %v1175 = vld [vmem:[%s3 + $0x9d8] sm:$0xff]
  %v1176 = vld [vmem:[%s3 + $0x9e0] sm:$0xff]
  %v1177 = vld [vmem:[%s3 + $0x9e8] sm:$0xff]
  %v1178 = vld [vmem:[%s3 + $0x9f0] sm:$0xff]
  %v1179 = vld [vmem:[%s3 + $0x9f8] sm:$0xff]
  %v1180 = vld [vmem:[%s3 + $0xa00] sm:$0xff]
  %v1181 = vld [vmem:[%s3 + $0xa08] sm:$0xff]
  %v1182 = vld [vmem:[%s3 + $0xa10] sm:$0xff]
  %v1183 = vld [vmem:[%s3 + $0xa18] sm:$0xff]
  %v1184 = vld [vmem:[%s3 + $0xa20] sm:$0xff]
  %v1185 = vld [vmem:[%s3 + $0xa28] sm:$0xff]
  %v1186 = vld [vmem:[%s3 + $0xa30] sm:$0xff]
  %v1187 = vld [vmem:[%s3 + $0xa38] sm:$0xff]
  %v1188 = vld [vmem:[%s3 + $0xa40] sm:$0xff]
  %v1189 = vld [vmem:[%s3 + $0xa48] sm:$0xff]
  %v1190 = vld [vmem:[%s3 + $0xa50] sm:$0xff]
  %v1191 = vld [vmem:[%s3 + $0xa58] sm:$0xff]
  %v1192 = vld [vmem:[%s3 + $0xa60] sm:$0xff]
  %v1193 = vld [vmem:[%s3 + $0xa68] sm:$0xff]
  %v1194 = vld [vmem:[%s3 + $0xa70] sm:$0xff]
  %v1195 = vld [vmem:[%s3 + $0xa78] sm:$0xff]
  %v1196 = vld [vmem:[%s3 + $0xa80] sm:$0xff]
  %v1197 = vld [vmem:[%s3 + $0xa88] sm:$0xff]
  %v1198 = vld [vmem:[%s3 + $0xa90] sm:$0xff]
  %v1199 = vld [vmem:[%s3 + $0xa98] sm:$0xff]
  %v1200 = vld [vmem:[%s3 + $0xaa0] sm:$0xff]
  %v1201 = vld [vmem:[%s3 + $0xaa8] sm:$0xff]
  %v1202 = vld [vmem:[%s3 + $0xab0] sm:$0xff]
  %v1203 = vld [vmem:[%s3 + $0xab8] sm:$0xff]
  %v1204 = vld [vmem:[%s3 + $0xac0] sm:$0xff]
  %v1205 = vld [vmem:[%s3 + $0xac8] sm:$0xff]
  %v1206 = vld [vmem:[%s3 + $0xad0] sm:$0xff]
  %v1207 = vld [vmem:[%s3 + $0xad8] sm:$0xff]
  %v1208 = vld [vmem:[%s3 + $0xae0] sm:$0xff]
  %v1209 = vld [vmem:[%s3 + $0xae8] sm:$0xff]
  %v1210 = vld [vmem:[%s3 + $0xaf0] sm:$0xff]
  %v1211 = vld [vmem:[%s3 + $0xaf8] sm:$0xff]
  %v1212 = vld [vmem:[%s3 + $0xb00] sm:$0xff]
  %v1213 = vld [vmem:[%s3 + $0xb08] sm:$0xff]
  %v1214 = vld [vmem:[%s3 + $0xb10] sm:$0xff]
  %v1215 = vld [vmem:[%s3 + $0xb18] sm:$0xff]
  %v1216 = vld [vmem:[%s3 + $0xb20] sm:$0xff]
  %v1217 = vld [vmem:[%s3 + $0xb28] sm:$0xff]
  %v1218 = vld [vmem:[%s3 + $0xb30] sm:$0xff]
  %v1219 = vld [vmem:[%s3 + $0xb38] sm:$0xff]
  %v1220 = vld [vmem:[%s4] sm:$0xf]
  %v1222 = vlaneseq
  %v1223 = vshrl.u32 %v1222, 7
  %v1224 = vsub.s32 0, %v1223
  %v1225 = vrot.slane %v1220, %v1224
  %v1226 = vlaneseq
  %v1227 = vshrl.u32 %v1226, 7
  %v1228 = vsub.s32 1, %v1227
  %v1229 = vrot.slane %v1220, %v1228
  %v1230 = vlaneseq
  %v1231 = vshrl.u32 %v1230, 7
  %v1232 = vsub.s32 2, %v1231
  %v1233 = vrot.slane %v1220, %v1232
  %v1234 = vlaneseq
  %v1235 = vshrl.u32 %v1234, 7
  %v1236 = vsub.s32 3, %v1235
  %v1237 = vrot.slane %v1220, %v1236
  %vm1242 = vcmask 654336
  %v1244 = vsel %vm1242, %v769, 0
  %v1247 = vsel %vm1242, %v775, 0
  %v1250 = vsel %vm1242, %v781, 0
  %v1253 = vsel %vm1242, %v787, 0
  %v1256 = vsel %vm1242, %v793, 0
  %v1259 = vsel %vm1242, %v799, 0
  %v1262 = vsel %vm1242, %v805, 0
  %v1265 = vsel %vm1242, %v811, 0
  %v1268 = vsel %vm1242, %v817, 0
  %v1271 = vsel %vm1242, %v823, 0
  %v1274 = vsel %vm1242, %v829, 0
  %v1277 = vsel %vm1242, %v835, 0
  %v1280 = vsel %vm1242, %v841, 0
  %v1283 = vsel %vm1242, %v847, 0
  %v1286 = vsel %vm1242, %v853, 0
  %v1289 = vsel %vm1242, %v859, 0
  %1291 = vmatprep.subr.mxu0 %v921
  %1292 = vmatpush1.msra.mxu0 %v920
  %1293 = vmatprep.subr.mxu0 %v917
  %1294 = vmatpush1.msra.mxu0 %v916
  %1295 = vmatprep.subr.mxu0 %v913
  %1296 = vmatpush1.msra.mxu0 %v912
  %1297 = vmatprep.subr.mxu0 %v909
  %1298 = vmatpush1.msra.mxu0 %v908
  %1299 = vmatprep.subr.mxu0 %v905
  %1300 = vmatpush1.msra.mxu0 %v904
  %1301 = vmatprep.subr.mxu0 %v901
  %1302 = vmatpush1.msra.mxu0 %v900
  %1303 = vmatprep.subr.mxu0 %v897
  %1304 = vmatpush1.msra.mxu0 %v896
  %1305 = vmatprep.subr.mxu0 %v893
  %1306 = vmatpush1.msra.mxu0 %v892
  %1307 = vmatprep.subr.mxu0 %v889
  %1308 = vmatpush1.msra.mxu0 %v888
  %1309 = vmatprep.subr.mxu0 %v885
  %1310 = vmatpush1.msra.mxu0 %v884
  %1311 = vmatprep.subr.mxu0 %v881
  %1312 = vmatpush1.msra.mxu0 %v880
  %1313 = vmatprep.subr.mxu0 %v877
  %1314 = vmatpush1.msra.mxu0 %v876
  %1315 = vmatprep.subr.mxu0 %v873
  %1316 = vmatpush1.msra.mxu0 %v872
  %1317 = vmatprep.subr.mxu0 %v869
  %1318 = vmatpush1.msra.mxu0 %v868
  %1319 = vmatprep.subr.mxu0 %v865
  %1320 = vmatpush1.msra.mxu0 %v864
  %1321 = vmatprep.subr.mxu0 %v861
  %1322 = vmatpush1.msra.mxu0 %v860
  %1323 = vmatprep.subr.mxu0 %v985
  %1324 = vmatpush2.msra.mxu0 %v984
  %1325 = vmatprep.subr.mxu0 %v981
  %1326 = vmatpush2.msra.mxu0 %v980
  %1327 = vmatprep.subr.mxu0 %v977
  %1328 = vmatpush2.msra.mxu0 %v976
  %1329 = vmatprep.subr.mxu0 %v973
  %1330 = vmatpush2.msra.mxu0 %v972
  %1331 = vmatprep.subr.mxu0 %v969
  %1332 = vmatpush2.msra.mxu0 %v968
  %1333 = vmatprep.subr.mxu0 %v965
  %1334 = vmatpush2.msra.mxu0 %v964
  %1335 = vmatprep.subr.mxu0 %v961
  %1336 = vmatpush2.msra.mxu0 %v960
  %1337 = vmatprep.subr.mxu0 %v957
  %1338 = vmatpush2.msra.mxu0 %v956
  %1339 = vmatprep.subr.mxu0 %v953
  %1340 = vmatpush2.msra.mxu0 %v952
  %1341 = vmatprep.subr.mxu0 %v949
  %1342 = vmatpush2.msra.mxu0 %v948
  %1343 = vmatprep.subr.mxu0 %v945
  %1344 = vmatpush2.msra.mxu0 %v944
  %1345 = vmatprep.subr.mxu0 %v941
  %1346 = vmatpush2.msra.mxu0 %v940
  %1347 = vmatprep.subr.mxu0 %v937
  %1348 = vmatpush2.msra.mxu0 %v936
  %1349 = vmatprep.subr.mxu0 %v933
  %1350 = vmatpush2.msra.mxu0 %v932
  %1351 = vmatprep.subr.mxu0 %v929
  %1352 = vmatpush2.msra.mxu0 %v928
  %1353 = vmatprep.subr.mxu0 %v925
  %1354 = vmatpush2.msra.mxu0 %v924
  %1355 = vmatprep.mubr.f32.mxu0 %v765
  %1356 = vmatmul.mubr.f32.gmra.mxu0 %v764
  %v1357 = vpop.f32.mrf.mxu0
  %v1358 = vadd.f32 %v1225, %v1357
  %v1359 = vpop.f32.mrf.mxu0
  %v1360 = vadd.f32 %v1229, %v1359
  %1361 = vmatprep.mubr.f32.mxu0 %v771
  %1362 = vmatmul.mubr.f32.gmra.mxu0 %v770
  %v1363 = vpop.f32.mrf.mxu0
  %v1364 = vadd.f32 %v1225, %v1363
  %v1365 = vpop.f32.mrf.mxu0
  %v1366 = vadd.f32 %v1229, %v1365
  %1367 = vmatprep.mubr.f32.mxu0 %v777
  %1368 = vmatmul.mubr.f32.gmra.mxu0 %v776
  %v1369 = vpop.f32.mrf.mxu0
  %v1370 = vadd.f32 %v1225, %v1369
  %v1371 = vpop.f32.mrf.mxu0
  %v1372 = vadd.f32 %v1229, %v1371
  %1373 = vmatprep.mubr.f32.mxu0 %v783
  %1374 = vmatmul.mubr.f32.gmra.mxu0 %v782
  %v1375 = vpop.f32.mrf.mxu0
  %v1376 = vadd.f32 %v1225, %v1375
  %v1377 = vpop.f32.mrf.mxu0
  %v1378 = vadd.f32 %v1229, %v1377
  %1379 = vmatprep.mubr.f32.mxu0 %v789
  %1380 = vmatmul.mubr.f32.gmra.mxu0 %v788
  %v1381 = vpop.f32.mrf.mxu0
  %v1382 = vadd.f32 %v1225, %v1381
  %v1383 = vpop.f32.mrf.mxu0
  %v1384 = vadd.f32 %v1229, %v1383
  %1385 = vmatprep.mubr.f32.mxu0 %v795
  %1386 = vmatmul.mubr.f32.gmra.mxu0 %v794
  %v1387 = vpop.f32.mrf.mxu0
  %v1388 = vadd.f32 %v1225, %v1387
  %v1389 = vpop.f32.mrf.mxu0
  %v1390 = vadd.f32 %v1229, %v1389
  %1391 = vmatprep.mubr.f32.mxu0 %v801
  %1392 = vmatmul.mubr.f32.gmra.mxu0 %v800
  %v1393 = vpop.f32.mrf.mxu0
  %v1394 = vadd.f32 %v1225, %v1393
  %v1395 = vpop.f32.mrf.mxu0
  %v1396 = vadd.f32 %v1229, %v1395
  %1397 = vmatprep.mubr.f32.mxu0 %v807
  %1398 = vmatmul.mubr.f32.gmra.mxu0 %v806
  %v1399 = vpop.f32.mrf.mxu0
  %v1400 = vadd.f32 %v1225, %v1399
  %v1401 = vpop.f32.mrf.mxu0
  %v1402 = vadd.f32 %v1229, %v1401
  %1403 = vmatprep.mubr.f32.mxu0 %v813
  %1404 = vmatmul.mubr.f32.gmra.mxu0 %v812
  %v1405 = vpop.f32.mrf.mxu0
  %v1406 = vadd.f32 %v1225, %v1405
  %v1407 = vpop.f32.mrf.mxu0
  %v1408 = vadd.f32 %v1229, %v1407
  %1409 = vmatprep.mubr.f32.mxu0 %v819
  %1410 = vmatmul.mubr.f32.gmra.mxu0 %v818
  %v1411 = vpop.f32.mrf.mxu0
  %v1412 = vadd.f32 %v1225, %v1411
  %v1413 = vpop.f32.mrf.mxu0
  %v1414 = vadd.f32 %v1229, %v1413
  %1415 = vmatprep.mubr.f32.mxu0 %v825
  %1416 = vmatmul.mubr.f32.gmra.mxu0 %v824
  %v1417 = vpop.f32.mrf.mxu0
  %v1418 = vadd.f32 %v1225, %v1417
  %v1419 = vpop.f32.mrf.mxu0
  %v1420 = vadd.f32 %v1229, %v1419
  %1421 = vmatprep.mubr.f32.mxu0 %v831
  %1422 = vmatmul.mubr.f32.gmra.mxu0 %v830
  %v1423 = vpop.f32.mrf.mxu0
  %v1424 = vadd.f32 %v1225, %v1423
  %v1425 = vpop.f32.mrf.mxu0
  %v1426 = vadd.f32 %v1229, %v1425
  %1427 = vmatprep.mubr.f32.mxu0 %v837
  %1428 = vmatmul.mubr.f32.gmra.mxu0 %v836
  %v1429 = vpop.f32.mrf.mxu0
  %v1430 = vadd.f32 %v1225, %v1429
  %v1431 = vpop.f32.mrf.mxu0
  %v1432 = vadd.f32 %v1229, %v1431
  %1433 = vmatprep.mubr.f32.mxu0 %v843
  %1434 = vmatmul.mubr.f32.gmra.mxu0 %v842
  %v1435 = vpop.f32.mrf.mxu0
  %v1436 = vadd.f32 %v1225, %v1435
  %v1437 = vpop.f32.mrf.mxu0
  %v1438 = vadd.f32 %v1229, %v1437
  %1439 = vmatprep.mubr.f32.mxu0 %v849
  %1440 = vmatmul.mubr.f32.gmra.mxu0 %v848
  %v1441 = vpop.f32.mrf.mxu0
  %v1442 = vadd.f32 %v1225, %v1441
  %v1443 = vpop.f32.mrf.mxu0
  %v1444 = vadd.f32 %v1229, %v1443
  %1445 = vmatprep.mubr.f32.mxu0 %v855
  %1446 = vmatmul.mubr.f32.gmra.mxu0 %v854
  %v1447 = vpop.f32.mrf.mxu0
  %v1448 = vadd.f32 %v1225, %v1447
  %v1449 = vpop.f32.mrf.mxu0
  %v1450 = vadd.f32 %v1229, %v1449
  %1451 = vdwg.mxu0
  %1452 = vmatprep.subr.mxu0 %v1049
  %1453 = vmatpush1.msra.mxu0 %v1048
  %1454 = vmatprep.subr.mxu0 %v1045
  %1455 = vmatpush1.msra.mxu0 %v1044
  %1456 = vmatprep.subr.mxu0 %v1041
  %1457 = vmatpush1.msra.mxu0 %v1040
  %1458 = vmatprep.subr.mxu0 %v1037
  %1459 = vmatpush1.msra.mxu0 %v1036
  %1460 = vmatprep.subr.mxu0 %v1033
  %1461 = vmatpush1.msra.mxu0 %v1032
  %1462 = vmatprep.subr.mxu0 %v1029
  %1463 = vmatpush1.msra.mxu0 %v1028
  %1464 = vmatprep.subr.mxu0 %v1025
  %1465 = vmatpush1.msra.mxu0 %v1024
  %1466 = vmatprep.subr.mxu0 %v1021
  %1467 = vmatpush1.msra.mxu0 %v1020
  %1468 = vmatprep.subr.mxu0 %v1017
  %1469 = vmatpush1.msra.mxu0 %v1016
  %1470 = vmatprep.subr.mxu0 %v1013
  %1471 = vmatpush1.msra.mxu0 %v1012
  %1472 = vmatprep.subr.mxu0 %v1009
  %1473 = vmatpush1.msra.mxu0 %v1008
  %1474 = vmatprep.subr.mxu0 %v1005
  %1475 = vmatpush1.msra.mxu0 %v1004
  %1476 = vmatprep.subr.mxu0 %v1001
  %1477 = vmatpush1.msra.mxu0 %v1000
  %1478 = vmatprep.subr.mxu0 %v997
  %1479 = vmatpush1.msra.mxu0 %v996
  %1480 = vmatprep.subr.mxu0 %v993
  %1481 = vmatpush1.msra.mxu0 %v992
  %1482 = vmatprep.subr.mxu0 %v989
  %1483 = vmatpush1.msra.mxu0 %v988
  %1484 = vmatprep.subr.mxu0 %v1113
  %1485 = vmatpush2.msra.mxu0 %v1112
  %1486 = vmatprep.subr.mxu0 %v1109
  %1487 = vmatpush2.msra.mxu0 %v1108
  %1488 = vmatprep.subr.mxu0 %v1105
  %1489 = vmatpush2.msra.mxu0 %v1104
  %1490 = vmatprep.subr.mxu0 %v1101
  %1491 = vmatpush2.msra.mxu0 %v1100
  %1492 = vmatprep.subr.mxu0 %v1097
  %1493 = vmatpush2.msra.mxu0 %v1096
  %1494 = vmatprep.subr.mxu0 %v1093
  %1495 = vmatpush2.msra.mxu0 %v1092
  %1496 = vmatprep.subr.mxu0 %v1089
  %1497 = vmatpush2.msra.mxu0 %v1088
  %1498 = vmatprep.subr.mxu0 %v1085
  %1499 = vmatpush2.msra.mxu0 %v1084
  %1500 = vmatprep.subr.mxu0 %v1081
  %1501 = vmatpush2.msra.mxu0 %v1080
  %1502 = vmatprep.subr.mxu0 %v1077
  %1503 = vmatpush2.msra.mxu0 %v1076
  %1504 = vmatprep.subr.mxu0 %v1073
  %1505 = vmatpush2.msra.mxu0 %v1072
  %1506 = vmatprep.subr.mxu0 %v1069
  %1507 = vmatpush2.msra.mxu0 %v1068
  %1508 = vmatprep.subr.mxu0 %v1065
  %1509 = vmatpush2.msra.mxu0 %v1064
  %1510 = vmatprep.subr.mxu0 %v1061
  %1511 = vmatpush2.msra.mxu0 %v1060
  %1512 = vmatprep.subr.mxu0 %v1057
  %1513 = vmatpush2.msra.mxu0 %v1056
  %1514 = vmatprep.subr.mxu0 %v1053
  %1515 = vmatpush2.msra.mxu0 %v1052
  %1516 = vmatprep.mubr.f32.mxu0 %v767
  %1517 = vmatmul.mubr.f32.gmra.mxu0 %v766
  %v1518 = vpop.f32.mrf.mxu0
  %v1519 = vadd.f32 %v1358, %v1518
  %v1520 = vpop.f32.mrf.mxu0
  %v1521 = vadd.f32 %v1360, %v1520
  %1522 = vmatprep.mubr.f32.mxu0 %v773
  %1523 = vmatmul.mubr.f32.gmra.mxu0 %v772
  %v1524 = vpop.f32.mrf.mxu0
  %v1525 = vadd.f32 %v1364, %v1524
  %v1526 = vpop.f32.mrf.mxu0
  %v1527 = vadd.f32 %v1366, %v1526
  %1528 = vmatprep.mubr.f32.mxu0 %v779
  %1529 = vmatmul.mubr.f32.gmra.mxu0 %v778
  %v1530 = vpop.f32.mrf.mxu0
  %v1531 = vadd.f32 %v1370, %v1530
  %v1532 = vpop.f32.mrf.mxu0
  %v1533 = vadd.f32 %v1372, %v1532
  %1534 = vmatprep.mubr.f32.mxu0 %v785
  %1535 = vmatmul.mubr.f32.gmra.mxu0 %v784
  %v1536 = vpop.f32.mrf.mxu0
  %v1537 = vadd.f32 %v1376, %v1536
  %v1538 = vpop.f32.mrf.mxu0
  %v1539 = vadd.f32 %v1378, %v1538
  %1540 = vmatprep.mubr.f32.mxu0 %v791
  %1541 = vmatmul.mubr.f32.gmra.mxu0 %v790
  %v1542 = vpop.f32.mrf.mxu0
  %v1543 = vadd.f32 %v1382, %v1542
  %v1544 = vpop.f32.mrf.mxu0
  %v1545 = vadd.f32 %v1384, %v1544
  %1546 = vmatprep.mubr.f32.mxu0 %v797
  %1547 = vmatmul.mubr.f32.gmra.mxu0 %v796
  %v1548 = vpop.f32.mrf.mxu0
  %v1549 = vadd.f32 %v1388, %v1548
  %v1550 = vpop.f32.mrf.mxu0
  %v1551 = vadd.f32 %v1390, %v1550
  %1552 = vmatprep.mubr.f32.mxu0 %v803
  %1553 = vmatmul.mubr.f32.gmra.mxu0 %v802
  %v1554 = vpop.f32.mrf.mxu0
  %v1555 = vadd.f32 %v1394, %v1554
  %v1556 = vpop.f32.mrf.mxu0
  %v1557 = vadd.f32 %v1396, %v1556
  %1558 = vmatprep.mubr.f32.mxu0 %v809
  %1559 = vmatmul.mubr.f32.gmra.mxu0 %v808
  %v1560 = vpop.f32.mrf.mxu0
  %v1561 = vadd.f32 %v1400, %v1560
  %v1562 = vpop.f32.mrf.mxu0
  %v1563 = vadd.f32 %v1402, %v1562
  %1564 = vmatprep.mubr.f32.mxu0 %v815
  %1565 = vmatmul.mubr.f32.gmra.mxu0 %v814
  %v1566 = vpop.f32.mrf.mxu0
  %v1567 = vadd.f32 %v1406, %v1566
  %v1568 = vpop.f32.mrf.mxu0
  %v1569 = vadd.f32 %v1408, %v1568
  %1570 = vmatprep.mubr.f32.mxu0 %v821
  %1571 = vmatmul.mubr.f32.gmra.mxu0 %v820
  %v1572 = vpop.f32.mrf.mxu0
  %v1573 = vadd.f32 %v1412, %v1572
  %v1574 = vpop.f32.mrf.mxu0
  %v1575 = vadd.f32 %v1414, %v1574
  %1576 = vmatprep.mubr.f32.mxu0 %v827
  %1577 = vmatmul.mubr.f32.gmra.mxu0 %v826
  %v1578 = vpop.f32.mrf.mxu0
  %v1579 = vadd.f32 %v1418, %v1578
  %v1580 = vpop.f32.mrf.mxu0
  %v1581 = vadd.f32 %v1420, %v1580
  %1582 = vmatprep.mubr.f32.mxu0 %v833
  %1583 = vmatmul.mubr.f32.gmra.mxu0 %v832
  %v1584 = vpop.f32.mrf.mxu0
  %v1585 = vadd.f32 %v1424, %v1584
  %v1586 = vpop.f32.mrf.mxu0
  %v1587 = vadd.f32 %v1426, %v1586
  %1588 = vmatprep.mubr.f32.mxu0 %v839
  %1589 = vmatmul.mubr.f32.gmra.mxu0 %v838
  %v1590 = vpop.f32.mrf.mxu0
  %v1591 = vadd.f32 %v1430, %v1590
  %v1592 = vpop.f32.mrf.mxu0
  %v1593 = vadd.f32 %v1432, %v1592
  %1594 = vmatprep.mubr.f32.mxu0 %v845
  %1595 = vmatmul.mubr.f32.gmra.mxu0 %v844
  %v1596 = vpop.f32.mrf.mxu0
  %v1597 = vadd.f32 %v1436, %v1596
  %v1598 = vpop.f32.mrf.mxu0
  %v1599 = vadd.f32 %v1438, %v1598
  %1600 = vmatprep.mubr.f32.mxu0 %v851
  %1601 = vmatmul.mubr.f32.gmra.mxu0 %v850
  %v1602 = vpop.f32.mrf.mxu0
  %v1603 = vadd.f32 %v1442, %v1602
  %v1604 = vpop.f32.mrf.mxu0
  %v1605 = vadd.f32 %v1444, %v1604
  %1606 = vmatprep.mubr.f32.mxu0 %v857
  %1607 = vmatmul.mubr.f32.gmra.mxu0 %v856
  %v1608 = vpop.f32.mrf.mxu0
  %v1609 = vadd.f32 %v1448, %v1608
  %v1610 = vpop.f32.mrf.mxu0
  %v1611 = vadd.f32 %v1450, %v1610
  %1612 = vdwg.mxu0
  %1613 = vmatprep.subr.mxu0 %v1177
  %1614 = vmatpush1.msra.mxu0 %v1176
  %1615 = vmatprep.subr.mxu0 %v1173
  %1616 = vmatpush1.msra.mxu0 %v1172
  %1617 = vmatprep.subr.mxu0 %v1169
  %1618 = vmatpush1.msra.mxu0 %v1168
  %1619 = vmatprep.subr.mxu0 %v1165
  %1620 = vmatpush1.msra.mxu0 %v1164
  %1621 = vmatprep.subr.mxu0 %v1161
  %1622 = vmatpush1.msra.mxu0 %v1160
  %1623 = vmatprep.subr.mxu0 %v1157
  %1624 = vmatpush1.msra.mxu0 %v1156
  %1625 = vmatprep.subr.mxu0 %v1153
  %1626 = vmatpush1.msra.mxu0 %v1152
  %1627 = vmatprep.subr.mxu0 %v1149
  %1628 = vmatpush1.msra.mxu0 %v1148
  %1629 = vmatprep.subr.mxu0 %v1145
  %1630 = vmatpush1.msra.mxu0 %v1144
  %1631 = vmatprep.subr.mxu0 %v1141
  %1632 = vmatpush1.msra.mxu0 %v1140
  %1633 = vmatprep.subr.mxu0 %v1137
  %1634 = vmatpush1.msra.mxu0 %v1136
  %1635 = vmatprep.subr.mxu0 %v1133
  %1636 = vmatpush1.msra.mxu0 %v1132
  %1637 = vmatprep.subr.mxu0 %v1129
  %1638 = vmatpush1.msra.mxu0 %v1128
  %1639 = vmatprep.subr.mxu0 %v1125
  %1640 = vmatpush1.msra.mxu0 %v1124
  %1641 = vmatprep.subr.mxu0 %v1121
  %1642 = vmatpush1.msra.mxu0 %v1120
  %1643 = vmatprep.subr.mxu0 %v1117
  %1644 = vmatpush1.msra.mxu0 %v1116
  %1645 = vmatprep.subr.mxu0 0.0
  %1646 = vmatpush2.msra.mxu0 0.0
  %1647 = vmatprep.subr.mxu0 0.0
  %1648 = vmatpush2.msra.mxu0 0.0
  %1649 = vmatprep.subr.mxu0 0.0
  %1650 = vmatpush2.msra.mxu0 0.0
  %1651 = vmatprep.subr.mxu0 0.0
  %1652 = vmatpush2.msra.mxu0 0.0
  %1653 = vmatprep.subr.mxu0 0.0
  %1654 = vmatpush2.msra.mxu0 0.0
  %1655 = vmatprep.subr.mxu0 0.0
  %1656 = vmatpush2.msra.mxu0 0.0
  %1657 = vmatprep.subr.mxu0 %v1217
  %1658 = vmatpush2.msra.mxu0 %v1216
  %1659 = vmatprep.subr.mxu0 %v1213
  %1660 = vmatpush2.msra.mxu0 %v1212
  %1661 = vmatprep.subr.mxu0 %v1209
  %1662 = vmatpush2.msra.mxu0 %v1208
  %1663 = vmatprep.subr.mxu0 %v1205
  %1664 = vmatpush2.msra.mxu0 %v1204
  %1665 = vmatprep.subr.mxu0 %v1201
  %1666 = vmatpush2.msra.mxu0 %v1200
  %1667 = vmatprep.subr.mxu0 %v1197
  %1668 = vmatpush2.msra.mxu0 %v1196
  %1669 = vmatprep.subr.mxu0 %v1193
  %1670 = vmatpush2.msra.mxu0 %v1192
  %1671 = vmatprep.subr.mxu0 %v1189
  %1672 = vmatpush2.msra.mxu0 %v1188
  %1673 = vmatprep.subr.mxu0 %v1185
  %1674 = vmatpush2.msra.mxu0 %v1184
  %1675 = vmatprep.subr.mxu0 %v1181
  %1676 = vmatpush2.msra.mxu0 %v1180
  %1677 = vmatprep.mubr.f32.mxu0 %v1244
  %1678 = vmatmul.mubr.f32.gmra.mxu0 %v768
  %v1679 = vpop.f32.mrf.mxu0
  %v1680 = vadd.f32 %v1519, %v1679
  %v1681 = vpop.f32.mrf.mxu0
  %v1682 = vadd.f32 %v1521, %v1681
  %1683 = vmatprep.mubr.f32.mxu0 %v1247
  %1684 = vmatmul.mubr.f32.gmra.mxu0 %v774
  %v1685 = vpop.f32.mrf.mxu0
  %v1686 = vadd.f32 %v1525, %v1685
  %v1687 = vpop.f32.mrf.mxu0
  %v1688 = vadd.f32 %v1527, %v1687
  %1689 = vmatprep.mubr.f32.mxu0 %v1250
  %1690 = vmatmul.mubr.f32.gmra.mxu0 %v780
  %v1691 = vpop.f32.mrf.mxu0
  %v1692 = vadd.f32 %v1531, %v1691
  %v1693 = vpop.f32.mrf.mxu0
  %v1694 = vadd.f32 %v1533, %v1693
  %1695 = vmatprep.mubr.f32.mxu0 %v1253
  %1696 = vmatmul.mubr.f32.gmra.mxu0 %v786
  %v1697 = vpop.f32.mrf.mxu0
  %v1698 = vadd.f32 %v1537, %v1697
  %v1699 = vpop.f32.mrf.mxu0
  %v1700 = vadd.f32 %v1539, %v1699
  %1701 = vmatprep.mubr.f32.mxu0 %v1256
  %1702 = vmatmul.mubr.f32.gmra.mxu0 %v792
  %v1703 = vpop.f32.mrf.mxu0
  %v1704 = vadd.f32 %v1543, %v1703
  %v1705 = vpop.f32.mrf.mxu0
  %v1706 = vadd.f32 %v1545, %v1705
  %1707 = vmatprep.mubr.f32.mxu0 %v1259
  %1708 = vmatmul.mubr.f32.gmra.mxu0 %v798
  %v1709 = vpop.f32.mrf.mxu0
  %v1710 = vadd.f32 %v1549, %v1709
  %v1711 = vpop.f32.mrf.mxu0
  %v1712 = vadd.f32 %v1551, %v1711
  %1713 = vmatprep.mubr.f32.mxu0 %v1262
  %1714 = vmatmul.mubr.f32.gmra.mxu0 %v804
  %v1715 = vpop.f32.mrf.mxu0
  %v1716 = vadd.f32 %v1555, %v1715
  %v1717 = vpop.f32.mrf.mxu0
  %v1718 = vadd.f32 %v1557, %v1717
  %1719 = vmatprep.mubr.f32.mxu0 %v1265
  %1720 = vmatmul.mubr.f32.gmra.mxu0 %v810
  %v1721 = vpop.f32.mrf.mxu0
  %v1722 = vadd.f32 %v1561, %v1721
  %v1723 = vpop.f32.mrf.mxu0
  %v1724 = vadd.f32 %v1563, %v1723
  %1725 = vmatprep.mubr.f32.mxu0 %v1268
  %1726 = vmatmul.mubr.f32.gmra.mxu0 %v816
  %v1727 = vpop.f32.mrf.mxu0
  %v1728 = vadd.f32 %v1567, %v1727
  %v1729 = vpop.f32.mrf.mxu0
  %v1730 = vadd.f32 %v1569, %v1729
  %1731 = vmatprep.mubr.f32.mxu0 %v1271
  %1732 = vmatmul.mubr.f32.gmra.mxu0 %v822
  %v1733 = vpop.f32.mrf.mxu0
  %v1734 = vadd.f32 %v1573, %v1733
  %v1735 = vpop.f32.mrf.mxu0
  %v1736 = vadd.f32 %v1575, %v1735
  %1737 = vmatprep.mubr.f32.mxu0 %v1274
  %1738 = vmatmul.mubr.f32.gmra.mxu0 %v828
  %v1739 = vpop.f32.mrf.mxu0
  %v1740 = vadd.f32 %v1579, %v1739
  %v1741 = vpop.f32.mrf.mxu0
  %v1742 = vadd.f32 %v1581, %v1741
  %1743 = vmatprep.mubr.f32.mxu0 %v1277
  %1744 = vmatmul.mubr.f32.gmra.mxu0 %v834
  %v1745 = vpop.f32.mrf.mxu0
  %v1746 = vadd.f32 %v1585, %v1745
  %v1747 = vpop.f32.mrf.mxu0
  %v1748 = vadd.f32 %v1587, %v1747
  %1749 = vmatprep.mubr.f32.mxu0 %v1280
  %1750 = vmatmul.mubr.f32.gmra.mxu0 %v840
  %v1751 = vpop.f32.mrf.mxu0
  %v1752 = vadd.f32 %v1591, %v1751
  %v1753 = vpop.f32.mrf.mxu0
  %v1754 = vadd.f32 %v1593, %v1753
  %1755 = vmatprep.mubr.f32.mxu0 %v1283
  %1756 = vmatmul.mubr.f32.gmra.mxu0 %v846
  %v1757 = vpop.f32.mrf.mxu0
  %v1758 = vadd.f32 %v1597, %v1757
  %v1759 = vpop.f32.mrf.mxu0
  %v1760 = vadd.f32 %v1599, %v1759
  %1761 = vmatprep.mubr.f32.mxu0 %v1286
  %1762 = vmatmul.mubr.f32.gmra.mxu0 %v852
  %v1763 = vpop.f32.mrf.mxu0
  %v1764 = vadd.f32 %v1603, %v1763
  %v1765 = vpop.f32.mrf.mxu0
  %v1766 = vadd.f32 %v1605, %v1765
  %1767 = vmatprep.mubr.f32.mxu0 %v1289
  %1768 = vmatmul.mubr.f32.gmra.mxu0 %v858
  %v1769 = vpop.f32.mrf.mxu0
  %v1770 = vadd.f32 %v1609, %v1769
  %v1771 = vpop.f32.mrf.mxu0
  %v1772 = vadd.f32 %v1611, %v1771
  %1773 = vdwg.mxu0
  %1774 = vmatprep.subr.mxu0 %v923
  %1775 = vmatpush1.msra.mxu0 %v922
  %1776 = vmatprep.subr.mxu0 %v919
  %1777 = vmatpush1.msra.mxu0 %v918
  %1778 = vmatprep.subr.mxu0 %v915
  %1779 = vmatpush1.msra.mxu0 %v914
  %1780 = vmatprep.subr.mxu0 %v911
  %1781 = vmatpush1.msra.mxu0 %v910
  %1782 = vmatprep.subr.mxu0 %v907
  %1783 = vmatpush1.msra.mxu0 %v906
  %1784 = vmatprep.subr.mxu0 %v903
  %1785 = vmatpush1.msra.mxu0 %v902
  %1786 = vmatprep.subr.mxu0 %v899
  %1787 = vmatpush1.msra.mxu0 %v898
  %1788 = vmatprep.subr.mxu0 %v895
  %1789 = vmatpush1.msra.mxu0 %v894
  %1790 = vmatprep.subr.mxu0 %v891
  %1791 = vmatpush1.msra.mxu0 %v890
  %1792 = vmatprep.subr.mxu0 %v887
  %1793 = vmatpush1.msra.mxu0 %v886
  %1794 = vmatprep.subr.mxu0 %v883
  %1795 = vmatpush1.msra.mxu0 %v882
  %1796 = vmatprep.subr.mxu0 %v879
  %1797 = vmatpush1.msra.mxu0 %v878
  %1798 = vmatprep.subr.mxu0 %v875
  %1799 = vmatpush1.msra.mxu0 %v874
  %1800 = vmatprep.subr.mxu0 %v871
  %1801 = vmatpush1.msra.mxu0 %v870
  %1802 = vmatprep.subr.mxu0 %v867
  %1803 = vmatpush1.msra.mxu0 %v866
  %1804 = vmatprep.subr.mxu0 %v863
  %1805 = vmatpush1.msra.mxu0 %v862
  %1806 = vmatprep.subr.mxu0 %v987
  %1807 = vmatpush2.msra.mxu0 %v986
  %1808 = vmatprep.subr.mxu0 %v983
  %1809 = vmatpush2.msra.mxu0 %v982
  %1810 = vmatprep.subr.mxu0 %v979
  %1811 = vmatpush2.msra.mxu0 %v978
  %1812 = vmatprep.subr.mxu0 %v975
  %1813 = vmatpush2.msra.mxu0 %v974
  %1814 = vmatprep.subr.mxu0 %v971
  %1815 = vmatpush2.msra.mxu0 %v970
  %1816 = vmatprep.subr.mxu0 %v967
  %1817 = vmatpush2.msra.mxu0 %v966
  %1818 = vmatprep.subr.mxu0 %v963
  %1819 = vmatpush2.msra.mxu0 %v962
  %1820 = vmatprep.subr.mxu0 %v959
  %1821 = vmatpush2.msra.mxu0 %v958
  %1822 = vmatprep.subr.mxu0 %v955
  %1823 = vmatpush2.msra.mxu0 %v954
  %1824 = vmatprep.subr.mxu0 %v951
  %1825 = vmatpush2.msra.mxu0 %v950
  %1826 = vmatprep.subr.mxu0 %v947
  %1827 = vmatpush2.msra.mxu0 %v946
  %1828 = vmatprep.subr.mxu0 %v943
  %1829 = vmatpush2.msra.mxu0 %v942
  %1830 = vmatprep.subr.mxu0 %v939
  %1831 = vmatpush2.msra.mxu0 %v938
  %1832 = vmatprep.subr.mxu0 %v935
  %1833 = vmatpush2.msra.mxu0 %v934
  %1834 = vmatprep.subr.mxu0 %v931
  %1835 = vmatpush2.msra.mxu0 %v930
  %1836 = vmatprep.subr.mxu0 %v927
  %1837 = vmatpush2.msra.mxu0 %v926
  %1838 = vmatprep.mubr.f32.mxu0 %v765
  %1839 = vmatmul.mubr.f32.gmra.mxu0 %v764
  %v1840 = vpop.f32.mrf.mxu0
  %v1841 = vadd.f32 %v1233, %v1840
  %v1842 = vpop.f32.mrf.mxu0
  %v1843 = vadd.f32 %v1237, %v1842
  %1844 = vmatprep.mubr.f32.mxu0 %v771
  %1845 = vmatmul.mubr.f32.gmra.mxu0 %v770
  %v1846 = vpop.f32.mrf.mxu0
  %v1847 = vadd.f32 %v1233, %v1846
  %v1848 = vpop.f32.mrf.mxu0
  %v1849 = vadd.f32 %v1237, %v1848
  %1850 = vmatprep.mubr.f32.mxu0 %v777
  %1851 = vmatmul.mubr.f32.gmra.mxu0 %v776
  %v1852 = vpop.f32.mrf.mxu0
  %v1853 = vadd.f32 %v1233, %v1852
  %v1854 = vpop.f32.mrf.mxu0
  %v1855 = vadd.f32 %v1237, %v1854
  %1856 = vmatprep.mubr.f32.mxu0 %v783
  %1857 = vmatmul.mubr.f32.gmra.mxu0 %v782
  %v1858 = vpop.f32.mrf.mxu0
  %v1859 = vadd.f32 %v1233, %v1858
  %v1860 = vpop.f32.mrf.mxu0
  %v1861 = vadd.f32 %v1237, %v1860
  %1862 = vmatprep.mubr.f32.mxu0 %v789
  %1863 = vmatmul.mubr.f32.gmra.mxu0 %v788
  %v1864 = vpop.f32.mrf.mxu0
  %v1865 = vadd.f32 %v1233, %v1864
  %v1866 = vpop.f32.mrf.mxu0
  %v1867 = vadd.f32 %v1237, %v1866
  %1868 = vmatprep.mubr.f32.mxu0 %v795
  %1869 = vmatmul.mubr.f32.gmra.mxu0 %v794
  %v1870 = vpop.f32.mrf.mxu0
  %v1871 = vadd.f32 %v1233, %v1870
  %v1872 = vpop.f32.mrf.mxu0
  %v1873 = vadd.f32 %v1237, %v1872
  %1874 = vmatprep.mubr.f32.mxu0 %v801
  %1875 = vmatmul.mubr.f32.gmra.mxu0 %v800
  %v1876 = vpop.f32.mrf.mxu0
  %v1877 = vadd.f32 %v1233, %v1876
  %v1878 = vpop.f32.mrf.mxu0
  %v1879 = vadd.f32 %v1237, %v1878
  %1880 = vmatprep.mubr.f32.mxu0 %v807
  %1881 = vmatmul.mubr.f32.gmra.mxu0 %v806
  %v1882 = vpop.f32.mrf.mxu0
  %v1883 = vadd.f32 %v1233, %v1882
  %v1884 = vpop.f32.mrf.mxu0
  %v1885 = vadd.f32 %v1237, %v1884
  %1886 = vmatprep.mubr.f32.mxu0 %v813
  %1887 = vmatmul.mubr.f32.gmra.mxu0 %v812
  %v1888 = vpop.f32.mrf.mxu0
  %v1889 = vadd.f32 %v1233, %v1888
  %v1890 = vpop.f32.mrf.mxu0
  %v1891 = vadd.f32 %v1237, %v1890
  %1892 = vmatprep.mubr.f32.mxu0 %v819
  %1893 = vmatmul.mubr.f32.gmra.mxu0 %v818
  %v1894 = vpop.f32.mrf.mxu0
  %v1895 = vadd.f32 %v1233, %v1894
  %v1896 = vpop.f32.mrf.mxu0
  %v1897 = vadd.f32 %v1237, %v1896
  %1898 = vmatprep.mubr.f32.mxu0 %v825
  %1899 = vmatmul.mubr.f32.gmra.mxu0 %v824
  %v1900 = vpop.f32.mrf.mxu0
  %v1901 = vadd.f32 %v1233, %v1900
  %v1902 = vpop.f32.mrf.mxu0
  %v1903 = vadd.f32 %v1237, %v1902
  %1904 = vmatprep.mubr.f32.mxu0 %v831
  %1905 = vmatmul.mubr.f32.gmra.mxu0 %v830
  %v1906 = vpop.f32.mrf.mxu0
  %v1907 = vadd.f32 %v1233, %v1906
  %v1908 = vpop.f32.mrf.mxu0
  %v1909 = vadd.f32 %v1237, %v1908
  %1910 = vmatprep.mubr.f32.mxu0 %v837
  %1911 = vmatmul.mubr.f32.gmra.mxu0 %v836
  %v1912 = vpop.f32.mrf.mxu0
  %v1913 = vadd.f32 %v1233, %v1912
  %v1914 = vpop.f32.mrf.mxu0
  %v1915 = vadd.f32 %v1237, %v1914
  %1916 = vmatprep.mubr.f32.mxu0 %v843
  %1917 = vmatmul.mubr.f32.gmra.mxu0 %v842
  %v1918 = vpop.f32.mrf.mxu0
  %v1919 = vadd.f32 %v1233, %v1918
  %v1920 = vpop.f32.mrf.mxu0
  %v1921 = vadd.f32 %v1237, %v1920
  %1922 = vmatprep.mubr.f32.mxu0 %v849
  %1923 = vmatmul.mubr.f32.gmra.mxu0 %v848
  %v1924 = vpop.f32.mrf.mxu0
  %v1925 = vadd.f32 %v1233, %v1924
  %v1926 = vpop.f32.mrf.mxu0
  %v1927 = vadd.f32 %v1237, %v1926
  %1928 = vmatprep.mubr.f32.mxu0 %v855
  %1929 = vmatmul.mubr.f32.gmra.mxu0 %v854
  %v1930 = vpop.f32.mrf.mxu0
  %v1931 = vadd.f32 %v1233, %v1930
  %v1932 = vpop.f32.mrf.mxu0
  %v1933 = vadd.f32 %v1237, %v1932
  %1934 = vdwg.mxu0
  %1935 = vmatprep.subr.mxu0 %v1051
  %1936 = vmatpush1.msra.mxu0 %v1050
  %1937 = vmatprep.subr.mxu0 %v1047
  %1938 = vmatpush1.msra.mxu0 %v1046
  %1939 = vmatprep.subr.mxu0 %v1043
  %1940 = vmatpush1.msra.mxu0 %v1042
  %1941 = vmatprep.subr.mxu0 %v1039
  %1942 = vmatpush1.msra.mxu0 %v1038
  %1943 = vmatprep.subr.mxu0 %v1035
  %1944 = vmatpush1.msra.mxu0 %v1034
  %1945 = vmatprep.subr.mxu0 %v1031
  %1946 = vmatpush1.msra.mxu0 %v1030
  %1947 = vmatprep.subr.mxu0 %v1027
  %1948 = vmatpush1.msra.mxu0 %v1026
  %1949 = vmatprep.subr.mxu0 %v1023
  %1950 = vmatpush1.msra.mxu0 %v1022
  %1951 = vmatprep.subr.mxu0 %v1019
  %1952 = vmatpush1.msra.mxu0 %v1018
  %1953 = vmatprep.subr.mxu0 %v1015
  %1954 = vmatpush1.msra.mxu0 %v1014
  %1955 = vmatprep.subr.mxu0 %v1011
  %1956 = vmatpush1.msra.mxu0 %v1010
  %1957 = vmatprep.subr.mxu0 %v1007
  %1958 = vmatpush1.msra.mxu0 %v1006
  %1959 = vmatprep.subr.mxu0 %v1003
  %1960 = vmatpush1.msra.mxu0 %v1002
  %1961 = vmatprep.subr.mxu0 %v999
  %1962 = vmatpush1.msra.mxu0 %v998
  %1963 = vmatprep.subr.mxu0 %v995
  %1964 = vmatpush1.msra.mxu0 %v994
  %1965 = vmatprep.subr.mxu0 %v991
  %1966 = vmatpush1.msra.mxu0 %v990
  %1967 = vmatprep.subr.mxu0 %v1115
  %1968 = vmatpush2.msra.mxu0 %v1114
  %1969 = vmatprep.subr.mxu0 %v1111
  %1970 = vmatpush2.msra.mxu0 %v1110
  %1971 = vmatprep.subr.mxu0 %v1107
  %1972 = vmatpush2.msra.mxu0 %v1106
  %1973 = vmatprep.subr.mxu0 %v1103
  %1974 = vmatpush2.msra.mxu0 %v1102
  %1975 = vmatprep.subr.mxu0 %v1099
  %1976 = vmatpush2.msra.mxu0 %v1098
  %1977 = vmatprep.subr.mxu0 %v1095
  %1978 = vmatpush2.msra.mxu0 %v1094
  %1979 = vmatprep.subr.mxu0 %v1091
  %1980 = vmatpush2.msra.mxu0 %v1090
  %1981 = vmatprep.subr.mxu0 %v1087
  %1982 = vmatpush2.msra.mxu0 %v1086
  %1983 = vmatprep.subr.mxu0 %v1083
  %1984 = vmatpush2.msra.mxu0 %v1082
  %1985 = vmatprep.subr.mxu0 %v1079
  %1986 = vmatpush2.msra.mxu0 %v1078
  %1987 = vmatprep.subr.mxu0 %v1075
  %1988 = vmatpush2.msra.mxu0 %v1074
  %1989 = vmatprep.subr.mxu0 %v1071
  %1990 = vmatpush2.msra.mxu0 %v1070
  %1991 = vmatprep.subr.mxu0 %v1067
  %1992 = vmatpush2.msra.mxu0 %v1066
  %1993 = vmatprep.subr.mxu0 %v1063
  %1994 = vmatpush2.msra.mxu0 %v1062
  %1995 = vmatprep.subr.mxu0 %v1059
  %1996 = vmatpush2.msra.mxu0 %v1058
  %1997 = vmatprep.subr.mxu0 %v1055
  %1998 = vmatpush2.msra.mxu0 %v1054
  %1999 = vmatprep.mubr.f32.mxu0 %v767
  %2000 = vmatmul.mubr.f32.gmra.mxu0 %v766
  %v2001 = vpop.f32.mrf.mxu0
  %v2002 = vadd.f32 %v1841, %v2001
  %v2003 = vpop.f32.mrf.mxu0
  %v2004 = vadd.f32 %v1843, %v2003
  %2005 = vmatprep.mubr.f32.mxu0 %v773
  %2006 = vmatmul.mubr.f32.gmra.mxu0 %v772
  %v2007 = vpop.f32.mrf.mxu0
  %v2008 = vadd.f32 %v1847, %v2007
  %v2009 = vpop.f32.mrf.mxu0
  %v2010 = vadd.f32 %v1849, %v2009
  %2011 = vmatprep.mubr.f32.mxu0 %v779
  %2012 = vmatmul.mubr.f32.gmra.mxu0 %v778
  %v2013 = vpop.f32.mrf.mxu0
  %v2014 = vadd.f32 %v1853, %v2013
  %v2015 = vpop.f32.mrf.mxu0
  %v2016 = vadd.f32 %v1855, %v2015
  %2017 = vmatprep.mubr.f32.mxu0 %v785
  %2018 = vmatmul.mubr.f32.gmra.mxu0 %v784
  %v2019 = vpop.f32.mrf.mxu0
  %v2020 = vadd.f32 %v1859, %v2019
  %v2021 = vpop.f32.mrf.mxu0
  %v2022 = vadd.f32 %v1861, %v2021
  %2023 = vmatprep.mubr.f32.mxu0 %v791
  %2024 = vmatmul.mubr.f32.gmra.mxu0 %v790
  %v2025 = vpop.f32.mrf.mxu0
  %v2026 = vadd.f32 %v1865, %v2025
  %v2027 = vpop.f32.mrf.mxu0
  %v2028 = vadd.f32 %v1867, %v2027
  %2029 = vmatprep.mubr.f32.mxu0 %v797
  %2030 = vmatmul.mubr.f32.gmra.mxu0 %v796
  %v2031 = vpop.f32.mrf.mxu0
  %v2032 = vadd.f32 %v1871, %v2031
  %v2033 = vpop.f32.mrf.mxu0
  %v2034 = vadd.f32 %v1873, %v2033
  %2035 = vmatprep.mubr.f32.mxu0 %v803
  %2036 = vmatmul.mubr.f32.gmra.mxu0 %v802
  %v2037 = vpop.f32.mrf.mxu0
  %v2038 = vadd.f32 %v1877, %v2037
  %v2039 = vpop.f32.mrf.mxu0
  %v2040 = vadd.f32 %v1879, %v2039
  %2041 = vmatprep.mubr.f32.mxu0 %v809
  %2042 = vmatmul.mubr.f32.gmra.mxu0 %v808
  %v2043 = vpop.f32.mrf.mxu0
  %v2044 = vadd.f32 %v1883, %v2043
  %v2045 = vpop.f32.mrf.mxu0
  %v2046 = vadd.f32 %v1885, %v2045
  %2047 = vmatprep.mubr.f32.mxu0 %v815
  %2048 = vmatmul.mubr.f32.gmra.mxu0 %v814
  %v2049 = vpop.f32.mrf.mxu0
  %v2050 = vadd.f32 %v1889, %v2049
  %v2051 = vpop.f32.mrf.mxu0
  %v2052 = vadd.f32 %v1891, %v2051
  %2053 = vmatprep.mubr.f32.mxu0 %v821
  %2054 = vmatmul.mubr.f32.gmra.mxu0 %v820
  %v2055 = vpop.f32.mrf.mxu0
  %v2056 = vadd.f32 %v1895, %v2055
  %v2057 = vpop.f32.mrf.mxu0
  %v2058 = vadd.f32 %v1897, %v2057
  %2059 = vmatprep.mubr.f32.mxu0 %v827
  %2060 = vmatmul.mubr.f32.gmra.mxu0 %v826
  %v2061 = vpop.f32.mrf.mxu0
  %v2062 = vadd.f32 %v1901, %v2061
  %v2063 = vpop.f32.mrf.mxu0
  %v2064 = vadd.f32 %v1903, %v2063
  %2065 = vmatprep.mubr.f32.mxu0 %v833
  %2066 = vmatmul.mubr.f32.gmra.mxu0 %v832
  %v2067 = vpop.f32.mrf.mxu0
  %v2068 = vadd.f32 %v1907, %v2067
  %v2069 = vpop.f32.mrf.mxu0
  %v2070 = vadd.f32 %v1909, %v2069
  %2071 = vmatprep.mubr.f32.mxu0 %v839
  %2072 = vmatmul.mubr.f32.gmra.mxu0 %v838
  %v2073 = vpop.f32.mrf.mxu0
  %v2074 = vadd.f32 %v1913, %v2073
  %v2075 = vpop.f32.mrf.mxu0
  %v2076 = vadd.f32 %v1915, %v2075
  %2077 = vmatprep.mubr.f32.mxu0 %v845
  %2078 = vmatmul.mubr.f32.gmra.mxu0 %v844
  %v2079 = vpop.f32.mrf.mxu0
  %v2080 = vadd.f32 %v1919, %v2079
  %v2081 = vpop.f32.mrf.mxu0
  %v2082 = vadd.f32 %v1921, %v2081
  %2083 = vmatprep.mubr.f32.mxu0 %v851
  %2084 = vmatmul.mubr.f32.gmra.mxu0 %v850
  %v2085 = vpop.f32.mrf.mxu0
  %v2086 = vadd.f32 %v1925, %v2085
  %v2087 = vpop.f32.mrf.mxu0
  %v2088 = vadd.f32 %v1927, %v2087
  %2089 = vmatprep.mubr.f32.mxu0 %v857
  %2090 = vmatmul.mubr.f32.gmra.mxu0 %v856
  %v2091 = vpop.f32.mrf.mxu0
  %v2092 = vadd.f32 %v1931, %v2091
  %v2093 = vpop.f32.mrf.mxu0
  %v2094 = vadd.f32 %v1933, %v2093
  %2095 = vdwg.mxu0
  %2096 = vmatprep.subr.mxu0 %v1179
  %2097 = vmatpush1.msra.mxu0 %v1178
  %2098 = vmatprep.subr.mxu0 %v1175
  %2099 = vmatpush1.msra.mxu0 %v1174
  %2100 = vmatprep.subr.mxu0 %v1171
  %2101 = vmatpush1.msra.mxu0 %v1170
  %2102 = vmatprep.subr.mxu0 %v1167
  %2103 = vmatpush1.msra.mxu0 %v1166
  %2104 = vmatprep.subr.mxu0 %v1163
  %2105 = vmatpush1.msra.mxu0 %v1162
  %2106 = vmatprep.subr.mxu0 %v1159
  %2107 = vmatpush1.msra.mxu0 %v1158
  %2108 = vmatprep.subr.mxu0 %v1155
  %2109 = vmatpush1.msra.mxu0 %v1154
  %2110 = vmatprep.subr.mxu0 %v1151
  %2111 = vmatpush1.msra.mxu0 %v1150
  %2112 = vmatprep.subr.mxu0 %v1147
  %2113 = vmatpush1.msra.mxu0 %v1146
  %2114 = vmatprep.subr.mxu0 %v1143
  %2115 = vmatpush1.msra.mxu0 %v1142
  %2116 = vmatprep.subr.mxu0 %v1139
  %2117 = vmatpush1.msra.mxu0 %v1138
  %2118 = vmatprep.subr.mxu0 %v1135
  %2119 = vmatpush1.msra.mxu0 %v1134
  %2120 = vmatprep.subr.mxu0 %v1131
  %2121 = vmatpush1.msra.mxu0 %v1130
  %2122 = vmatprep.subr.mxu0 %v1127
  %2123 = vmatpush1.msra.mxu0 %v1126
  %2124 = vmatprep.subr.mxu0 %v1123
  %2125 = vmatpush1.msra.mxu0 %v1122
  %2126 = vmatprep.subr.mxu0 %v1119
  %2127 = vmatpush1.msra.mxu0 %v1118
  %2128 = vmatprep.subr.mxu0 0.0
  %2129 = vmatpush2.msra.mxu0 0.0
  %2130 = vmatprep.subr.mxu0 0.0
  %2131 = vmatpush2.msra.mxu0 0.0
  %2132 = vmatprep.subr.mxu0 0.0
  %2133 = vmatpush2.msra.mxu0 0.0
  %2134 = vmatprep.subr.mxu0 0.0
  %2135 = vmatpush2.msra.mxu0 0.0
  %2136 = vmatprep.subr.mxu0 0.0
  %2137 = vmatpush2.msra.mxu0 0.0
  %2138 = vmatprep.subr.mxu0 0.0
  %2139 = vmatpush2.msra.mxu0 0.0
  %2140 = vmatprep.subr.mxu0 %v1219
  %2141 = vmatpush2.msra.mxu0 %v1218
  %2142 = vmatprep.subr.mxu0 %v1215
  %2143 = vmatpush2.msra.mxu0 %v1214
  %2144 = vmatprep.subr.mxu0 %v1211
  %2145 = vmatpush2.msra.mxu0 %v1210
  %2146 = vmatprep.subr.mxu0 %v1207
  %2147 = vmatpush2.msra.mxu0 %v1206
  %2148 = vmatprep.subr.mxu0 %v1203
  %2149 = vmatpush2.msra.mxu0 %v1202
  %2150 = vmatprep.subr.mxu0 %v1199
  %2151 = vmatpush2.msra.mxu0 %v1198
  %2152 = vmatprep.subr.mxu0 %v1195
  %2153 = vmatpush2.msra.mxu0 %v1194
  %2154 = vmatprep.subr.mxu0 %v1191
  %2155 = vmatpush2.msra.mxu0 %v1190
  %2156 = vmatprep.subr.mxu0 %v1187
  %2157 = vmatpush2.msra.mxu0 %v1186
  %2158 = vmatprep.subr.mxu0 %v1183
  %2159 = vmatpush2.msra.mxu0 %v1182
  %2160 = vmatprep.mubr.f32.mxu0 %v1244
  %2161 = vmatmul.mubr.f32.gmra.mxu0 %v768
  %v2162 = vpop.f32.mrf.mxu0
  %v2163 = vadd.f32 %v2002, %v2162
  %v2164 = vpop.f32.mrf.mxu0
  %v2165 = vadd.f32 %v2004, %v2164
  %2166 = vmatprep.mubr.f32.mxu0 %v1247
  %2167 = vmatmul.mubr.f32.gmra.mxu0 %v774
  %v2168 = vpop.f32.mrf.mxu0
  %v2169 = vadd.f32 %v2008, %v2168
  %v2170 = vpop.f32.mrf.mxu0
  %v2171 = vadd.f32 %v2010, %v2170
  %2172 = vmatprep.mubr.f32.mxu0 %v1250
  %2173 = vmatmul.mubr.f32.gmra.mxu0 %v780
  %v2174 = vpop.f32.mrf.mxu0
  %v2175 = vadd.f32 %v2014, %v2174
  %v2176 = vpop.f32.mrf.mxu0
  %v2177 = vadd.f32 %v2016, %v2176
  %2178 = vmatprep.mubr.f32.mxu0 %v1253
  %2179 = vmatmul.mubr.f32.gmra.mxu0 %v786
  %v2180 = vpop.f32.mrf.mxu0
  %v2181 = vadd.f32 %v2020, %v2180
  %v2182 = vpop.f32.mrf.mxu0
  %v2183 = vadd.f32 %v2022, %v2182
  %2184 = vmatprep.mubr.f32.mxu0 %v1256
  %2185 = vmatmul.mubr.f32.gmra.mxu0 %v792
  %v2186 = vpop.f32.mrf.mxu0
  %v2187 = vadd.f32 %v2026, %v2186
  %v2188 = vpop.f32.mrf.mxu0
  %v2189 = vadd.f32 %v2028, %v2188
  %2190 = vmatprep.mubr.f32.mxu0 %v1259
  %2191 = vmatmul.mubr.f32.gmra.mxu0 %v798
  %v2192 = vpop.f32.mrf.mxu0
  %v2193 = vadd.f32 %v2032, %v2192
  %v2194 = vpop.f32.mrf.mxu0
  %v2195 = vadd.f32 %v2034, %v2194
  %2196 = vmatprep.mubr.f32.mxu0 %v1262
  %2197 = vmatmul.mubr.f32.gmra.mxu0 %v804
  %v2198 = vpop.f32.mrf.mxu0
  %v2199 = vadd.f32 %v2038, %v2198
  %v2200 = vpop.f32.mrf.mxu0
  %v2201 = vadd.f32 %v2040, %v2200
  %2202 = vmatprep.mubr.f32.mxu0 %v1265
  %2203 = vmatmul.mubr.f32.gmra.mxu0 %v810
  %v2204 = vpop.f32.mrf.mxu0
  %v2205 = vadd.f32 %v2044, %v2204
  %v2206 = vpop.f32.mrf.mxu0
  %v2207 = vadd.f32 %v2046, %v2206
  %2208 = vmatprep.mubr.f32.mxu0 %v1268
  %2209 = vmatmul.mubr.f32.gmra.mxu0 %v816
  %v2210 = vpop.f32.mrf.mxu0
  %v2211 = vadd.f32 %v2050, %v2210
  %v2212 = vpop.f32.mrf.mxu0
  %v2213 = vadd.f32 %v2052, %v2212
  %2214 = vmatprep.mubr.f32.mxu0 %v1271
  %2215 = vmatmul.mubr.f32.gmra.mxu0 %v822
  %v2216 = vpop.f32.mrf.mxu0
  %v2217 = vadd.f32 %v2056, %v2216
  %v2218 = vpop.f32.mrf.mxu0
  %v2219 = vadd.f32 %v2058, %v2218
  %2220 = vmatprep.mubr.f32.mxu0 %v1274
  %2221 = vmatmul.mubr.f32.gmra.mxu0 %v828
  %v2222 = vpop.f32.mrf.mxu0
  %v2223 = vadd.f32 %v2062, %v2222
  %v2224 = vpop.f32.mrf.mxu0
  %v2225 = vadd.f32 %v2064, %v2224
  %2226 = vmatprep.mubr.f32.mxu0 %v1277
  %2227 = vmatmul.mubr.f32.gmra.mxu0 %v834
  %v2228 = vpop.f32.mrf.mxu0
  %v2229 = vadd.f32 %v2068, %v2228
  %v2230 = vpop.f32.mrf.mxu0
  %v2231 = vadd.f32 %v2070, %v2230
  %2232 = vmatprep.mubr.f32.mxu0 %v1280
  %2233 = vmatmul.mubr.f32.gmra.mxu0 %v840
  %v2234 = vpop.f32.mrf.mxu0
  %v2235 = vadd.f32 %v2074, %v2234
  %v2236 = vpop.f32.mrf.mxu0
  %v2237 = vadd.f32 %v2076, %v2236
  %2238 = vmatprep.mubr.f32.mxu0 %v1283
  %2239 = vmatmul.mubr.f32.gmra.mxu0 %v846
  %v2240 = vpop.f32.mrf.mxu0
  %v2241 = vadd.f32 %v2080, %v2240
  %v2242 = vpop.f32.mrf.mxu0
  %v2243 = vadd.f32 %v2082, %v2242
  %2244 = vmatprep.mubr.f32.mxu0 %v1286
  %2245 = vmatmul.mubr.f32.gmra.mxu0 %v852
  %v2246 = vpop.f32.mrf.mxu0
  %v2247 = vadd.f32 %v2086, %v2246
  %v2248 = vpop.f32.mrf.mxu0
  %v2249 = vadd.f32 %v2088, %v2248
  %2250 = vmatprep.mubr.f32.mxu0 %v1289
  %2251 = vmatmul.mubr.f32.gmra.mxu0 %v858
  %v2252 = vpop.f32.mrf.mxu0
  %v2253 = vadd.f32 %v2092, %v2252
  %v2254 = vpop.f32.mrf.mxu0
  %v2255 = vadd.f32 %v2094, %v2254
  %2256 = vdwg.mxu0
  %v2257 = vand.u32 2147483647, %v2163
  %v2258 = vand.u32 2147483647, %v2169
  %v2259 = vand.u32 2147483647, %v2175
  %v2260 = vand.u32 2147483647, %v2181
  %v2261 = vand.u32 2147483647, %v2187
  %v2262 = vand.u32 2147483647, %v2193
  %v2263 = vand.u32 2147483647, %v2199
  %v2264 = vand.u32 2147483647, %v2205
  %v2265 = vand.u32 2147483647, %v2211
  %v2266 = vand.u32 2147483647, %v2217
  %v2267 = vand.u32 2147483647, %v2223
  %v2268 = vand.u32 2147483647, %v2229
  %v2269 = vand.u32 2147483647, %v2235
  %v2270 = vand.u32 2147483647, %v2241
  %v2271 = vand.u32 2147483647, %v2247
  %v2272 = vand.u32 2147483647, %v2253
  %v2273 = vand.u32 2147483647, %v2165
  %v2274 = vand.u32 2147483647, %v2171
  %v2275 = vand.u32 2147483647, %v2177
  %v2276 = vand.u32 2147483647, %v2183
  %v2277 = vand.u32 2147483647, %v2189
  %v2278 = vand.u32 2147483647, %v2195
  %v2279 = vand.u32 2147483647, %v2201
  %v2280 = vand.u32 2147483647, %v2207
  %v2281 = vand.u32 2147483647, %v2213
  %v2282 = vand.u32 2147483647, %v2219
  %v2283 = vand.u32 2147483647, %v2225
  %v2284 = vand.u32 2147483647, %v2231
  %v2285 = vand.u32 2147483647, %v2237
  %v2286 = vand.u32 2147483647, %v2243
  %v2287 = vand.u32 2147483647, %v2249
  %v2288 = vand.u32 2147483647, %v2255
  %2305 = vrot.lane.b32.xlu0 %v1682, 32
  %v2306 = vpop.permute.xlu0 %2305
  %2307 = vrot.lane.b32.xlu0 %v1688, 32
  %v2308 = vpop.permute.xlu0 %2307
  %2309 = vrot.lane.b32.xlu0 %v1694, 32
  %v2310 = vpop.permute.xlu0 %2309
  %2311 = vrot.lane.b32.xlu0 %v1700, 32
  %v2312 = vpop.permute.xlu0 %2311
  %2313 = vrot.lane.b32.xlu0 %v1706, 32
  %v2314 = vpop.permute.xlu0 %2313
  %2315 = vrot.lane.b32.xlu0 %v1712, 32
  %v2316 = vpop.permute.xlu0 %2315
  %2317 = vrot.lane.b32.xlu0 %v1718, 32
  %v2318 = vpop.permute.xlu0 %2317
  %2319 = vrot.lane.b32.xlu0 %v1724, 32
  %v2320 = vpop.permute.xlu0 %2319
  %2321 = vrot.lane.b32.xlu0 %v1730, 32
  %v2322 = vpop.permute.xlu0 %2321
  %2323 = vrot.lane.b32.xlu0 %v1736, 32
  %v2324 = vpop.permute.xlu0 %2323
  %2325 = vrot.lane.b32.xlu0 %v1742, 32
  %v2326 = vpop.permute.xlu0 %2325
  %2327 = vrot.lane.b32.xlu0 %v1748, 32
  %v2328 = vpop.permute.xlu0 %2327
  %2329 = vrot.lane.b32.xlu0 %v1754, 32
  %v2330 = vpop.permute.xlu0 %2329
  %2331 = vrot.lane.b32.xlu0 %v1760, 32
  %v2332 = vpop.permute.xlu0 %2331
  %2333 = vrot.lane.b32.xlu0 %v1766, 32
  %v2334 = vpop.permute.xlu0 %2333
  %2335 = vrot.lane.b32.xlu0 %v1772, 32
  %v2336 = vpop.permute.xlu0 %2335
  %2353 = vrot.lane.b32.xlu0 %v1682, 64
  %v2354 = vpop.permute.xlu0 %2353
  %2355 = vrot.lane.b32.xlu0 %v1688, 64
  %v2356 = vpop.permute.xlu0 %2355
  %2357 = vrot.lane.b32.xlu0 %v1694, 64
  %v2358 = vpop.permute.xlu0 %2357
  %2359 = vrot.lane.b32.xlu0 %v1700, 64
  %v2360 = vpop.permute.xlu0 %2359
  %2361 = vrot.lane.b32.xlu0 %v1706, 64
  %v2362 = vpop.permute.xlu0 %2361
  %2363 = vrot.lane.b32.xlu0 %v1712, 64
  %v2364 = vpop.permute.xlu0 %2363
  %2365 = vrot.lane.b32.xlu0 %v1718, 64
  %v2366 = vpop.permute.xlu0 %2365
  %2367 = vrot.lane.b32.xlu0 %v1724, 64
  %v2368 = vpop.permute.xlu0 %2367
  %2369 = vrot.lane.b32.xlu0 %v1730, 64
  %v2370 = vpop.permute.xlu0 %2369
  %2371 = vrot.lane.b32.xlu0 %v1736, 64
  %v2372 = vpop.permute.xlu0 %2371
  %2373 = vrot.lane.b32.xlu0 %v1742, 64
  %v2374 = vpop.permute.xlu0 %2373
  %2375 = vrot.lane.b32.xlu0 %v1748, 64
  %v2376 = vpop.permute.xlu0 %2375
  %2377 = vrot.lane.b32.xlu0 %v1754, 64
  %v2378 = vpop.permute.xlu0 %2377
  %2379 = vrot.lane.b32.xlu0 %v1760, 64
  %v2380 = vpop.permute.xlu0 %2379
  %2381 = vrot.lane.b32.xlu0 %v1766, 64
  %v2382 = vpop.permute.xlu0 %2381
  %2383 = vrot.lane.b32.xlu0 %v1772, 64
  %v2384 = vpop.permute.xlu0 %2383
  %2401 = vrot.lane.b32.xlu0 %v1682, 96
  %v2402 = vpop.permute.xlu0 %2401
  %2403 = vrot.lane.b32.xlu0 %v1688, 96
  %v2404 = vpop.permute.xlu0 %2403
  %2405 = vrot.lane.b32.xlu0 %v1694, 96
  %v2406 = vpop.permute.xlu0 %2405
  %2407 = vrot.lane.b32.xlu0 %v1700, 96
  %v2408 = vpop.permute.xlu0 %2407
  %2409 = vrot.lane.b32.xlu0 %v1706, 96
  %v2410 = vpop.permute.xlu0 %2409
  %2411 = vrot.lane.b32.xlu0 %v1712, 96
  %v2412 = vpop.permute.xlu0 %2411
  %2413 = vrot.lane.b32.xlu0 %v1718, 96
  %v2414 = vpop.permute.xlu0 %2413
  %2415 = vrot.lane.b32.xlu0 %v1724, 96
  %v2416 = vpop.permute.xlu0 %2415
  %2417 = vrot.lane.b32.xlu0 %v1730, 96
  %v2418 = vpop.permute.xlu0 %2417
  %2419 = vrot.lane.b32.xlu0 %v1736, 96
  %v2420 = vpop.permute.xlu0 %2419
  %2421 = vrot.lane.b32.xlu0 %v1742, 96
  %v2422 = vpop.permute.xlu0 %2421
  %2423 = vrot.lane.b32.xlu0 %v1748, 96
  %v2424 = vpop.permute.xlu0 %2423
  %2425 = vrot.lane.b32.xlu0 %v1754, 96
  %v2426 = vpop.permute.xlu0 %2425
  %2427 = vrot.lane.b32.xlu0 %v1760, 96
  %v2428 = vpop.permute.xlu0 %2427
  %2429 = vrot.lane.b32.xlu0 %v1766, 96
  %v2430 = vpop.permute.xlu0 %2429
  %2431 = vrot.lane.b32.xlu0 %v1772, 96
  %v2432 = vpop.permute.xlu0 %2431
  %vm2449 = vcmask 261120
  %v2450 = vsel %vm2449, %v1682, %v2306
  %v2451 = vsel %vm2449, %v1688, %v2308
  %v2452 = vsel %vm2449, %v1694, %v2310
  %v2453 = vsel %vm2449, %v1700, %v2312
  %v2454 = vsel %vm2449, %v1706, %v2314
  %v2455 = vsel %vm2449, %v1712, %v2316
  %v2456 = vsel %vm2449, %v1718, %v2318
  %v2457 = vsel %vm2449, %v1724, %v2320
  %v2458 = vsel %vm2449, %v1730, %v2322
  %v2459 = vsel %vm2449, %v1736, %v2324
  %v2460 = vsel %vm2449, %v1742, %v2326
  %v2461 = vsel %vm2449, %v1748, %v2328
  %v2462 = vsel %vm2449, %v1754, %v2330
  %v2463 = vsel %vm2449, %v1760, %v2332
  %v2464 = vsel %vm2449, %v1766, %v2334
  %v2465 = vsel %vm2449, %v1772, %v2336
  %vm2466 = vcmask 523264
  %v2467 = vsel %vm2466, %v2450, %v2354
  %v2468 = vsel %vm2466, %v2451, %v2356
  %v2469 = vsel %vm2466, %v2452, %v2358
  %v2470 = vsel %vm2466, %v2453, %v2360
  %v2471 = vsel %vm2466, %v2454, %v2362
  %v2472 = vsel %vm2466, %v2455, %v2364
  %v2473 = vsel %vm2466, %v2456, %v2366
  %v2474 = vsel %vm2466, %v2457, %v2368
  %v2475 = vsel %vm2466, %v2458, %v2370
  %v2476 = vsel %vm2466, %v2459, %v2372
  %v2477 = vsel %vm2466, %v2460, %v2374
  %v2478 = vsel %vm2466, %v2461, %v2376
  %v2479 = vsel %vm2466, %v2462, %v2378
  %v2480 = vsel %vm2466, %v2463, %v2380
  %v2481 = vsel %vm2466, %v2464, %v2382
  %v2482 = vsel %vm2466, %v2465, %v2384
  %vm2483 = vcmask 785408
  %v2484 = vsel %vm2483, %v2467, %v2402
  %v2485 = vsel %vm2483, %v2468, %v2404
  %v2486 = vsel %vm2483, %v2469, %v2406
  %v2487 = vsel %vm2483, %v2470, %v2408
  %v2488 = vsel %vm2483, %v2471, %v2410
  %v2489 = vsel %vm2483, %v2472, %v2412
  %v2490 = vsel %vm2483, %v2473, %v2414
  %v2491 = vsel %vm2483, %v2474, %v2416
  %v2492 = vsel %vm2483, %v2475, %v2418
  %v2493 = vsel %vm2483, %v2476, %v2420
  %v2494 = vsel %vm2483, %v2477, %v2422
  %v2495 = vsel %vm2483, %v2478, %v2424
  %v2496 = vsel %vm2483, %v2479, %v2426
  %v2497 = vsel %vm2483, %v2480, %v2428
  %v2498 = vsel %vm2483, %v2481, %v2430
  %v2499 = vsel %vm2483, %v2482, %v2432
  %v2500 = vsel %vm2449, %v2402, %v1682
  %v2501 = vsel %vm2449, %v2404, %v1688
  %v2502 = vsel %vm2449, %v2406, %v1694
  %v2503 = vsel %vm2449, %v2408, %v1700
  %v2504 = vsel %vm2449, %v2410, %v1706
  %v2505 = vsel %vm2449, %v2412, %v1712
  %v2506 = vsel %vm2449, %v2414, %v1718
  %v2507 = vsel %vm2449, %v2416, %v1724
  %v2508 = vsel %vm2449, %v2418, %v1730
  %v2509 = vsel %vm2449, %v2420, %v1736
  %v2510 = vsel %vm2449, %v2422, %v1742
  %v2511 = vsel %vm2449, %v2424, %v1748
  %v2512 = vsel %vm2449, %v2426, %v1754
  %v2513 = vsel %vm2449, %v2428, %v1760
  %v2514 = vsel %vm2449, %v2430, %v1766
  %v2515 = vsel %vm2449, %v2432, %v1772
  %v2516 = vsel %vm2466, %v2500, %v2306
  %v2517 = vsel %vm2466, %v2501, %v2308
  %v2518 = vsel %vm2466, %v2502, %v2310
  %v2519 = vsel %vm2466, %v2503, %v2312
  %v2520 = vsel %vm2466, %v2504, %v2314
  %v2521 = vsel %vm2466, %v2505, %v2316
  %v2522 = vsel %vm2466, %v2506, %v2318
  %v2523 = vsel %vm2466, %v2507, %v2320
  %v2524 = vsel %vm2466, %v2508, %v2322
  %v2525 = vsel %vm2466, %v2509, %v2324
  %v2526 = vsel %vm2466, %v2510, %v2326
  %v2527 = vsel %vm2466, %v2511, %v2328
  %v2528 = vsel %vm2466, %v2512, %v2330
  %v2529 = vsel %vm2466, %v2513, %v2332
  %v2530 = vsel %vm2466, %v2514, %v2334
  %v2531 = vsel %vm2466, %v2515, %v2336
  %v2532 = vsel %vm2483, %v2516, %v2354
  %v2533 = vsel %vm2483, %v2517, %v2356
  %v2534 = vsel %vm2483, %v2518, %v2358
  %v2535 = vsel %vm2483, %v2519, %v2360
  %v2536 = vsel %vm2483, %v2520, %v2362
  %v2537 = vsel %vm2483, %v2521, %v2364
  %v2538 = vsel %vm2483, %v2522, %v2366
  %v2539 = vsel %vm2483, %v2523, %v2368
  %v2540 = vsel %vm2483, %v2524, %v2370
  %v2541 = vsel %vm2483, %v2525, %v2372
  %v2542 = vsel %vm2483, %v2526, %v2374
  %v2543 = vsel %vm2483, %v2527, %v2376
  %v2544 = vsel %vm2483, %v2528, %v2378
  %v2545 = vsel %vm2483, %v2529, %v2380
  %v2546 = vsel %vm2483, %v2530, %v2382
  %v2547 = vsel %vm2483, %v2531, %v2384
  %v2548 = vsel %vm2449, %v2354, %v2402
  %v2549 = vsel %vm2449, %v2356, %v2404
  %v2550 = vsel %vm2449, %v2358, %v2406
  %v2551 = vsel %vm2449, %v2360, %v2408
  %v2552 = vsel %vm2449, %v2362, %v2410
  %v2553 = vsel %vm2449, %v2364, %v2412
  %v2554 = vsel %vm2449, %v2366, %v2414
  %v2555 = vsel %vm2449, %v2368, %v2416
  %v2556 = vsel %vm2449, %v2370, %v2418
  %v2557 = vsel %vm2449, %v2372, %v2420
  %v2558 = vsel %vm2449, %v2374, %v2422
  %v2559 = vsel %vm2449, %v2376, %v2424
  %v2560 = vsel %vm2449, %v2378, %v2426
  %v2561 = vsel %vm2449, %v2380, %v2428
  %v2562 = vsel %vm2449, %v2382, %v2430
  %v2563 = vsel %vm2449, %v2384, %v2432
  %v2564 = vsel %vm2466, %v2548, %v1682
  %v2565 = vsel %vm2466, %v2549, %v1688
  %v2566 = vsel %vm2466, %v2550, %v1694
  %v2567 = vsel %vm2466, %v2551, %v1700
  %v2568 = vsel %vm2466, %v2552, %v1706
  %v2569 = vsel %vm2466, %v2553, %v1712
  %v2570 = vsel %vm2466, %v2554, %v1718
  %v2571 = vsel %vm2466, %v2555, %v1724
  %v2572 = vsel %vm2466, %v2556, %v1730
  %v2573 = vsel %vm2466, %v2557, %v1736
  %v2574 = vsel %vm2466, %v2558, %v1742
  %v2575 = vsel %vm2466, %v2559, %v1748
  %v2576 = vsel %vm2466, %v2560, %v1754
  %v2577 = vsel %vm2466, %v2561, %v1760
  %v2578 = vsel %vm2466, %v2562, %v1766
  %v2579 = vsel %vm2466, %v2563, %v1772
  %v2580 = vsel %vm2483, %v2564, %v2306
  %v2581 = vsel %vm2483, %v2565, %v2308
  %v2582 = vsel %vm2483, %v2566, %v2310
  %v2583 = vsel %vm2483, %v2567, %v2312
  %v2584 = vsel %vm2483, %v2568, %v2314
  %v2585 = vsel %vm2483, %v2569, %v2316
  %v2586 = vsel %vm2483, %v2570, %v2318
  %v2587 = vsel %vm2483, %v2571, %v2320
  %v2588 = vsel %vm2483, %v2572, %v2322
  %v2589 = vsel %vm2483, %v2573, %v2324
  %v2590 = vsel %vm2483, %v2574, %v2326
  %v2591 = vsel %vm2483, %v2575, %v2328
  %v2592 = vsel %vm2483, %v2576, %v2330
  %v2593 = vsel %vm2483, %v2577, %v2332
  %v2594 = vsel %vm2483, %v2578, %v2334
  %v2595 = vsel %vm2483, %v2579, %v2336
  %v2596 = vsel %vm2449, %v2306, %v2354
  %v2597 = vsel %vm2449, %v2308, %v2356
  %v2598 = vsel %vm2449, %v2310, %v2358
  %v2599 = vsel %vm2449, %v2312, %v2360
  %v2600 = vsel %vm2449, %v2314, %v2362
  %v2601 = vsel %vm2449, %v2316, %v2364
  %v2602 = vsel %vm2449, %v2318, %v2366
  %v2603 = vsel %vm2449, %v2320, %v2368
  %v2604 = vsel %vm2449, %v2322, %v2370
  %v2605 = vsel %vm2449, %v2324, %v2372
  %v2606 = vsel %vm2449, %v2326, %v2374
  %v2607 = vsel %vm2449, %v2328, %v2376
  %v2608 = vsel %vm2449, %v2330, %v2378
  %v2609 = vsel %vm2449, %v2332, %v2380
  %v2610 = vsel %vm2449, %v2334, %v2382
  %v2611 = vsel %vm2449, %v2336, %v2384
  %v2612 = vsel %vm2466, %v2596, %v2402
  %v2613 = vsel %vm2466, %v2597, %v2404
  %v2614 = vsel %vm2466, %v2598, %v2406
  %v2615 = vsel %vm2466, %v2599, %v2408
  %v2616 = vsel %vm2466, %v2600, %v2410
  %v2617 = vsel %vm2466, %v2601, %v2412
  %v2618 = vsel %vm2466, %v2602, %v2414
  %v2619 = vsel %vm2466, %v2603, %v2416
  %v2620 = vsel %vm2466, %v2604, %v2418
  %v2621 = vsel %vm2466, %v2605, %v2420
  %v2622 = vsel %vm2466, %v2606, %v2422
  %v2623 = vsel %vm2466, %v2607, %v2424
  %v2624 = vsel %vm2466, %v2608, %v2426
  %v2625 = vsel %vm2466, %v2609, %v2428
  %v2626 = vsel %vm2466, %v2610, %v2430
  %v2627 = vsel %vm2466, %v2611, %v2432
  %v2628 = vsel %vm2483, %v2612, %v1682
  %v2629 = vsel %vm2483, %v2613, %v1688
  %v2630 = vsel %vm2483, %v2614, %v1694
  %v2631 = vsel %vm2483, %v2615, %v1700
  %v2632 = vsel %vm2483, %v2616, %v1706
  %v2633 = vsel %vm2483, %v2617, %v1712
  %v2634 = vsel %vm2483, %v2618, %v1718
  %v2635 = vsel %vm2483, %v2619, %v1724
  %v2636 = vsel %vm2483, %v2620, %v1730
  %v2637 = vsel %vm2483, %v2621, %v1736
  %v2638 = vsel %vm2483, %v2622, %v1742
  %v2639 = vsel %vm2483, %v2623, %v1748
  %v2640 = vsel %vm2483, %v2624, %v1754
  %v2641 = vsel %vm2483, %v2625, %v1760
  %v2642 = vsel %vm2483, %v2626, %v1766
  %v2643 = vsel %vm2483, %v2627, %v1772
  %v2644 = vmul.f32 %v1680, %v2484
  %v2645 = vmul.f32 %v1680, %v2532
  %v2646 = vmul.f32 %v1680, %v2580
  %v2647 = vmul.f32 %v1680, %v2628
  %v2648 = vmul.f32 %v1686, %v2485
  %v2649 = vmul.f32 %v1686, %v2533
  %v2650 = vmul.f32 %v1686, %v2581
  %v2651 = vmul.f32 %v1686, %v2629
  %v2652 = vmul.f32 %v1692, %v2486
  %v2653 = vmul.f32 %v1692, %v2534
  %v2654 = vmul.f32 %v1692, %v2582
  %v2655 = vmul.f32 %v1692, %v2630
  %v2656 = vmul.f32 %v1698, %v2487
  %v2657 = vmul.f32 %v1698, %v2535
  %v2658 = vmul.f32 %v1698, %v2583
  %v2659 = vmul.f32 %v1698, %v2631
  %v2660 = vmul.f32 %v1704, %v2488
  %v2661 = vmul.f32 %v1704, %v2536
  %v2662 = vmul.f32 %v1704, %v2584
  %v2663 = vmul.f32 %v1704, %v2632
  %v2664 = vmul.f32 %v1710, %v2489
  %v2665 = vmul.f32 %v1710, %v2537
  %v2666 = vmul.f32 %v1710, %v2585
  %v2667 = vmul.f32 %v1710, %v2633
  %v2668 = vmul.f32 %v1716, %v2490
  %v2669 = vmul.f32 %v1716, %v2538
  %v2670 = vmul.f32 %v1716, %v2586
  %v2671 = vmul.f32 %v1716, %v2634
  %v2672 = vmul.f32 %v1722, %v2491
  %v2673 = vmul.f32 %v1722, %v2539
  %v2674 = vmul.f32 %v1722, %v2587
  %v2675 = vmul.f32 %v1722, %v2635
  %v2676 = vmul.f32 %v1728, %v2492
  %v2677 = vmul.f32 %v1728, %v2540
  %v2678 = vmul.f32 %v1728, %v2588
  %v2679 = vmul.f32 %v1728, %v2636
  %v2680 = vmul.f32 %v1734, %v2493
  %v2681 = vmul.f32 %v1734, %v2541
  %v2682 = vmul.f32 %v1734, %v2589
  %v2683 = vmul.f32 %v1734, %v2637
  %v2684 = vmul.f32 %v1740, %v2494
  %v2685 = vmul.f32 %v1740, %v2542
  %v2686 = vmul.f32 %v1740, %v2590
  %v2687 = vmul.f32 %v1740, %v2638
  %v2688 = vmul.f32 %v1746, %v2495
  %v2689 = vmul.f32 %v1746, %v2543
  %v2690 = vmul.f32 %v1746, %v2591
  %v2691 = vmul.f32 %v1746, %v2639
  %v2692 = vmul.f32 %v1752, %v2496
  %v2693 = vmul.f32 %v1752, %v2544
  %v2694 = vmul.f32 %v1752, %v2592
  %v2695 = vmul.f32 %v1752, %v2640
  %v2696 = vmul.f32 %v1758, %v2497
  %v2697 = vmul.f32 %v1758, %v2545
  %v2698 = vmul.f32 %v1758, %v2593
  %v2699 = vmul.f32 %v1758, %v2641
  %v2700 = vmul.f32 %v1764, %v2498
  %v2701 = vmul.f32 %v1764, %v2546
  %v2702 = vmul.f32 %v1764, %v2594
  %v2703 = vmul.f32 %v1764, %v2642
  %v2704 = vmul.f32 %v1770, %v2499
  %v2705 = vmul.f32 %v1770, %v2547
  %v2706 = vmul.f32 %v1770, %v2595
  %v2707 = vmul.f32 %v1770, %v2643
  %v2708 = vld [vmem:[%s5] sm:$0xff]
  %v2709 = vld [vmem:[%s5 + $0x8] sm:$0xff]
  %v2710 = vld [vmem:[%s5 + $0x10] sm:$0xff]
  %v2711 = vld [vmem:[%s5 + $0x18] sm:$0xff]
  %v2712 = vld [vmem:[%s5 + $0x20] sm:$0xff]
  %v2713 = vld [vmem:[%s5 + $0x28] sm:$0xff]
  %v2714 = vld [vmem:[%s5 + $0x30] sm:$0xff]
  %v2715 = vld [vmem:[%s5 + $0x38] sm:$0xff]
  %v2716 = vld [vmem:[%s5 + $0x40] sm:$0xff]
  %v2717 = vld [vmem:[%s5 + $0x48] sm:$0xff]
  %v2718 = vld [vmem:[%s5 + $0x50] sm:$0xff]
  %v2719 = vld [vmem:[%s5 + $0x58] sm:$0xff]
  %v2720 = vld [vmem:[%s5 + $0x60] sm:$0xff]
  %v2721 = vld [vmem:[%s5 + $0x68] sm:$0xff]
  %v2722 = vld [vmem:[%s5 + $0x70] sm:$0xff]
  %v2723 = vld [vmem:[%s5 + $0x78] sm:$0xff]
  %v2724 = vld [vmem:[%s5 + $0x80] sm:$0xff]
  %v2725 = vld [vmem:[%s5 + $0x88] sm:$0xff]
  %v2726 = vld [vmem:[%s5 + $0x90] sm:$0xff]
  %v2727 = vld [vmem:[%s5 + $0x98] sm:$0xff]
  %v2728 = vld [vmem:[%s5 + $0xa0] sm:$0xff]
  %v2729 = vld [vmem:[%s5 + $0xa8] sm:$0xff]
  %v2730 = vld [vmem:[%s5 + $0xb0] sm:$0xff]
  %v2731 = vld [vmem:[%s5 + $0xb8] sm:$0xff]
  %v2732 = vld [vmem:[%s5 + $0xc0] sm:$0xff]
  %v2733 = vld [vmem:[%s5 + $0xc8] sm:$0xff]
  %v2734 = vld [vmem:[%s5 + $0xd0] sm:$0xff]
  %v2735 = vld [vmem:[%s5 + $0xd8] sm:$0xff]
  %v2736 = vld [vmem:[%s5 + $0xe0] sm:$0xff]
  %v2737 = vld [vmem:[%s5 + $0xe8] sm:$0xff]
  %v2738 = vld [vmem:[%s5 + $0xf0] sm:$0xff]
  %v2739 = vld [vmem:[%s5 + $0xf8] sm:$0xff]
  %v2740 = vld [vmem:[%s5 + $0x100] sm:$0xff]
  %v2741 = vld [vmem:[%s5 + $0x108] sm:$0xff]
  %v2742 = vld [vmem:[%s5 + $0x110] sm:$0xff]
  %v2743 = vld [vmem:[%s5 + $0x118] sm:$0xff]
  %v2744 = vld [vmem:[%s5 + $0x120] sm:$0xff]
  %v2745 = vld [vmem:[%s5 + $0x128] sm:$0xff]
  %v2746 = vld [vmem:[%s5 + $0x130] sm:$0xff]
  %v2747 = vld [vmem:[%s5 + $0x138] sm:$0xff]
  %v2748 = vld [vmem:[%s5 + $0x140] sm:$0xff]
  %v2749 = vld [vmem:[%s5 + $0x148] sm:$0xff]
  %v2750 = vld [vmem:[%s5 + $0x150] sm:$0xff]
  %v2751 = vld [vmem:[%s5 + $0x158] sm:$0xff]
  %v2752 = vld [vmem:[%s5 + $0x160] sm:$0xff]
  %v2753 = vld [vmem:[%s5 + $0x168] sm:$0xff]
  %v2754 = vld [vmem:[%s5 + $0x170] sm:$0xff]
  %v2755 = vld [vmem:[%s5 + $0x178] sm:$0xff]
  %v2756 = vld [vmem:[%s5 + $0x180] sm:$0xff]
  %v2757 = vld [vmem:[%s5 + $0x188] sm:$0xff]
  %v2758 = vld [vmem:[%s5 + $0x190] sm:$0xff]
  %v2759 = vld [vmem:[%s5 + $0x198] sm:$0xff]
  %v2760 = vld [vmem:[%s5 + $0x1a0] sm:$0xff]
  %v2761 = vld [vmem:[%s5 + $0x1a8] sm:$0xff]
  %v2762 = vld [vmem:[%s5 + $0x1b0] sm:$0xff]
  %v2763 = vld [vmem:[%s5 + $0x1b8] sm:$0xff]
  %v2764 = vld [vmem:[%s5 + $0x1c0] sm:$0xff]
  %v2765 = vld [vmem:[%s5 + $0x1c8] sm:$0xff]
  %v2766 = vld [vmem:[%s5 + $0x1d0] sm:$0xff]
  %v2767 = vld [vmem:[%s5 + $0x1d8] sm:$0xff]
  %v2768 = vld [vmem:[%s5 + $0x1e0] sm:$0xff]
  %v2769 = vld [vmem:[%s5 + $0x1e8] sm:$0xff]
  %v2770 = vld [vmem:[%s5 + $0x1f0] sm:$0xff]
  %v2771 = vld [vmem:[%s5 + $0x1f8] sm:$0xff]
  %2772 = vmatprep.subr.mxu0 0.0
  %2773 = vmatpush1.msra.mxu0 %v2723
  %2774 = vmatprep.subr.mxu0 0.0
  %2775 = vmatpush1.msra.mxu0 %v2722
  %2776 = vmatprep.subr.mxu0 0.0
  %2777 = vmatpush1.msra.mxu0 %v2721
  %2778 = vmatprep.subr.mxu0 0.0
  %2779 = vmatpush1.msra.mxu0 %v2720
  %2780 = vmatprep.subr.mxu0 0.0
  %2781 = vmatpush1.msra.mxu0 %v2719
  %2782 = vmatprep.subr.mxu0 0.0
  %2783 = vmatpush1.msra.mxu0 %v2718
  %2784 = vmatprep.subr.mxu0 0.0
  %2785 = vmatpush1.msra.mxu0 %v2717
  %2786 = vmatprep.subr.mxu0 0.0
  %2787 = vmatpush1.msra.mxu0 %v2716
  %2788 = vmatprep.subr.mxu0 0.0
  %2789 = vmatpush1.msra.mxu0 %v2715
  %2790 = vmatprep.subr.mxu0 0.0
  %2791 = vmatpush1.msra.mxu0 %v2714
  %2792 = vmatprep.subr.mxu0 0.0
  %2793 = vmatpush1.msra.mxu0 %v2713
  %2794 = vmatprep.subr.mxu0 0.0
  %2795 = vmatpush1.msra.mxu0 %v2712
  %2796 = vmatprep.subr.mxu0 0.0
  %2797 = vmatpush1.msra.mxu0 %v2711
  %2798 = vmatprep.subr.mxu0 0.0
  %2799 = vmatpush1.msra.mxu0 %v2710
  %2800 = vmatprep.subr.mxu0 0.0
  %2801 = vmatpush1.msra.mxu0 %v2709
  %2802 = vmatprep.subr.mxu0 0.0
  %2803 = vmatpush1.msra.mxu0 %v2708
  %2804 = vmatprep.subr.mxu0 0.0
  %2805 = vmatpush2.msra.mxu0 %v2739
  %2806 = vmatprep.subr.mxu0 0.0
  %2807 = vmatpush2.msra.mxu0 %v2738
  %2808 = vmatprep.subr.mxu0 0.0
  %2809 = vmatpush2.msra.mxu0 %v2737
  %2810 = vmatprep.subr.mxu0 0.0
  %2811 = vmatpush2.msra.mxu0 %v2736
  %2812 = vmatprep.subr.mxu0 0.0
  %2813 = vmatpush2.msra.mxu0 %v2735
  %2814 = vmatprep.subr.mxu0 0.0
  %2815 = vmatpush2.msra.mxu0 %v2734
  %2816 = vmatprep.subr.mxu0 0.0
  %2817 = vmatpush2.msra.mxu0 %v2733
  %2818 = vmatprep.subr.mxu0 0.0
  %2819 = vmatpush2.msra.mxu0 %v2732
  %2820 = vmatprep.subr.mxu0 0.0
  %2821 = vmatpush2.msra.mxu0 %v2731
  %2822 = vmatprep.subr.mxu0 0.0
  %2823 = vmatpush2.msra.mxu0 %v2730
  %2824 = vmatprep.subr.mxu0 0.0
  %2825 = vmatpush2.msra.mxu0 %v2729
  %2826 = vmatprep.subr.mxu0 0.0
  %2827 = vmatpush2.msra.mxu0 %v2728
  %2828 = vmatprep.subr.mxu0 0.0
  %2829 = vmatpush2.msra.mxu0 %v2727
  %2830 = vmatprep.subr.mxu0 0.0
  %2831 = vmatpush2.msra.mxu0 %v2726
  %2832 = vmatprep.subr.mxu0 0.0
  %2833 = vmatpush2.msra.mxu0 %v2725
  %2834 = vmatprep.subr.mxu0 0.0
  %2835 = vmatpush2.msra.mxu0 %v2724
  %2836 = vmatprep.mubr.f32.mxu0 %v2645
  %2837 = vmatmul.mubr.f32.gmra.mxu0 %v2644
  %v2838 = vpop.f32.mrf.mxu0
  %v2839 = vadd.f32 0.0, %v2838
  %v2840 = vpop.f32.mrf.mxu0
  %2841 = vmatprep.mubr.f32.mxu0 %v2649
  %2842 = vmatmul.mubr.f32.gmra.mxu0 %v2648
  %v2843 = vpop.f32.mrf.mxu0
  %v2844 = vadd.f32 0.0, %v2843
  %v2845 = vpop.f32.mrf.mxu0
  %2846 = vmatprep.mubr.f32.mxu0 %v2653
  %2847 = vmatmul.mubr.f32.gmra.mxu0 %v2652
  %v2848 = vpop.f32.mrf.mxu0
  %v2849 = vadd.f32 0.0, %v2848
  %v2850 = vpop.f32.mrf.mxu0
  %2851 = vmatprep.mubr.f32.mxu0 %v2657
  %2852 = vmatmul.mubr.f32.gmra.mxu0 %v2656
  %v2853 = vpop.f32.mrf.mxu0
  %v2854 = vadd.f32 0.0, %v2853
  %v2855 = vpop.f32.mrf.mxu0
  %2856 = vmatprep.mubr.f32.mxu0 %v2661
  %2857 = vmatmul.mubr.f32.gmra.mxu0 %v2660
  %v2858 = vpop.f32.mrf.mxu0
  %v2859 = vadd.f32 0.0, %v2858
  %v2860 = vpop.f32.mrf.mxu0
  %2861 = vmatprep.mubr.f32.mxu0 %v2665
  %2862 = vmatmul.mubr.f32.gmra.mxu0 %v2664
  %v2863 = vpop.f32.mrf.mxu0
  %v2864 = vadd.f32 0.0, %v2863
  %v2865 = vpop.f32.mrf.mxu0
  %2866 = vmatprep.mubr.f32.mxu0 %v2669
  %2867 = vmatmul.mubr.f32.gmra.mxu0 %v2668
  %v2868 = vpop.f32.mrf.mxu0
  %v2869 = vadd.f32 0.0, %v2868
  %v2870 = vpop.f32.mrf.mxu0
  %2871 = vmatprep.mubr.f32.mxu0 %v2673
  %2872 = vmatmul.mubr.f32.gmra.mxu0 %v2672
  %v2873 = vpop.f32.mrf.mxu0
  %v2874 = vadd.f32 0.0, %v2873
  %v2875 = vpop.f32.mrf.mxu0
  %2876 = vmatprep.mubr.f32.mxu0 %v2677
  %2877 = vmatmul.mubr.f32.gmra.mxu0 %v2676
  %v2878 = vpop.f32.mrf.mxu0
  %v2879 = vadd.f32 0.0, %v2878
  %v2880 = vpop.f32.mrf.mxu0
  %2881 = vmatprep.mubr.f32.mxu0 %v2681
  %2882 = vmatmul.mubr.f32.gmra.mxu0 %v2680
  %v2883 = vpop.f32.mrf.mxu0
  %v2884 = vadd.f32 0.0, %v2883
  %v2885 = vpop.f32.mrf.mxu0
  %2886 = vmatprep.mubr.f32.mxu0 %v2685
  %2887 = vmatmul.mubr.f32.gmra.mxu0 %v2684
  %v2888 = vpop.f32.mrf.mxu0
  %v2889 = vadd.f32 0.0, %v2888
  %v2890 = vpop.f32.mrf.mxu0
  %2891 = vmatprep.mubr.f32.mxu0 %v2689
  %2892 = vmatmul.mubr.f32.gmra.mxu0 %v2688
  %v2893 = vpop.f32.mrf.mxu0
  %v2894 = vadd.f32 0.0, %v2893
  %v2895 = vpop.f32.mrf.mxu0
  %2896 = vmatprep.mubr.f32.mxu0 %v2693
  %2897 = vmatmul.mubr.f32.gmra.mxu0 %v2692
  %v2898 = vpop.f32.mrf.mxu0
  %v2899 = vadd.f32 0.0, %v2898
  %v2900 = vpop.f32.mrf.mxu0
  %2901 = vmatprep.mubr.f32.mxu0 %v2697
  %2902 = vmatmul.mubr.f32.gmra.mxu0 %v2696
  %v2903 = vpop.f32.mrf.mxu0
  %v2904 = vadd.f32 0.0, %v2903
  %v2905 = vpop.f32.mrf.mxu0
  %2906 = vmatprep.mubr.f32.mxu0 %v2701
  %2907 = vmatmul.mubr.f32.gmra.mxu0 %v2700
  %v2908 = vpop.f32.mrf.mxu0
  %v2909 = vadd.f32 0.0, %v2908
  %v2910 = vpop.f32.mrf.mxu0
  %2911 = vmatprep.mubr.f32.mxu0 %v2705
  %2912 = vmatmul.mubr.f32.gmra.mxu0 %v2704
  %v2913 = vpop.f32.mrf.mxu0
  %v2914 = vadd.f32 0.0, %v2913
  %v2915 = vpop.f32.mrf.mxu0
  %2916 = vdwg.mxu0
  %2917 = vmatprep.subr.mxu0 0.0
  %2918 = vmatpush1.msra.mxu0 %v2755
  %2919 = vmatprep.subr.mxu0 0.0
  %2920 = vmatpush1.msra.mxu0 %v2754
  %2921 = vmatprep.subr.mxu0 0.0
  %2922 = vmatpush1.msra.mxu0 %v2753
  %2923 = vmatprep.subr.mxu0 0.0
  %2924 = vmatpush1.msra.mxu0 %v2752
  %2925 = vmatprep.subr.mxu0 0.0
  %2926 = vmatpush1.msra.mxu0 %v2751
  %2927 = vmatprep.subr.mxu0 0.0
  %2928 = vmatpush1.msra.mxu0 %v2750
  %2929 = vmatprep.subr.mxu0 0.0
  %2930 = vmatpush1.msra.mxu0 %v2749
  %2931 = vmatprep.subr.mxu0 0.0
  %2932 = vmatpush1.msra.mxu0 %v2748
  %2933 = vmatprep.subr.mxu0 0.0
  %2934 = vmatpush1.msra.mxu0 %v2747
  %2935 = vmatprep.subr.mxu0 0.0
  %2936 = vmatpush1.msra.mxu0 %v2746
  %2937 = vmatprep.subr.mxu0 0.0
  %2938 = vmatpush1.msra.mxu0 %v2745
  %2939 = vmatprep.subr.mxu0 0.0
  %2940 = vmatpush1.msra.mxu0 %v2744
  %2941 = vmatprep.subr.mxu0 0.0
  %2942 = vmatpush1.msra.mxu0 %v2743
  %2943 = vmatprep.subr.mxu0 0.0
  %2944 = vmatpush1.msra.mxu0 %v2742
  %2945 = vmatprep.subr.mxu0 0.0
  %2946 = vmatpush1.msra.mxu0 %v2741
  %2947 = vmatprep.subr.mxu0 0.0
  %2948 = vmatpush1.msra.mxu0 %v2740
  %2949 = vmatprep.subr.mxu0 0.0
  %2950 = vmatpush2.msra.mxu0 %v2771
  %2951 = vmatprep.subr.mxu0 0.0
  %2952 = vmatpush2.msra.mxu0 %v2770
  %2953 = vmatprep.subr.mxu0 0.0
  %2954 = vmatpush2.msra.mxu0 %v2769
  %2955 = vmatprep.subr.mxu0 0.0
  %2956 = vmatpush2.msra.mxu0 %v2768
  %2957 = vmatprep.subr.mxu0 0.0
  %2958 = vmatpush2.msra.mxu0 %v2767
  %2959 = vmatprep.subr.mxu0 0.0
  %2960 = vmatpush2.msra.mxu0 %v2766
  %2961 = vmatprep.subr.mxu0 0.0
  %2962 = vmatpush2.msra.mxu0 %v2765
  %2963 = vmatprep.subr.mxu0 0.0
  %2964 = vmatpush2.msra.mxu0 %v2764
  %2965 = vmatprep.subr.mxu0 0.0
  %2966 = vmatpush2.msra.mxu0 %v2763
  %2967 = vmatprep.subr.mxu0 0.0
  %2968 = vmatpush2.msra.mxu0 %v2762
  %2969 = vmatprep.subr.mxu0 0.0
  %2970 = vmatpush2.msra.mxu0 %v2761
  %2971 = vmatprep.subr.mxu0 0.0
  %2972 = vmatpush2.msra.mxu0 %v2760
  %2973 = vmatprep.subr.mxu0 0.0
  %2974 = vmatpush2.msra.mxu0 %v2759
  %2975 = vmatprep.subr.mxu0 0.0
  %2976 = vmatpush2.msra.mxu0 %v2758
  %2977 = vmatprep.subr.mxu0 0.0
  %2978 = vmatpush2.msra.mxu0 %v2757
  %2979 = vmatprep.subr.mxu0 0.0
  %2980 = vmatpush2.msra.mxu0 %v2756
  %2981 = vmatprep.mubr.f32.mxu0 %v2647
  %2982 = vmatmul.mubr.f32.gmra.mxu0 %v2646
  %v2983 = vpop.f32.mrf.mxu0
  %v2984 = vadd.f32 %v2839, %v2983
  %v2985 = vpop.f32.mrf.mxu0
  %2986 = vmatprep.mubr.f32.mxu0 %v2651
  %2987 = vmatmul.mubr.f32.gmra.mxu0 %v2650
  %v2988 = vpop.f32.mrf.mxu0
  %v2989 = vadd.f32 %v2844, %v2988
  %v2990 = vpop.f32.mrf.mxu0
  %2991 = vmatprep.mubr.f32.mxu0 %v2655
  %2992 = vmatmul.mubr.f32.gmra.mxu0 %v2654
  %v2993 = vpop.f32.mrf.mxu0
  %v2994 = vadd.f32 %v2849, %v2993
  %v2995 = vpop.f32.mrf.mxu0
  %2996 = vmatprep.mubr.f32.mxu0 %v2659
  %2997 = vmatmul.mubr.f32.gmra.mxu0 %v2658
  %v2998 = vpop.f32.mrf.mxu0
  %v2999 = vadd.f32 %v2854, %v2998
  %v3000 = vpop.f32.mrf.mxu0
  %3001 = vmatprep.mubr.f32.mxu0 %v2663
  %3002 = vmatmul.mubr.f32.gmra.mxu0 %v2662
  %v3003 = vpop.f32.mrf.mxu0
  %v3004 = vadd.f32 %v2859, %v3003
  %v3005 = vpop.f32.mrf.mxu0
  %3006 = vmatprep.mubr.f32.mxu0 %v2667
  %3007 = vmatmul.mubr.f32.gmra.mxu0 %v2666
  %v3008 = vpop.f32.mrf.mxu0
  %v3009 = vadd.f32 %v2864, %v3008
  %v3010 = vpop.f32.mrf.mxu0
  %3011 = vmatprep.mubr.f32.mxu0 %v2671
  %3012 = vmatmul.mubr.f32.gmra.mxu0 %v2670
  %v3013 = vpop.f32.mrf.mxu0
  %v3014 = vadd.f32 %v2869, %v3013
  %v3015 = vpop.f32.mrf.mxu0
  %3016 = vmatprep.mubr.f32.mxu0 %v2675
  %3017 = vmatmul.mubr.f32.gmra.mxu0 %v2674
  %v3018 = vpop.f32.mrf.mxu0
  %v3019 = vadd.f32 %v2874, %v3018
  %v3020 = vpop.f32.mrf.mxu0
  %3021 = vmatprep.mubr.f32.mxu0 %v2679
  %3022 = vmatmul.mubr.f32.gmra.mxu0 %v2678
  %v3023 = vpop.f32.mrf.mxu0
  %v3024 = vadd.f32 %v2879, %v3023
  %v3025 = vpop.f32.mrf.mxu0
  %3026 = vmatprep.mubr.f32.mxu0 %v2683
  %3027 = vmatmul.mubr.f32.gmra.mxu0 %v2682
  %v3028 = vpop.f32.mrf.mxu0
  %v3029 = vadd.f32 %v2884, %v3028
  %v3030 = vpop.f32.mrf.mxu0
  %3031 = vmatprep.mubr.f32.mxu0 %v2687
  %3032 = vmatmul.mubr.f32.gmra.mxu0 %v2686
  %v3033 = vpop.f32.mrf.mxu0
  %v3034 = vadd.f32 %v2889, %v3033
  %v3035 = vpop.f32.mrf.mxu0
  %3036 = vmatprep.mubr.f32.mxu0 %v2691
  %3037 = vmatmul.mubr.f32.gmra.mxu0 %v2690
  %v3038 = vpop.f32.mrf.mxu0
  %v3039 = vadd.f32 %v2894, %v3038
  %v3040 = vpop.f32.mrf.mxu0
  %3041 = vmatprep.mubr.f32.mxu0 %v2695
  %3042 = vmatmul.mubr.f32.gmra.mxu0 %v2694
  %v3043 = vpop.f32.mrf.mxu0
  %v3044 = vadd.f32 %v2899, %v3043
  %v3045 = vpop.f32.mrf.mxu0
  %3046 = vmatprep.mubr.f32.mxu0 %v2699
  %3047 = vmatmul.mubr.f32.gmra.mxu0 %v2698
  %v3048 = vpop.f32.mrf.mxu0
  %v3049 = vadd.f32 %v2904, %v3048
  %v3050 = vpop.f32.mrf.mxu0
  %3051 = vmatprep.mubr.f32.mxu0 %v2703
  %3052 = vmatmul.mubr.f32.gmra.mxu0 %v2702
  %v3053 = vpop.f32.mrf.mxu0
  %v3054 = vadd.f32 %v2909, %v3053
  %v3055 = vpop.f32.mrf.mxu0
  %3056 = vmatprep.mubr.f32.mxu0 %v2707
  %3057 = vmatmul.mubr.f32.gmra.mxu0 %v2706
  %v3058 = vpop.f32.mrf.mxu0
  %v3059 = vadd.f32 %v2914, %v3058
  %v3060 = vpop.f32.mrf.mxu0
  %3061 = vdwg.mxu0
  %v3062 = vmul.f32 %v2984, 0.17677669
  %v3063 = vmul.f32 %v2989, 0.17677669
  %v3064 = vmul.f32 %v2994, 0.17677669
  %v3065 = vmul.f32 %v2999, 0.17677669
  %v3066 = vmul.f32 %v3004, 0.17677669
  %v3067 = vmul.f32 %v3009, 0.17677669
  %v3068 = vmul.f32 %v3014, 0.17677669
  %v3069 = vmul.f32 %v3019, 0.17677669
  %v3070 = vmul.f32 %v3024, 0.17677669
  %v3071 = vmul.f32 %v3029, 0.17677669
  %v3072 = vmul.f32 %v3034, 0.17677669
  %v3073 = vmul.f32 %v3039, 0.17677669
  %v3074 = vmul.f32 %v3044, 0.17677669
  %v3075 = vmul.f32 %v3049, 0.17677669
  %v3076 = vmul.f32 %v3054, 0.17677669
  %v3077 = vmul.f32 %v3059, 0.17677669
  %v3078 = vxor.u32 %v3062, 2147483648
  %v3079 = vxor.u32 %v3063, 2147483648
  %v3080 = vxor.u32 %v3064, 2147483648
  %v3081 = vxor.u32 %v3065, 2147483648
  %v3082 = vxor.u32 %v3066, 2147483648
  %v3083 = vxor.u32 %v3067, 2147483648
  %v3084 = vxor.u32 %v3068, 2147483648
  %v3085 = vxor.u32 %v3069, 2147483648
  %v3086 = vxor.u32 %v3070, 2147483648
  %v3087 = vxor.u32 %v3071, 2147483648
  %v3088 = vxor.u32 %v3072, 2147483648
  %v3089 = vxor.u32 %v3073, 2147483648
  %v3090 = vxor.u32 %v3074, 2147483648
  %v3091 = vxor.u32 %v3075, 2147483648
  %v3092 = vxor.u32 %v3076, 2147483648
  %v3093 = vxor.u32 %v3077, 2147483648
  %v3094 = vmul.f32 %v3078, 1.442695
  %v3095 = vpow.pop %v3094
  %v3096 = vmul.f32 %v3079, 1.442695
  %v3097 = vpow.pop %v3096
  %v3098 = vmul.f32 %v3080, 1.442695
  %v3099 = vpow.pop %v3098
  %v3100 = vmul.f32 %v3081, 1.442695
  %v3101 = vpow.pop %v3100
  %v3102 = vmul.f32 %v3082, 1.442695
  %v3103 = vpow.pop %v3102
  %v3104 = vmul.f32 %v3083, 1.442695
  %v3105 = vpow.pop %v3104
  %v3106 = vmul.f32 %v3084, 1.442695
  %v3107 = vpow.pop %v3106
  %v3108 = vmul.f32 %v3085, 1.442695
  %v3109 = vpow.pop %v3108
  %v3110 = vmul.f32 %v3086, 1.442695
  %v3111 = vpow.pop %v3110
  %v3112 = vmul.f32 %v3087, 1.442695
  %v3113 = vpow.pop %v3112
  %v3114 = vmul.f32 %v3088, 1.442695
  %v3115 = vpow.pop %v3114
  %v3116 = vmul.f32 %v3089, 1.442695
  %v3117 = vpow.pop %v3116
  %v3118 = vmul.f32 %v3090, 1.442695
  %v3119 = vpow.pop %v3118
  %v3120 = vmul.f32 %v3091, 1.442695
  %v3121 = vpow.pop %v3120
  %v3122 = vmul.f32 %v3092, 1.442695
  %v3123 = vpow.pop %v3122
  %v3124 = vmul.f32 %v3093, 1.442695
  %v3125 = vpow.pop %v3124
  %v3126 = vadd.f32 %v3095, 1.0
  %v3127 = vadd.f32 %v3097, 1.0
  %v3128 = vadd.f32 %v3099, 1.0
  %v3129 = vadd.f32 %v3101, 1.0
  %v3130 = vadd.f32 %v3103, 1.0
  %v3131 = vadd.f32 %v3105, 1.0
  %v3132 = vadd.f32 %v3107, 1.0
  %v3133 = vadd.f32 %v3109, 1.0
  %v3134 = vadd.f32 %v3111, 1.0
  %v3135 = vadd.f32 %v3113, 1.0
  %v3136 = vadd.f32 %v3115, 1.0
  %v3137 = vadd.f32 %v3117, 1.0
  %v3138 = vadd.f32 %v3119, 1.0
  %v3139 = vadd.f32 %v3121, 1.0
  %v3140 = vadd.f32 %v3123, 1.0
  %v3141 = vadd.f32 %v3125, 1.0
  %v3142 = vrcp.pop %v3126
  %v3143 = vmul.f32 1.0, %v3142
  %v3144 = vrcp.pop %v3127
  %v3145 = vmul.f32 1.0, %v3144
  %v3146 = vrcp.pop %v3128
  %v3147 = vmul.f32 1.0, %v3146
  %v3148 = vrcp.pop %v3129
  %v3149 = vmul.f32 1.0, %v3148
  %v3150 = vrcp.pop %v3130
  %v3151 = vmul.f32 1.0, %v3150
  %v3152 = vrcp.pop %v3131
  %v3153 = vmul.f32 1.0, %v3152
  %v3154 = vrcp.pop %v3132
  %v3155 = vmul.f32 1.0, %v3154
  %v3156 = vrcp.pop %v3133
  %v3157 = vmul.f32 1.0, %v3156
  %v3158 = vrcp.pop %v3134
  %v3159 = vmul.f32 1.0, %v3158
  %v3160 = vrcp.pop %v3135
  %v3161 = vmul.f32 1.0, %v3160
  %v3162 = vrcp.pop %v3136
  %v3163 = vmul.f32 1.0, %v3162
  %v3164 = vrcp.pop %v3137
  %v3165 = vmul.f32 1.0, %v3164
  %v3166 = vrcp.pop %v3138
  %v3167 = vmul.f32 1.0, %v3166
  %v3168 = vrcp.pop %v3139
  %v3169 = vmul.f32 1.0, %v3168
  %v3170 = vrcp.pop %v3140
  %v3171 = vmul.f32 1.0, %v3170
  %v3172 = vrcp.pop %v3141
  %v3173 = vmul.f32 1.0, %v3172
  %vm3174 = vcmask 130048
  %v3175 = vsel %vm3174, %v3143, 0.0
  %3176 = vadd.xlane.f32.xlu0 %v3175
  %v3177 = vpop.xlane.xlu0 %3176
  %v3178 = vsel %vm3174, %v3145, 0.0
  %3179 = vadd.xlane.f32.xlu0 %v3178
  %v3180 = vpop.xlane.xlu0 %3179
  %v3181 = vsel %vm3174, %v3147, 0.0
  %3182 = vadd.xlane.f32.xlu0 %v3181
  %v3183 = vpop.xlane.xlu0 %3182
  %v3184 = vsel %vm3174, %v3149, 0.0
  %3185 = vadd.xlane.f32.xlu0 %v3184
  %v3186 = vpop.xlane.xlu0 %3185
  %v3187 = vsel %vm3174, %v3151, 0.0
  %3188 = vadd.xlane.f32.xlu0 %v3187
  %v3189 = vpop.xlane.xlu0 %3188
  %v3190 = vsel %vm3174, %v3153, 0.0
  %3191 = vadd.xlane.f32.xlu0 %v3190
  %v3192 = vpop.xlane.xlu0 %3191
  %v3193 = vsel %vm3174, %v3155, 0.0
  %3194 = vadd.xlane.f32.xlu0 %v3193
  %v3195 = vpop.xlane.xlu0 %3194
  %v3196 = vsel %vm3174, %v3157, 0.0
  %3197 = vadd.xlane.f32.xlu0 %v3196
  %v3198 = vpop.xlane.xlu0 %3197
  %v3199 = vsel %vm3174, %v3159, 0.0
  %3200 = vadd.xlane.f32.xlu0 %v3199
  %v3201 = vpop.xlane.xlu0 %3200
  %v3202 = vsel %vm3174, %v3161, 0.0
  %3203 = vadd.xlane.f32.xlu0 %v3202
  %v3204 = vpop.xlane.xlu0 %3203
  %v3205 = vsel %vm3174, %v3163, 0.0
  %3206 = vadd.xlane.f32.xlu0 %v3205
  %v3207 = vpop.xlane.xlu0 %3206
  %v3208 = vsel %vm3174, %v3165, 0.0
  %3209 = vadd.xlane.f32.xlu0 %v3208
  %v3210 = vpop.xlane.xlu0 %3209
  %v3211 = vsel %vm3174, %v3167, 0.0
  %3212 = vadd.xlane.f32.xlu0 %v3211
  %v3213 = vpop.xlane.xlu0 %3212
  %v3214 = vsel %vm3174, %v3169, 0.0
  %3215 = vadd.xlane.f32.xlu0 %v3214
  %v3216 = vpop.xlane.xlu0 %3215
  %v3217 = vsel %vm3174, %v3171, 0.0
  %3218 = vadd.xlane.f32.xlu0 %v3217
  %v3219 = vpop.xlane.xlu0 %3218
  %v3220 = vsel %vm3174, %v3173, 0.0
  %3221 = vadd.xlane.f32.xlu0 %v3220
  %v3222 = vpop.xlane.xlu0 %3221
  %3239 = vrot.lane.b32.xlu0 %v672, 64
  %v3240 = vpop.permute.xlu0 %3239
  %3241 = vrot.lane.b32.xlu0 %v678, 64
  %v3242 = vpop.permute.xlu0 %3241
  %3243 = vrot.lane.b32.xlu0 %v684, 64
  %v3244 = vpop.permute.xlu0 %3243
  %3245 = vrot.lane.b32.xlu0 %v690, 64
  %v3246 = vpop.permute.xlu0 %3245
  %3247 = vrot.lane.b32.xlu0 %v696, 64
  %v3248 = vpop.permute.xlu0 %3247
  %3249 = vrot.lane.b32.xlu0 %v702, 64
  %v3250 = vpop.permute.xlu0 %3249
  %3251 = vrot.lane.b32.xlu0 %v708, 64
  %v3252 = vpop.permute.xlu0 %3251
  %3253 = vrot.lane.b32.xlu0 %v714, 64
  %v3254 = vpop.permute.xlu0 %3253
  %3255 = vrot.lane.b32.xlu0 %v720, 64
  %v3256 = vpop.permute.xlu0 %3255
  %3257 = vrot.lane.b32.xlu0 %v726, 64
  %v3258 = vpop.permute.xlu0 %3257
  %3259 = vrot.lane.b32.xlu0 %v732, 64
  %v3260 = vpop.permute.xlu0 %3259
  %3261 = vrot.lane.b32.xlu0 %v738, 64
  %v3262 = vpop.permute.xlu0 %3261
  %3263 = vrot.lane.b32.xlu0 %v744, 64
  %v3264 = vpop.permute.xlu0 %3263
  %3265 = vrot.lane.b32.xlu0 %v750, 64
  %v3266 = vpop.permute.xlu0 %3265
  %3267 = vrot.lane.b32.xlu0 %v756, 64
  %v3268 = vpop.permute.xlu0 %3267
  %3269 = vrot.lane.b32.xlu0 %v762, 64
  %v3270 = vpop.permute.xlu0 %3269
  %v3287 = vmul.f32 %v3143, %v3240
  %v3288 = vmul.f32 %v3145, %v3242
  %v3289 = vmul.f32 %v3147, %v3244
  %v3290 = vmul.f32 %v3149, %v3246
  %v3291 = vmul.f32 %v3151, %v3248
  %v3292 = vmul.f32 %v3153, %v3250
  %v3293 = vmul.f32 %v3155, %v3252
  %v3294 = vmul.f32 %v3157, %v3254
  %v3295 = vmul.f32 %v3159, %v3256
  %v3296 = vmul.f32 %v3161, %v3258
  %v3297 = vmul.f32 %v3163, %v3260
  %v3298 = vmul.f32 %v3165, %v3262
  %v3299 = vmul.f32 %v3167, %v3264
  %v3300 = vmul.f32 %v3169, %v3266
  %v3301 = vmul.f32 %v3171, %v3268
  %v3302 = vmul.f32 %v3173, %v3270
  %v3303 = vld [vmem:[%s6] sm:$0xff]
  %v3304 = vld [vmem:[%s6 + $0x8] sm:$0xff]
  %v3306 = vsel %vm3174, %v3287, 0
  %v3309 = vsel %vm3174, %v3288, 0
  %v3312 = vsel %vm3174, %v3289, 0
  %v3315 = vsel %vm3174, %v3290, 0
  %v3318 = vsel %vm3174, %v3291, 0
  %v3321 = vsel %vm3174, %v3292, 0
  %v3324 = vsel %vm3174, %v3293, 0
  %v3327 = vsel %vm3174, %v3294, 0
  %v3330 = vsel %vm3174, %v3295, 0
  %v3333 = vsel %vm3174, %v3296, 0
  %v3336 = vsel %vm3174, %v3297, 0
  %v3339 = vsel %vm3174, %v3298, 0
  %v3342 = vsel %vm3174, %v3299, 0
  %v3345 = vsel %vm3174, %v3300, 0
  %v3348 = vsel %vm3174, %v3301, 0
  %v3351 = vsel %vm3174, %v3302, 0
  %3353 = vmatprep.subr.mxu0 0.0
  %3354 = vmatpush1.msra.mxu0 0.0
  %3355 = vmatprep.subr.mxu0 0.0
  %3356 = vmatpush1.msra.mxu0 0.0
  %3357 = vmatprep.subr.mxu0 0.0
  %3358 = vmatpush1.msra.mxu0 0.0
  %3359 = vmatprep.subr.mxu0 0.0
  %3360 = vmatpush1.msra.mxu0 0.0
  %3361 = vmatprep.subr.mxu0 0.0
  %3362 = vmatpush1.msra.mxu0 0.0
  %3363 = vmatprep.subr.mxu0 0.0
  %3364 = vmatpush1.msra.mxu0 0.0
  %3365 = vmatprep.subr.mxu0 0.0
  %3366 = vmatpush1.msra.mxu0 0.0
  %3367 = vmatprep.subr.mxu0 0.0
  %3368 = vmatpush1.msra.mxu0 0.0
  %3369 = vmatprep.subr.mxu0 0.0
  %3370 = vmatpush1.msra.mxu0 0.0
  %3371 = vmatprep.subr.mxu0 0.0
  %3372 = vmatpush1.msra.mxu0 0.0
  %3373 = vmatprep.subr.mxu0 0.0
  %3374 = vmatpush1.msra.mxu0 0.0
  %3375 = vmatprep.subr.mxu0 0.0
  %3376 = vmatpush1.msra.mxu0 0.0
  %3377 = vmatprep.subr.mxu0 0.0
  %3378 = vmatpush1.msra.mxu0 0.0
  %3379 = vmatprep.subr.mxu0 0.0
  %3380 = vmatpush1.msra.mxu0 0.0
  %3381 = vmatprep.subr.mxu0 0.0
  %3382 = vmatpush1.msra.mxu0 %v3304
  %3383 = vmatprep.subr.mxu0 0.0
  %3384 = vmatpush1.msra.mxu0 %v3303
  %3385 = vmatprep.subr.mxu0 0.0
  %3386 = vmatpush2.msra.mxu0 0.0
  %3387 = vmatprep.subr.mxu0 0.0
  %3388 = vmatpush2.msra.mxu0 0.0
  %3389 = vmatprep.subr.mxu0 0.0
  %3390 = vmatpush2.msra.mxu0 0.0
  %3391 = vmatprep.subr.mxu0 0.0
  %3392 = vmatpush2.msra.mxu0 0.0
  %3393 = vmatprep.subr.mxu0 0.0
  %3394 = vmatpush2.msra.mxu0 0.0
  %3395 = vmatprep.subr.mxu0 0.0
  %3396 = vmatpush2.msra.mxu0 0.0
  %3397 = vmatprep.subr.mxu0 0.0
  %3398 = vmatpush2.msra.mxu0 0.0
  %3399 = vmatprep.subr.mxu0 0.0
  %3400 = vmatpush2.msra.mxu0 0.0
  %3401 = vmatprep.subr.mxu0 0.0
  %3402 = vmatpush2.msra.mxu0 0.0
  %3403 = vmatprep.subr.mxu0 0.0
  %3404 = vmatpush2.msra.mxu0 0.0
  %3405 = vmatprep.subr.mxu0 0.0
  %3406 = vmatpush2.msra.mxu0 0.0
  %3407 = vmatprep.subr.mxu0 0.0
  %3408 = vmatpush2.msra.mxu0 0.0
  %3409 = vmatprep.subr.mxu0 0.0
  %3410 = vmatpush2.msra.mxu0 0.0
  %3411 = vmatprep.subr.mxu0 0.0
  %3412 = vmatpush2.msra.mxu0 0.0
  %3413 = vmatprep.subr.mxu0 0.0
  %3414 = vmatpush2.msra.mxu0 0.0
  %3415 = vmatprep.subr.mxu0 0.0
  %3416 = vmatpush2.msra.mxu0 0.0
  %3417 = vmatprep.mubr.f32.mxu0 0.0
  %3418 = vmatmul.mubr.f32.gmra.mxu0 %v3306
  %v3419 = vpop.f32.mrf.mxu0
  %v3420 = vadd.f32 0.0, %v3419
  %v3421 = vpop.f32.mrf.mxu0
  %3422 = vmatprep.mubr.f32.mxu0 0.0
  %3423 = vmatmul.mubr.f32.gmra.mxu0 %v3309
  %v3424 = vpop.f32.mrf.mxu0
  %v3425 = vadd.f32 0.0, %v3424
  %v3426 = vpop.f32.mrf.mxu0
  %3427 = vmatprep.mubr.f32.mxu0 0.0
  %3428 = vmatmul.mubr.f32.gmra.mxu0 %v3312
  %v3429 = vpop.f32.mrf.mxu0
  %v3430 = vadd.f32 0.0, %v3429
  %v3431 = vpop.f32.mrf.mxu0
  %3432 = vmatprep.mubr.f32.mxu0 0.0
  %3433 = vmatmul.mubr.f32.gmra.mxu0 %v3315
  %v3434 = vpop.f32.mrf.mxu0
  %v3435 = vadd.f32 0.0, %v3434
  %v3436 = vpop.f32.mrf.mxu0
  %3437 = vmatprep.mubr.f32.mxu0 0.0
  %3438 = vmatmul.mubr.f32.gmra.mxu0 %v3318
  %v3439 = vpop.f32.mrf.mxu0
  %v3440 = vadd.f32 0.0, %v3439
  %v3441 = vpop.f32.mrf.mxu0
  %3442 = vmatprep.mubr.f32.mxu0 0.0
  %3443 = vmatmul.mubr.f32.gmra.mxu0 %v3321
  %v3444 = vpop.f32.mrf.mxu0
  %v3445 = vadd.f32 0.0, %v3444
  %v3446 = vpop.f32.mrf.mxu0
  %3447 = vmatprep.mubr.f32.mxu0 0.0
  %3448 = vmatmul.mubr.f32.gmra.mxu0 %v3324
  %v3449 = vpop.f32.mrf.mxu0
  %v3450 = vadd.f32 0.0, %v3449
  %v3451 = vpop.f32.mrf.mxu0
  %3452 = vmatprep.mubr.f32.mxu0 0.0
  %3453 = vmatmul.mubr.f32.gmra.mxu0 %v3327
  %v3454 = vpop.f32.mrf.mxu0
  %v3455 = vadd.f32 0.0, %v3454
  %v3456 = vpop.f32.mrf.mxu0
  %3457 = vmatprep.mubr.f32.mxu0 0.0
  %3458 = vmatmul.mubr.f32.gmra.mxu0 %v3330
  %v3459 = vpop.f32.mrf.mxu0
  %v3460 = vadd.f32 0.0, %v3459
  %v3461 = vpop.f32.mrf.mxu0
  %3462 = vmatprep.mubr.f32.mxu0 0.0
  %3463 = vmatmul.mubr.f32.gmra.mxu0 %v3333
  %v3464 = vpop.f32.mrf.mxu0
  %v3465 = vadd.f32 0.0, %v3464
  %v3466 = vpop.f32.mrf.mxu0
  %3467 = vmatprep.mubr.f32.mxu0 0.0
  %3468 = vmatmul.mubr.f32.gmra.mxu0 %v3336
  %v3469 = vpop.f32.mrf.mxu0
  %v3470 = vadd.f32 0.0, %v3469
  %v3471 = vpop.f32.mrf.mxu0
  %3472 = vmatprep.mubr.f32.mxu0 0.0
  %3473 = vmatmul.mubr.f32.gmra.mxu0 %v3339
  %v3474 = vpop.f32.mrf.mxu0
  %v3475 = vadd.f32 0.0, %v3474
  %v3476 = vpop.f32.mrf.mxu0
  %3477 = vmatprep.mubr.f32.mxu0 0.0
  %3478 = vmatmul.mubr.f32.gmra.mxu0 %v3342
  %v3479 = vpop.f32.mrf.mxu0
  %v3480 = vadd.f32 0.0, %v3479
  %v3481 = vpop.f32.mrf.mxu0
  %3482 = vmatprep.mubr.f32.mxu0 0.0
  %3483 = vmatmul.mubr.f32.gmra.mxu0 %v3345
  %v3484 = vpop.f32.mrf.mxu0
  %v3485 = vadd.f32 0.0, %v3484
  %v3486 = vpop.f32.mrf.mxu0
  %3487 = vmatprep.mubr.f32.mxu0 0.0
  %3488 = vmatmul.mubr.f32.gmra.mxu0 %v3348
  %v3489 = vpop.f32.mrf.mxu0
  %v3490 = vadd.f32 0.0, %v3489
  %v3491 = vpop.f32.mrf.mxu0
  %3492 = vmatprep.mubr.f32.mxu0 0.0
  %3493 = vmatmul.mubr.f32.gmra.mxu0 %v3351
  %v3494 = vpop.f32.mrf.mxu0
  %v3495 = vadd.f32 0.0, %v3494
  %v3496 = vpop.f32.mrf.mxu0
  %3497 = vdwg.mxu0
  %v3498 = vmul.f32 %v3420, %v2257
  %v3499 = vmul.f32 %v3425, %v2258
  %v3500 = vmul.f32 %v3430, %v2259
  %v3501 = vmul.f32 %v3435, %v2260
  %v3502 = vmul.f32 %v3440, %v2261
  %v3503 = vmul.f32 %v3445, %v2262
  %v3504 = vmul.f32 %v3450, %v2263
  %v3505 = vmul.f32 %v3455, %v2264
  %v3506 = vmul.f32 %v3460, %v2265
  %v3507 = vmul.f32 %v3465, %v2266
  %v3508 = vmul.f32 %v3470, %v2267
  %v3509 = vmul.f32 %v3475, %v2268
  %v3510 = vmul.f32 %v3480, %v2269
  %v3511 = vmul.f32 %v3485, %v2270
  %v3512 = vmul.f32 %v3490, %v2271
  %v3513 = vmul.f32 %v3495, %v2272
  %v3514 = vld [vmem:[%s7] sm:$0xff]
  %v3515 = vld [vmem:[%s7 + $0x8] sm:$0xff]
  %v3516 = vld [vmem:[%s7 + $0x10] sm:$0xff]
  %v3517 = vld [vmem:[%s7 + $0x18] sm:$0xff]
  %v3518 = vld [vmem:[%s7 + $0x20] sm:$0xff]
  %v3519 = vld [vmem:[%s7 + $0x28] sm:$0xff]
  %v3520 = vld [vmem:[%s7 + $0x30] sm:$0xff]
  %v3521 = vld [vmem:[%s7 + $0x38] sm:$0xff]
  %v3522 = vld [vmem:[%s7 + $0x40] sm:$0xff]
  %v3523 = vld [vmem:[%s7 + $0x48] sm:$0xff]
  %v3524 = vld [vmem:[%s7 + $0x50] sm:$0xff]
  %v3525 = vld [vmem:[%s7 + $0x58] sm:$0xff]
  %v3526 = vld [vmem:[%s7 + $0x60] sm:$0xff]
  %v3527 = vld [vmem:[%s7 + $0x68] sm:$0xff]
  %v3528 = vld [vmem:[%s7 + $0x70] sm:$0xff]
  %v3529 = vld [vmem:[%s7 + $0x78] sm:$0xff]
  %3530 = vmatprep.subr.mxu0 0.0
  %3531 = vmatpush1.msra.mxu0 %v3529
  %3532 = vmatprep.subr.mxu0 0.0
  %3533 = vmatpush1.msra.mxu0 %v3528
  %3534 = vmatprep.subr.mxu0 0.0
  %3535 = vmatpush1.msra.mxu0 %v3527
  %3536 = vmatprep.subr.mxu0 0.0
  %3537 = vmatpush1.msra.mxu0 %v3526
  %3538 = vmatprep.subr.mxu0 0.0
  %3539 = vmatpush1.msra.mxu0 %v3525
  %3540 = vmatprep.subr.mxu0 0.0
  %3541 = vmatpush1.msra.mxu0 %v3524
  %3542 = vmatprep.subr.mxu0 0.0
  %3543 = vmatpush1.msra.mxu0 %v3523
  %3544 = vmatprep.subr.mxu0 0.0
  %3545 = vmatpush1.msra.mxu0 %v3522
  %3546 = vmatprep.subr.mxu0 0.0
  %3547 = vmatpush1.msra.mxu0 %v3521
  %3548 = vmatprep.subr.mxu0 0.0
  %3549 = vmatpush1.msra.mxu0 %v3520
  %3550 = vmatprep.subr.mxu0 0.0
  %3551 = vmatpush1.msra.mxu0 %v3519
  %3552 = vmatprep.subr.mxu0 0.0
  %3553 = vmatpush1.msra.mxu0 %v3518
  %3554 = vmatprep.subr.mxu0 0.0
  %3555 = vmatpush1.msra.mxu0 %v3517
  %3556 = vmatprep.subr.mxu0 0.0
  %3557 = vmatpush1.msra.mxu0 %v3516
  %3558 = vmatprep.subr.mxu0 0.0
  %3559 = vmatpush1.msra.mxu0 %v3515
  %3560 = vmatprep.subr.mxu0 0.0
  %3561 = vmatpush1.msra.mxu0 %v3514
  %3562 = vmatprep.subr.mxu0 0.0
  %3563 = vmatpush2.msra.mxu0 0.0
  %3564 = vmatprep.subr.mxu0 0.0
  %3565 = vmatpush2.msra.mxu0 0.0
  %3566 = vmatprep.subr.mxu0 0.0
  %3567 = vmatpush2.msra.mxu0 0.0
  %3568 = vmatprep.subr.mxu0 0.0
  %3569 = vmatpush2.msra.mxu0 0.0
  %3570 = vmatprep.subr.mxu0 0.0
  %3571 = vmatpush2.msra.mxu0 0.0
  %3572 = vmatprep.subr.mxu0 0.0
  %3573 = vmatpush2.msra.mxu0 0.0
  %3574 = vmatprep.subr.mxu0 0.0
  %3575 = vmatpush2.msra.mxu0 0.0
  %3576 = vmatprep.subr.mxu0 0.0
  %3577 = vmatpush2.msra.mxu0 0.0
  %3578 = vmatprep.subr.mxu0 0.0
  %3579 = vmatpush2.msra.mxu0 0.0
  %3580 = vmatprep.subr.mxu0 0.0
  %3581 = vmatpush2.msra.mxu0 0.0
  %3582 = vmatprep.subr.mxu0 0.0
  %3583 = vmatpush2.msra.mxu0 0.0
  %3584 = vmatprep.subr.mxu0 0.0
  %3585 = vmatpush2.msra.mxu0 0.0
  %3586 = vmatprep.subr.mxu0 0.0
  %3587 = vmatpush2.msra.mxu0 0.0
  %3588 = vmatprep.subr.mxu0 0.0
  %3589 = vmatpush2.msra.mxu0 0.0
  %3590 = vmatprep.subr.mxu0 0.0
  %3591 = vmatpush2.msra.mxu0 0.0
  %3592 = vmatprep.subr.mxu0 0.0
  %3593 = vmatpush2.msra.mxu0 0.0
  %3594 = vmatprep.mubr.f32.mxu0 0.0
  %3595 = vmatmul.mubr.f32.gmra.mxu0 %v3498
  %v3596 = vpop.f32.mrf.mxu0
  %v3597 = vadd.f32 %v672, %v3596
  %v3598 = vpop.f32.mrf.mxu0
  %3599 = vmatprep.mubr.f32.mxu0 0.0
  %3600 = vmatmul.mubr.f32.gmra.mxu0 %v3499
  %v3601 = vpop.f32.mrf.mxu0
  %v3602 = vadd.f32 %v678, %v3601
  %v3603 = vpop.f32.mrf.mxu0
  %3604 = vmatprep.mubr.f32.mxu0 0.0
  %3605 = vmatmul.mubr.f32.gmra.mxu0 %v3500
  %v3606 = vpop.f32.mrf.mxu0
  %v3607 = vadd.f32 %v684, %v3606
  %v3608 = vpop.f32.mrf.mxu0
  %3609 = vmatprep.mubr.f32.mxu0 0.0
  %3610 = vmatmul.mubr.f32.gmra.mxu0 %v3501
  %v3611 = vpop.f32.mrf.mxu0
  %v3612 = vadd.f32 %v690, %v3611
  %v3613 = vpop.f32.mrf.mxu0
  %3614 = vmatprep.mubr.f32.mxu0 0.0
  %3615 = vmatmul.mubr.f32.gmra.mxu0 %v3502
  %v3616 = vpop.f32.mrf.mxu0
  %v3617 = vadd.f32 %v696, %v3616
  %v3618 = vpop.f32.mrf.mxu0
  %3619 = vmatprep.mubr.f32.mxu0 0.0
  %3620 = vmatmul.mubr.f32.gmra.mxu0 %v3503
  %v3621 = vpop.f32.mrf.mxu0
  %v3622 = vadd.f32 %v702, %v3621
  %v3623 = vpop.f32.mrf.mxu0
  %3624 = vmatprep.mubr.f32.mxu0 0.0
  %3625 = vmatmul.mubr.f32.gmra.mxu0 %v3504
  %v3626 = vpop.f32.mrf.mxu0
  %v3627 = vadd.f32 %v708, %v3626
  %v3628 = vpop.f32.mrf.mxu0
  %3629 = vmatprep.mubr.f32.mxu0 0.0
  %3630 = vmatmul.mubr.f32.gmra.mxu0 %v3505
  %v3631 = vpop.f32.mrf.mxu0
  %v3632 = vadd.f32 %v714, %v3631
  %v3633 = vpop.f32.mrf.mxu0
  %3634 = vmatprep.mubr.f32.mxu0 0.0
  %3635 = vmatmul.mubr.f32.gmra.mxu0 %v3506
  %v3636 = vpop.f32.mrf.mxu0
  %v3637 = vadd.f32 %v720, %v3636
  %v3638 = vpop.f32.mrf.mxu0
  %3639 = vmatprep.mubr.f32.mxu0 0.0
  %3640 = vmatmul.mubr.f32.gmra.mxu0 %v3507
  %v3641 = vpop.f32.mrf.mxu0
  %v3642 = vadd.f32 %v726, %v3641
  %v3643 = vpop.f32.mrf.mxu0
  %3644 = vmatprep.mubr.f32.mxu0 0.0
  %3645 = vmatmul.mubr.f32.gmra.mxu0 %v3508
  %v3646 = vpop.f32.mrf.mxu0
  %v3647 = vadd.f32 %v732, %v3646
  %v3648 = vpop.f32.mrf.mxu0
  %3649 = vmatprep.mubr.f32.mxu0 0.0
  %3650 = vmatmul.mubr.f32.gmra.mxu0 %v3509
  %v3651 = vpop.f32.mrf.mxu0
  %v3652 = vadd.f32 %v738, %v3651
  %v3653 = vpop.f32.mrf.mxu0
  %3654 = vmatprep.mubr.f32.mxu0 0.0
  %3655 = vmatmul.mubr.f32.gmra.mxu0 %v3510
  %v3656 = vpop.f32.mrf.mxu0
  %v3657 = vadd.f32 %v744, %v3656
  %v3658 = vpop.f32.mrf.mxu0
  %3659 = vmatprep.mubr.f32.mxu0 0.0
  %3660 = vmatmul.mubr.f32.gmra.mxu0 %v3511
  %v3661 = vpop.f32.mrf.mxu0
  %v3662 = vadd.f32 %v750, %v3661
  %v3663 = vpop.f32.mrf.mxu0
  %3664 = vmatprep.mubr.f32.mxu0 0.0
  %3665 = vmatmul.mubr.f32.gmra.mxu0 %v3512
  %v3666 = vpop.f32.mrf.mxu0
  %v3667 = vadd.f32 %v756, %v3666
  %v3668 = vpop.f32.mrf.mxu0
  %3669 = vmatprep.mubr.f32.mxu0 0.0
  %3670 = vmatmul.mubr.f32.gmra.mxu0 %v3513
  %v3671 = vpop.f32.mrf.mxu0
  %v3672 = vadd.f32 %v762, %v3671
  %v3673 = vpop.f32.mrf.mxu0
  %3674 = vdwg.mxu0
  %vm3675 = vcmp.gt.f32.partialorder %v3597, 0.0
  %vm3676 = vcmp.gt.f32.partialorder %v3602, 0.0
  %vm3677 = vcmp.gt.f32.partialorder %v3607, 0.0
  %vm3678 = vcmp.gt.f32.partialorder %v3612, 0.0
  %vm3679 = vcmp.gt.f32.partialorder %v3617, 0.0
  %vm3680 = vcmp.gt.f32.partialorder %v3622, 0.0
  %vm3681 = vcmp.gt.f32.partialorder %v3627, 0.0
  %vm3682 = vcmp.gt.f32.partialorder %v3632, 0.0
  %vm3683 = vcmp.gt.f32.partialorder %v3637, 0.0
  %vm3684 = vcmp.gt.f32.partialorder %v3642, 0.0
  %vm3685 = vcmp.gt.f32.partialorder %v3647, 0.0
  %vm3686 = vcmp.gt.f32.partialorder %v3652, 0.0
  %vm3687 = vcmp.gt.f32.partialorder %v3657, 0.0
  %vm3688 = vcmp.gt.f32.partialorder %v3662, 0.0
  %vm3689 = vcmp.gt.f32.partialorder %v3667, 0.0
  %vm3690 = vcmp.gt.f32.partialorder %v3672, 0.0
  %v3691 = vmin.f32 %v3597, 0.0
  %v3692 = vmin.f32 %v3602, 0.0
  %v3693 = vmin.f32 %v3607, 0.0
  %v3694 = vmin.f32 %v3612, 0.0
  %v3695 = vmin.f32 %v3617, 0.0
  %v3696 = vmin.f32 %v3622, 0.0
  %v3697 = vmin.f32 %v3627, 0.0
  %v3698 = vmin.f32 %v3632, 0.0
  %v3699 = vmin.f32 %v3637, 0.0
  %v3700 = vmin.f32 %v3642, 0.0
  %v3701 = vmin.f32 %v3647, 0.0
  %v3702 = vmin.f32 %v3652, 0.0
  %v3703 = vmin.f32 %v3657, 0.0
  %v3704 = vmin.f32 %v3662, 0.0
  %v3705 = vmin.f32 %v3667, 0.0
  %v3706 = vmin.f32 %v3672, 0.0
  %v3707 = vmul.f32 %v3691, 1.442695
  %v3708 = vpow.pop %v3707
  %v3709 = vmul.f32 %v3692, 1.442695
  %v3710 = vpow.pop %v3709
  %v3711 = vmul.f32 %v3693, 1.442695
  %v3712 = vpow.pop %v3711
  %v3713 = vmul.f32 %v3694, 1.442695
  %v3714 = vpow.pop %v3713
  %v3715 = vmul.f32 %v3695, 1.442695
  %v3716 = vpow.pop %v3715
  %v3717 = vmul.f32 %v3696, 1.442695
  %v3718 = vpow.pop %v3717
  %v3719 = vmul.f32 %v3697, 1.442695
  %v3720 = vpow.pop %v3719
  %v3721 = vmul.f32 %v3698, 1.442695
  %v3722 = vpow.pop %v3721
  %v3723 = vmul.f32 %v3699, 1.442695
  %v3724 = vpow.pop %v3723
  %v3725 = vmul.f32 %v3700, 1.442695
  %v3726 = vpow.pop %v3725
  %v3727 = vmul.f32 %v3701, 1.442695
  %v3728 = vpow.pop %v3727
  %v3729 = vmul.f32 %v3702, 1.442695
  %v3730 = vpow.pop %v3729
  %v3731 = vmul.f32 %v3703, 1.442695
  %v3732 = vpow.pop %v3731
  %v3733 = vmul.f32 %v3704, 1.442695
  %v3734 = vpow.pop %v3733
  %v3735 = vmul.f32 %v3705, 1.442695
  %v3736 = vpow.pop %v3735
  %v3737 = vmul.f32 %v3706, 1.442695
  %v3738 = vpow.pop %v3737
  %v3739 = vsub.f32 %v3708, 1.0
  %v3740 = vsub.f32 %v3710, 1.0
  %v3741 = vsub.f32 %v3712, 1.0
  %v3742 = vsub.f32 %v3714, 1.0
  %v3743 = vsub.f32 %v3716, 1.0
  %v3744 = vsub.f32 %v3718, 1.0
  %v3745 = vsub.f32 %v3720, 1.0
  %v3746 = vsub.f32 %v3722, 1.0
  %v3747 = vsub.f32 %v3724, 1.0
  %v3748 = vsub.f32 %v3726, 1.0
  %v3749 = vsub.f32 %v3728, 1.0
  %v3750 = vsub.f32 %v3730, 1.0
  %v3751 = vsub.f32 %v3732, 1.0
  %v3752 = vsub.f32 %v3734, 1.0
  %v3753 = vsub.f32 %v3736, 1.0
  %v3754 = vsub.f32 %v3738, 1.0
  %v3755 = vsel %vm3675, %v3597, %v3739
  %v3756 = vsel %vm3676, %v3602, %v3740
  %v3757 = vsel %vm3677, %v3607, %v3741
  %v3758 = vsel %vm3678, %v3612, %v3742
  %v3759 = vsel %vm3679, %v3617, %v3743
  %v3760 = vsel %vm3680, %v3622, %v3744
  %v3761 = vsel %vm3681, %v3627, %v3745
  %v3762 = vsel %vm3682, %v3632, %v3746
  %v3763 = vsel %vm3683, %v3637, %v3747
  %v3764 = vsel %vm3684, %v3642, %v3748
  %v3765 = vsel %vm3685, %v3647, %v3749
  %v3766 = vsel %vm3686, %v3652, %v3750
  %v3767 = vsel %vm3687, %v3657, %v3751
  %v3768 = vsel %vm3688, %v3662, %v3752
  %v3769 = vsel %vm3689, %v3667, %v3753
  %v3770 = vsel %vm3690, %v3672, %v3754
  %v3771 = vmul.f32 %v3755, %v2273
  %v3772 = vmul.f32 %v3756, %v2274
  %v3773 = vmul.f32 %v3757, %v2275
  %v3774 = vmul.f32 %v3758, %v2276
  %v3775 = vmul.f32 %v3759, %v2277
  %v3776 = vmul.f32 %v3760, %v2278
  %v3777 = vmul.f32 %v3761, %v2279
  %v3778 = vmul.f32 %v3762, %v2280
  %v3779 = vmul.f32 %v3763, %v2281
  %v3780 = vmul.f32 %v3764, %v2282
  %v3781 = vmul.f32 %v3765, %v2283
  %v3782 = vmul.f32 %v3766, %v2284
  %v3783 = vmul.f32 %v3767, %v2285
  %v3784 = vmul.f32 %v3768, %v2286
  %v3785 = vmul.f32 %v3769, %v2287
  %v3786 = vmul.f32 %v3770, %v2288
  %v3787 = vsel %vm2449, %v3771, 0.0
  %3788 = vadd.xlane.f32.xlu0 %v3787
  %v3789 = vpop.xlane.xlu0 %3788
  %v3790 = vsel %vm2449, %v3772, 0.0
  %3791 = vadd.xlane.f32.xlu0 %v3790
  %v3792 = vpop.xlane.xlu0 %3791
  %v3793 = vsel %vm2449, %v3773, 0.0
  %3794 = vadd.xlane.f32.xlu0 %v3793
  %v3795 = vpop.xlane.xlu0 %3794
  %v3796 = vsel %vm2449, %v3774, 0.0
  %3797 = vadd.xlane.f32.xlu0 %v3796
  %v3798 = vpop.xlane.xlu0 %3797
  %v3799 = vsel %vm2449, %v3775, 0.0
  %3800 = vadd.xlane.f32.xlu0 %v3799
  %v3801 = vpop.xlane.xlu0 %3800
  %v3802 = vsel %vm2449, %v3776, 0.0
  %3803 = vadd.xlane.f32.xlu0 %v3802
  %v3804 = vpop.xlane.xlu0 %3803
  %v3805 = vsel %vm2449, %v3777, 0.0
  %3806 = vadd.xlane.f32.xlu0 %v3805
  %v3807 = vpop.xlane.xlu0 %3806
  %v3808 = vsel %vm2449, %v3778, 0.0
  %3809 = vadd.xlane.f32.xlu0 %v3808
  %v3810 = vpop.xlane.xlu0 %3809
  %v3811 = vsel %vm2449, %v3779, 0.0
  %3812 = vadd.xlane.f32.xlu0 %v3811
  %v3813 = vpop.xlane.xlu0 %3812
  %v3814 = vsel %vm2449, %v3780, 0.0
  %3815 = vadd.xlane.f32.xlu0 %v3814
  %v3816 = vpop.xlane.xlu0 %3815
  %v3817 = vsel %vm2449, %v3781, 0.0
  %3818 = vadd.xlane.f32.xlu0 %v3817
  %v3819 = vpop.xlane.xlu0 %3818
  %v3820 = vsel %vm2449, %v3782, 0.0
  %3821 = vadd.xlane.f32.xlu0 %v3820
  %v3822 = vpop.xlane.xlu0 %3821
  %v3823 = vsel %vm2449, %v3783, 0.0
  %3824 = vadd.xlane.f32.xlu0 %v3823
  %v3825 = vpop.xlane.xlu0 %3824
  %v3826 = vsel %vm2449, %v3784, 0.0
  %3827 = vadd.xlane.f32.xlu0 %v3826
  %v3828 = vpop.xlane.xlu0 %3827
  %v3829 = vsel %vm2449, %v3785, 0.0
  %3830 = vadd.xlane.f32.xlu0 %v3829
  %v3831 = vpop.xlane.xlu0 %3830
  %v3832 = vsel %vm2449, %v3786, 0.0
  %3833 = vadd.xlane.f32.xlu0 %v3832
  %v3834 = vpop.xlane.xlu0 %3833
  %v3835 = vadd.f32 %v3789, %v2165
  %v3836 = vadd.f32 %v3792, %v2171
  %v3837 = vadd.f32 %v3795, %v2177
  %v3838 = vadd.f32 %v3798, %v2183
  %v3839 = vadd.f32 %v3801, %v2189
  %v3840 = vadd.f32 %v3804, %v2195
  %v3841 = vadd.f32 %v3807, %v2201
  %v3842 = vadd.f32 %v3810, %v2207
  %v3843 = vadd.f32 %v3813, %v2213
  %v3844 = vadd.f32 %v3816, %v2219
  %v3845 = vadd.f32 %v3819, %v2225
  %v3846 = vadd.f32 %v3822, %v2231
  %v3847 = vadd.f32 %v3825, %v2237
  %v3848 = vadd.f32 %v3828, %v2243
  %v3849 = vadd.f32 %v3831, %v2249
  %v3850 = vadd.f32 %v3834, %v2255
  %3867 = vrot.lane.b32.xlu0 %v3835, 96
  %v3868 = vpop.permute.xlu0 %3867
  %3869 = vrot.lane.b32.xlu0 %v3836, 96
  %v3870 = vpop.permute.xlu0 %3869
  %3871 = vrot.lane.b32.xlu0 %v3837, 96
  %v3872 = vpop.permute.xlu0 %3871
  %3873 = vrot.lane.b32.xlu0 %v3838, 96
  %v3874 = vpop.permute.xlu0 %3873
  %3875 = vrot.lane.b32.xlu0 %v3839, 96
  %v3876 = vpop.permute.xlu0 %3875
  %3877 = vrot.lane.b32.xlu0 %v3840, 96
  %v3878 = vpop.permute.xlu0 %3877
  %3879 = vrot.lane.b32.xlu0 %v3841, 96
  %v3880 = vpop.permute.xlu0 %3879
  %3881 = vrot.lane.b32.xlu0 %v3842, 96
  %v3882 = vpop.permute.xlu0 %3881
  %3883 = vrot.lane.b32.xlu0 %v3843, 96
  %v3884 = vpop.permute.xlu0 %3883
  %3885 = vrot.lane.b32.xlu0 %v3844, 96
  %v3886 = vpop.permute.xlu0 %3885
  %3887 = vrot.lane.b32.xlu0 %v3845, 96
  %v3888 = vpop.permute.xlu0 %3887
  %3889 = vrot.lane.b32.xlu0 %v3846, 96
  %v3890 = vpop.permute.xlu0 %3889
  %3891 = vrot.lane.b32.xlu0 %v3847, 96
  %v3892 = vpop.permute.xlu0 %3891
  %3893 = vrot.lane.b32.xlu0 %v3848, 96
  %v3894 = vpop.permute.xlu0 %3893
  %3895 = vrot.lane.b32.xlu0 %v3849, 96
  %v3896 = vpop.permute.xlu0 %3895
  %3897 = vrot.lane.b32.xlu0 %v3850, 96
  %v3898 = vpop.permute.xlu0 %3897
  %3915 = vxpose.xlu0.b32.start [1/16] %v3868, 128
  %3916 = vxpose.xlu0.b32.cont [2/16] %v3870, 128
  %3917 = vxpose.xlu0.b32.cont [3/16] %v3872, 128
  %3918 = vxpose.xlu0.b32.cont [4/16] %v3874, 128
  %3919 = vxpose.xlu0.b32.cont [5/16] %v3876, 128
  %3920 = vxpose.xlu0.b32.cont [6/16] %v3878, 128
  %3921 = vxpose.xlu0.b32.cont [7/16] %v3880, 128
  %3922 = vxpose.xlu0.b32.cont [8/16] %v3882, 128
  %3923 = vxpose.xlu0.b32.cont [9/16] %v3884, 128
  %3924 = vxpose.xlu0.b32.cont [10/16] %v3886, 128
  %3925 = vxpose.xlu0.b32.cont [11/16] %v3888, 128
  %3926 = vxpose.xlu0.b32.cont [12/16] %v3890, 128
  %3927 = vxpose.xlu0.b32.cont [13/16] %v3892, 128
  %3928 = vxpose.xlu0.b32.cont [14/16] %v3894, 128
  %3929 = vxpose.xlu0.b32.cont [15/16] %v3896, 128
  %3930 = vxpose.xlu0.b32.end [16/16] %v3898, 128
  %v3931 = vpop.trf.xlu0
  %v3932 = vpop.trf.xlu0
  %v3933 = vpop.trf.xlu0
  %v3934 = vpop.trf.xlu0
  %v3935 = vpop.trf.xlu0
  %v3936 = vpop.trf.xlu0
  %v3937 = vpop.trf.xlu0
  %v3938 = vpop.trf.xlu0
  %v3939 = vpop.trf.xlu0
  %v3940 = vpop.trf.xlu0
  %v3941 = vpop.trf.xlu0
  %v3942 = vpop.trf.xlu0
  %v3943 = vpop.trf.xlu0
  %v3944 = vpop.trf.xlu0
  %v3945 = vpop.trf.xlu0
  %v3946 = vpop.trf.xlu0
  %3947 = vst [vmem:[%s8] sm:$0x1] %v3931
  %3948 = vxpose.xlu0.b32.start [1/16] %v3177, 128
  %3949 = vxpose.xlu0.b32.cont [2/16] %v3180, 128
  %3950 = vxpose.xlu0.b32.cont [3/16] %v3183, 128
  %3951 = vxpose.xlu0.b32.cont [4/16] %v3186, 128
  %3952 = vxpose.xlu0.b32.cont [5/16] %v3189, 128
  %3953 = vxpose.xlu0.b32.cont [6/16] %v3192, 128
  %3954 = vxpose.xlu0.b32.cont [7/16] %v3195, 128
  %3955 = vxpose.xlu0.b32.cont [8/16] %v3198, 128
  %3956 = vxpose.xlu0.b32.cont [9/16] %v3201, 128
  %3957 = vxpose.xlu0.b32.cont [10/16] %v3204, 128
  %3958 = vxpose.xlu0.b32.cont [11/16] %v3207, 128
  %3959 = vxpose.xlu0.b32.cont [12/16] %v3210, 128
  %3960 = vxpose.xlu0.b32.cont [13/16] %v3213, 128
  %3961 = vxpose.xlu0.b32.cont [14/16] %v3216, 128
  %3962 = vxpose.xlu0.b32.cont [15/16] %v3219, 128
  %3963 = vxpose.xlu0.b32.end [16/16] %v3222, 128
  %v3964 = vpop.trf.xlu0
  %v3965 = vpop.trf.xlu0
  %v3966 = vpop.trf.xlu0
  %v3967 = vpop.trf.xlu0
  %v3968 = vpop.trf.xlu0
  %v3969 = vpop.trf.xlu0
  %v3970 = vpop.trf.xlu0
  %v3971 = vpop.trf.xlu0
  %v3972 = vpop.trf.xlu0
  %v3973 = vpop.trf.xlu0
  %v3974 = vpop.trf.xlu0
  %v3975 = vpop.trf.xlu0
  %v3976 = vpop.trf.xlu0
  %v3977 = vpop.trf.xlu0
  %v3978 = vpop.trf.xlu0
  %v3979 = vpop.trf.xlu0
  %3980 = vst [vmem:[%s8 + $0x1] sm:$0x1] %v3964
  // Predicated region
  $region34: #{gmixer_forward.1} parent=0 // pred_check
    _
  $region35: #{gmixer_forward.1} parent=0 // pred_check_branch
    %3982 = sbr.rel (0) target = $region37
  $region36: #{gmixer_forward.1} parent=0 // pred_region
    _
  $region37: #{gmixer_forward.1} parent=0 // pred_fallthru
    _
  // Predicated region
  $region38: #{gmixer_forward.1} parent=0 // pred_check
    _
  $region39: #{gmixer_forward.1} parent=0 // pred_check_branch
    %3984 = sbr.rel (0) target = $region41
  $region40: #{gmixer_forward.1} parent=0 // pred_region
    _
  $region41: #{gmixer_forward.1} parent=0 // pred_fallthru
    _

</llo_original>
